<compile_context>
chip_gen: v7x
topology: tpu7x:2x2x1
jax: 0.10.0
libtpu: 0.0.40
codegen_flags: <defaults>
</compile_context>

<pallas_src>
import jax
import jax.numpy as jnp
from jax.experimental import pallas as pl
from jax.experimental.pallas import tpu as pltpu


def _round_up(x, m):
    return ((x + m - 1) // m) * m


def centralv_ns_forward(inputs, params, bs, max_t, *,
                        compute_dtype=jnp.float32, tile_n=2048, agent_pack=2):
    """Forward pass of CentralVCriticNS.

    inputs : (bs*max_t, input_dim) float32 (output of build_inputs)
    params : dict of per-agent weights (see init_params)
    compute_dtype : jnp.bfloat16 recommended on v6e/v7x (f32 accumulation kept).
    agent_pack    : agents packed per MXU pass (2 fills the 256-wide v6e/v7x MXU;
                    pass 1 on v5e where the MXU tile is 128 wide).
    Returns (bs, max_t, n_agents, 1) float32.
    """
    f32 = jnp.float32
    w1, b1, w2, b2, w3, b3 = (params[k] for k in ("w1", "b1", "w2", "b2", "w3", "b3"))
    n_agents, D, H = w1.shape
    N = inputs.shape[0]
    itemsize_c = jnp.dtype(compute_dtype).itemsize

    pack = max(1, int(agent_pack))
    n_pairs = -(-n_agents // pack)          # ceil
    n_agents_pad = n_pairs * pack

    D_pad = _round_up(D, 128)
    H_pad = _round_up(H, 128)
    PH = pack * H_pad                       # packed fc1/fc2 width

    # ---- tile geometry & VMEM budget (v7x has only 64 MiB physical VMEM) ----
    tile_n = _round_up(max(128, min(int(tile_n), _round_up(N, 128))), 128)

    def vmem_estimate(tn):
        in_b = 2 * tn * D_pad * itemsize_c                     # double-buffered input tile
        w_b = n_pairs * (D_pad * PH + PH * PH) * itemsize_c    # single-buffered weights
        bias_b = n_pairs * 3 * PH * 4                          # b1, b2, w3 rows (f32)
        out_b = 2 * n_agents_pad * tn * 4                      # double-buffered output
        inter_b = 4 * tn * PH * 4                              # h1/h2 f32 intermediates
        return in_b + w_b + bias_b + out_b + inter_b

    VMEM_BUDGET = 36 * 1024 * 1024
    while tile_n > 128 and vmem_estimate(tile_n) > VMEM_BUDGET:
        tile_n = max(128, _round_up(tile_n // 2, 128))

    N_pad = _round_up(N, tile_n)
    grid = (N_pad // tile_n,)

    # ---- pad + pack per-agent parameters -------------------------------------
    def pad_agents(a):
        return jnp.pad(a, ((0, n_agents_pad - n_agents),) + ((0, 0),) * (a.ndim - 1))

    w1p = pad_agents(jnp.pad(w1, ((0, 0), (0, D_pad - D), (0, H_pad - H))))
    b1p = pad_agents(jnp.pad(b1, ((0, 0), (0, 0), (0, H_pad - H))))
    w2p = pad_agents(jnp.pad(w2, ((0, 0), (0, H_pad - H), (0, H_pad - H))))
    b2p = pad_agents(jnp.pad(b2, ((0, 0), (0, 0), (0, H_pad - H))))
    w3p = pad_agents(jnp.pad(w3, ((0, 0), (0, H_pad - H), (0, 0))))
    b3p = pad_agents(b3.reshape(n_agents))

    # fc1: agents of a pair side-by-side along the output axis -> PH-wide matmul.
    w1_packed = (w1p.reshape(n_pairs, pack, D_pad, H_pad)
                 .transpose(0, 2, 1, 3).reshape(n_pairs, D_pad, PH)
                 .astype(compute_dtype))
    b1_packed = (b1p.reshape(n_pairs, pack, 1, H_pad)
                 .transpose(0, 2, 1, 3).reshape(n_pairs, 1, PH).astype(f32))
    # fc2: block-diagonal per pair -> one PH x PH matmul per pair (off-diag = 0).
    eye = jnp.eye(pack, dtype=f32)
    w2_packed = (jnp.einsum("pkij,kl->pkilj",
                            w2p.reshape(n_pairs, pack, H_pad, H_pad), eye)
                 .reshape(n_pairs, PH, PH).astype(compute_dtype))
    b2_packed = (b2p.reshape(n_pairs, pack, 1, H_pad)
                 .transpose(0, 2, 1, 3).reshape(n_pairs, 1, PH).astype(f32))
    # fc3 weight as one lane row per pair (each agent in its own 128-lane segment).
    w3_packed = w3p.reshape(n_pairs, pack, H_pad).reshape(n_pairs, 1, PH).astype(f32)
    b3_packed = b3p.astype(f32)

    # Note: this pad+cast materializes one extra HBM copy of the inputs; it is
    # only visible once the kernel itself is no longer overhead-bound.
    x = jnp.pad(inputs, ((0, N_pad - N), (0, D_pad - D))).astype(compute_dtype)

    # ---- kernel ---------------------------------------------------------------
    def kernel(x_ref, w1_ref, b1_ref, w2_ref, b2_ref, w3_ref, b3_ref, o_ref):
        # x_ref : (tile_n, D_pad)            shared input tile (compute dtype)
        # w1_ref: (n_pairs, D_pad, PH)       resident, compute dtype
        # b1_ref: (n_pairs, 1, PH)           resident, f32
        # w2_ref: (n_pairs, PH, PH)          resident, compute dtype (block-diagonal)
        # b2_ref: (n_pairs, 1, PH)           resident, f32
        # w3_ref: (n_pairs, 1, PH)           resident, f32
        # b3_ref: (n_agents_pad,)            SMEM, f32
        # o_ref : (n_agents_pad, 1, tile_n)  lane-dense per-agent value rows, f32
        x_t = x_ref[...]
        for p in range(n_pairs):             # static unroll: all agents in one grid step
            h1 = jnp.dot(x_t, w1_ref[p], preferred_element_type=jnp.float32) + b1_ref[p]
            h1 = jnp.maximum(h1, 0.0).astype(w2_ref.dtype)   # no-op in the f32 path
            h2 = jnp.dot(h1, w2_ref[p], preferred_element_type=jnp.float32) + b2_ref[p]
            h2 = jnp.maximum(h2, 0.0)
            # fc3 (output width 1) on VPU/XLU: multiply + per-segment lane reduce.
            prod = h2 * w3_ref[p]
            for k in range(pack):
                q = jnp.sum(prod[:, k * H_pad:(k + 1) * H_pad], axis=-1) + b3_ref[p * pack + k]
                o_ref[p * pack + k, 0, :] = q.astype(o_ref.dtype)   # lane-dense store

    def run(single_buffer_weights):
        res = {"pipeline_mode": pl.Buffered(1)} if single_buffer_weights else {}
        return pl.pallas_call(
            kernel,
            out_shape=jax.ShapeDtypeStruct((n_agents_pad, 1, N_pad), jnp.float32),
            grid_spec=pltpu.PrefetchScalarGridSpec(
                num_scalar_prefetch=0,
                grid=grid,
                in_specs=[
                    # shared input tile, streamed over the row axis
                    pl.BlockSpec((tile_n, D_pad), lambda n: (n, 0)),
                    # resident packed weights/biases (constant index_map -> single DMA)
                    pl.BlockSpec((n_pairs, D_pad, PH), lambda n: (0, 0, 0), **res),
                    pl.BlockSpec((n_pairs, 1, PH), lambda n: (0, 0, 0), **res),
                    pl.BlockSpec((n_pairs, PH, PH), lambda n: (0, 0, 0), **res),
                    pl.BlockSpec((n_pairs, 1, PH), lambda n: (0, 0, 0), **res),
                    pl.BlockSpec((n_pairs, 1, PH), lambda n: (0, 0, 0), **res),
                    # fc3 scalar biases in SMEM
                    pl.BlockSpec(memory_space=pltpu.MemorySpace.SMEM),
                ],
                out_specs=pl.BlockSpec((n_agents_pad, 1, tile_n), lambda n: (0, 0, n)),
            ),
            compiler_params=pltpu.CompilerParams(
                # row-tile axis is the (v7x megacore) sharded axis
                dimension_semantics=("parallel",),
                vmem_limit_bytes=48 * 1024 * 1024,
            ),
        )(x, w1_packed, b1_packed, w2_packed, b2_packed, w3_packed, b3_packed)

    try:
        out = run(True)
    except Exception:
        # Fallback if this jax build rejects pipeline_mode=pl.Buffered(1).
        out = run(False)

    # (n_agents_pad, 1, N_pad) -> (bs, max_t, n_agents, 1)  (matches th.cat(qs, dim=2))
    q = jnp.transpose(out[:n_agents, 0, :N], (1, 0)).reshape(bs, max_t, n_agents, 1)
    return q


def build_inputs(state, obs, actions_onehot, obs_individual_obs=True, obs_last_action=True):
    """Mirror of CentralVCriticNS._build_inputs for t=None."""
    bs, max_t = state.shape[0], state.shape[1]
    parts = [state.reshape(bs * max_t, -1)]
    if obs_individual_obs:
        parts.append(obs.reshape(bs * max_t, -1))
    if obs_last_action:
        zeros0 = jnp.zeros_like(actions_onehot[:, 0:1])
        last_actions = jnp.concatenate([zeros0, actions_onehot[:, :-1]], axis=1)
        parts.append(last_actions.reshape(bs * max_t, -1))
    return jnp.concatenate(parts, axis=1), bs, max_t


def init_params(key, n_agents, input_dim, hidden_dim):
    ks = jax.random.split(key, 6)
    s1 = 1.0 / jnp.sqrt(input_dim)
    s2 = 1.0 / jnp.sqrt(hidden_dim)
    return {
        "w1": jax.random.uniform(ks[0], (n_agents, input_dim, hidden_dim), jnp.float32, -s1, s1),
        "b1": jax.random.uniform(ks[1], (n_agents, 1, hidden_dim), jnp.float32, -s1, s1),
        "w2": jax.random.uniform(ks[2], (n_agents, hidden_dim, hidden_dim), jnp.float32, -s2, s2),
        "b2": jax.random.uniform(ks[3], (n_agents, 1, hidden_dim), jnp.float32, -s2, s2),
        "w3": jax.random.uniform(ks[4], (n_agents, hidden_dim, 1), jnp.float32, -s2, s2),
        "b3": jax.random.uniform(ks[5], (n_agents, 1, 1), jnp.float32, -s2, s2),
    }


def reference_forward(inputs, params, bs, max_t, compute_dtype=jnp.float32):
    """Pure-JAX reference; quantizes the same way as the kernel for bf16 mode."""
    f32 = jnp.float32
    x = inputs.astype(compute_dtype).astype(f32)
    n_agents = params["w1"].shape[0]
    qs = []
    for a in range(n_agents):
        w1 = params["w1"][a].astype(compute_dtype).astype(f32)
        w2 = params["w2"][a].astype(compute_dtype).astype(f32)
        h1 = jnp.maximum(x @ w1 + params["b1"][a], 0.0)
        h1 = h1.astype(compute_dtype).astype(f32)
        h2 = jnp.maximum(h1 @ w2 + params["b2"][a], 0.0)
        qs.append(h2 @ params["w3"][a] + params["b3"][a])
    q = jnp.stack(qs, axis=1)  # (N, n_agents, 1)
    return q.reshape(bs, max_t, n_agents, 1)


if __name__ == "__main__":
    # Small config consistent with the module.
    bs, max_t = 2, 8
    n_agents, n_actions = 3, 5
    state_dim, obs_dim, hidden_dim = 16, 10, 32
    input_dim = state_dim + n_agents * obs_dim + n_agents * n_actions

    key = jax.random.PRNGKey(0)
    k_state, k_obs, k_act, k_param = jax.random.split(key, 4)

    state = jax.random.normal(k_state, (bs, max_t, state_dim), jnp.float32)
    obs = jax.random.normal(k_obs, (bs, max_t, n_agents, obs_dim), jnp.float32)
    act_idx = jax.random.randint(k_act, (bs, max_t, n_agents), 0, n_actions)
    actions_onehot = jax.nn.one_hot(act_idx, n_actions, dtype=jnp.float32)

    inputs, bs_, max_t_ = build_inputs(state, obs, actions_onehot)
    assert inputs.shape == (bs * max_t, input_dim)

    params = init_params(k_param, n_agents, input_dim, hidden_dim)
    q_ref = reference_forward(inputs, params, bs_, max_t_, jnp.float32)

    # f32 path with agent-pair packing (module semantics, zeros-only padding).
    q = centralv_ns_forward(inputs, params, bs_, max_t_,
                            compute_dtype=jnp.float32, agent_pack=2)
    q = jax.block_until_ready(q)
    assert q.shape == (bs, max_t, n_agents, 1)
    assert jnp.allclose(q, q_ref, atol=1e-2, rtol=1e-2)

    # f32 path, no packing (v5e-friendly 128-wide layout).
    q1 = centralv_ns_forward(inputs, params, bs_, max_t_,
                             compute_dtype=jnp.float32, agent_pack=1)
    q1 = jax.block_until_ready(q1)
    assert jnp.allclose(q1, q_ref, atol=1e-2, rtol=1e-2)

    # bf16 fast path (v6e/v7x): MXU inputs/weights in bf16, f32 accumulation.
    q_bf = centralv_ns_forward(inputs, params, bs_, max_t_,
                               compute_dtype=jnp.bfloat16, agent_pack=2)
    q_bf = jax.block_until_ready(q_bf)
    q_ref_bf = reference_forward(inputs, params, bs_, max_t_, jnp.bfloat16)
    assert jnp.allclose(q_bf, q_ref_bf, atol=2e-2, rtol=2e-2)

    print("KERNEL_OK")
</pallas_src>

<mosaic_0001>
module attributes {stable_mosaic.version = 11 : i64} {
  func.func @kernel(%arg0: i32, %arg1: memref<128x128xf32, #tpu.memory_space<vmem>>, %arg2: memref<2x128x256xf32, #tpu.memory_space<vmem>>, %arg3: memref<2x1x256xf32, #tpu.memory_space<vmem>>, %arg4: memref<2x256x256xf32, #tpu.memory_space<vmem>>, %arg5: memref<2x1x256xf32, #tpu.memory_space<vmem>>, %arg6: memref<2x1x256xf32, #tpu.memory_space<vmem>>, %arg7: memref<4xf32, #tpu.memory_space<smem>>, %arg8: memref<4x1x128xf32, #tpu.memory_space<vmem>>) attributes {dimension_semantics = [#tpu.dimension_semantics<parallel>], iteration_bounds = array<i64: 1>, scalar_prefetch = 0 : i64, scratch_operands = 0 : i64, tpu.core_type = #tpu.core_type<tc>, window_params = [{transform_indices = @transform_0, window_bounds = array<i64: 128, 128>}, {pipeline_mode = #tpu.pipeline_mode<synchronous>, transform_indices = @transform_1, window_bounds = array<i64: 2, 128, 256>}, {pipeline_mode = #tpu.pipeline_mode<synchronous>, transform_indices = @transform_2, window_bounds = array<i64: 2, 1, 256>}, {pipeline_mode = #tpu.pipeline_mode<synchronous>, transform_indices = @transform_3, window_bounds = array<i64: 2, 256, 256>}, {pipeline_mode = #tpu.pipeline_mode<synchronous>, transform_indices = @transform_4, window_bounds = array<i64: 2, 1, 256>}, {pipeline_mode = #tpu.pipeline_mode<synchronous>, transform_indices = @transform_5, window_bounds = array<i64: 2, 1, 256>}, {transform_indices = @transform_6, window_bounds = array<i64: 4>}, {transform_indices = @transform_7, window_bounds = array<i64: 4, 1, 128>}]} {
    %c0 = arith.constant 0 : index
    %c0_0 = arith.constant 0 : index
    %0 = vector.load %arg1[%c0, %c0_0] : memref<128x128xf32, #tpu.memory_space<vmem>>, vector<128x128xf32>
    %c0_1 = arith.constant 0 : index
    %c0_2 = arith.constant 0 : index
    %c0_3 = arith.constant 0 : index
    %1 = vector.load %arg2[%c0_1, %c0_2, %c0_3] : memref<2x128x256xf32, #tpu.memory_space<vmem>>, vector<1x128x256xf32>
    %2 = vector.shape_cast %1 : vector<1x128x256xf32> to vector<128x256xf32>
    %cst = arith.constant dense<0.000000e+00> : vector<128x256xf32>
    %3 = tpu.matmul %0, %2, %cst {dimension_numbers = #tpu.dot_dimension_numbers<[1], [0], [0], [1], [0, 0, 1, 1], [], []>} : vector<128x128xf32>, vector<128x256xf32>, vector<128x256xf32> -> vector<128x256xf32>
    %c0_4 = arith.constant 0 : index
    %c0_5 = arith.constant 0 : index
    %c0_6 = arith.constant 0 : index
    %4 = vector.load %arg3[%c0_4, %c0_5, %c0_6] : memref<2x1x256xf32, #tpu.memory_space<vmem>>, vector<1x1x256xf32>
    %5 = vector.shape_cast %4 : vector<1x1x256xf32> to vector<1x256xf32>
    %6 = vector.broadcast %5 : vector<1x256xf32> to vector<128x256xf32>
    %7 = arith.addf %3, %6 : vector<128x256xf32>
    %cst_7 = arith.constant 0.000000e+00 : f32
    %8 = vector.broadcast %cst_7 : f32 to vector<128x256xf32>
    %9 = arith.maximumf %7, %8 : vector<128x256xf32>
    %c0_8 = arith.constant 0 : index
    %c0_9 = arith.constant 0 : index
    %c0_10 = arith.constant 0 : index
    %10 = vector.load %arg4[%c0_8, %c0_9, %c0_10] : memref<2x256x256xf32, #tpu.memory_space<vmem>>, vector<1x256x256xf32>
    %11 = vector.shape_cast %10 : vector<1x256x256xf32> to vector<256x256xf32>
    %cst_11 = arith.constant dense<0.000000e+00> : vector<128x256xf32>
    %12 = tpu.matmul %9, %11, %cst_11 {dimension_numbers = #tpu.dot_dimension_numbers<[1], [0], [0], [1], [0, 0, 1, 1], [], []>} : vector<128x256xf32>, vector<256x256xf32>, vector<128x256xf32> -> vector<128x256xf32>
    %c0_12 = arith.constant 0 : index
    %c0_13 = arith.constant 0 : index
    %c0_14 = arith.constant 0 : index
    %13 = vector.load %arg5[%c0_12, %c0_13, %c0_14] : memref<2x1x256xf32, #tpu.memory_space<vmem>>, vector<1x1x256xf32>
    %14 = vector.shape_cast %13 : vector<1x1x256xf32> to vector<1x256xf32>
    %15 = vector.broadcast %14 : vector<1x256xf32> to vector<128x256xf32>
    %16 = arith.addf %12, %15 : vector<128x256xf32>
    %cst_15 = arith.constant 0.000000e+00 : f32
    %17 = vector.broadcast %cst_15 : f32 to vector<128x256xf32>
    %18 = arith.maximumf %16, %17 : vector<128x256xf32>
    %c0_16 = arith.constant 0 : index
    %c0_17 = arith.constant 0 : index
    %c0_18 = arith.constant 0 : index
    %19 = vector.load %arg6[%c0_16, %c0_17, %c0_18] : memref<2x1x256xf32, #tpu.memory_space<vmem>>, vector<1x1x256xf32>
    %20 = vector.shape_cast %19 : vector<1x1x256xf32> to vector<1x256xf32>
    %21 = vector.broadcast %20 : vector<1x256xf32> to vector<128x256xf32>
    %22 = arith.mulf %18, %21 : vector<128x256xf32>
    %23 = vector.extract_strided_slice %22 {offsets = [0, 0], sizes = [128, 128], strides = [1, 1]} : vector<128x256xf32> to vector<128x128xf32>
    %cst_19 = arith.constant dense<0.000000e+00> : vector<128xf32>
    %24 = vector.multi_reduction <add>, %23, %cst_19 [1] : vector<128x128xf32> to vector<128xf32>
    %c0_20 = arith.constant 0 : index
    %25 = memref.load %arg7[%c0_20] : memref<4xf32, #tpu.memory_space<smem>>
    %26 = vector.broadcast %25 : f32 to vector<128xf32>
    %27 = arith.addf %24, %26 : vector<128xf32>
    %c0_21 = arith.constant 0 : index
    %c0_22 = arith.constant 0 : index
    %c0_23 = arith.constant 0 : index
    %28 = vector.load %arg8[%c0_21, %c0_22, %c0_23] : memref<4x1x128xf32, #tpu.memory_space<vmem>>, vector<1x1x128xf32>
    %29 = vector.shape_cast %28 : vector<1x1x128xf32> to vector<128xf32>
    %30 = vector.shape_cast %27 : vector<128xf32> to vector<1x1x128xf32>
    tpu.vector_store %arg8[%c0_21, %c0_22, %c0_23], %30 {strides = array<i32>} : memref<4x1x128xf32, #tpu.memory_space<vmem>>, vector<1x1x128xf32>,
    %31 = vector.extract_strided_slice %22 {offsets = [0, 128], sizes = [128, 128], strides = [1, 1]} : vector<128x256xf32> to vector<128x128xf32>
    %cst_24 = arith.constant dense<0.000000e+00> : vector<128xf32>
    %32 = vector.multi_reduction <add>, %31, %cst_24 [1] : vector<128x128xf32> to vector<128xf32>
    %c1 = arith.constant 1 : index
    %33 = memref.load %arg7[%c1] : memref<4xf32, #tpu.memory_space<smem>>
    %34 = vector.broadcast %33 : f32 to vector<128xf32>
    %35 = arith.addf %32, %34 : vector<128xf32>
    %c1_25 = arith.constant 1 : index
    %c0_26 = arith.constant 0 : index
    %c0_27 = arith.constant 0 : index
    %36 = vector.load %arg8[%c1_25, %c0_26, %c0_27] : memref<4x1x128xf32, #tpu.memory_space<vmem>>, vector<1x1x128xf32>
    %37 = vector.shape_cast %36 : vector<1x1x128xf32> to vector<128xf32>
    %38 = vector.shape_cast %35 : vector<128xf32> to vector<1x1x128xf32>
    tpu.vector_store %arg8[%c1_25, %c0_26, %c0_27], %38 {strides = array<i32>} : memref<4x1x128xf32, #tpu.memory_space<vmem>>, vector<1x1x128xf32>,
    %c1_28 = arith.constant 1 : index
    %c0_29 = arith.constant 0 : index
    %c0_30 = arith.constant 0 : index
    %39 = vector.load %arg2[%c1_28, %c0_29, %c0_30] : memref<2x128x256xf32, #tpu.memory_space<vmem>>, vector<1x128x256xf32>
    %40 = vector.shape_cast %39 : vector<1x128x256xf32> to vector<128x256xf32>
    %cst_31 = arith.constant dense<0.000000e+00> : vector<128x256xf32>
    %41 = tpu.matmul %0, %40, %cst_31 {dimension_numbers = #tpu.dot_dimension_numbers<[1], [0], [0], [1], [0, 0, 1, 1], [], []>} : vector<128x128xf32>, vector<128x256xf32>, vector<128x256xf32> -> vector<128x256xf32>
    %c1_32 = arith.constant 1 : index
    %c0_33 = arith.constant 0 : index
    %c0_34 = arith.constant 0 : index
    %42 = vector.load %arg3[%c1_32, %c0_33, %c0_34] : memref<2x1x256xf32, #tpu.memory_space<vmem>>, vector<1x1x256xf32>
    %43 = vector.shape_cast %42 : vector<1x1x256xf32> to vector<1x256xf32>
    %44 = vector.broadcast %43 : vector<1x256xf32> to vector<128x256xf32>
    %45 = arith.addf %41, %44 : vector<128x256xf32>
    %cst_35 = arith.constant 0.000000e+00 : f32
    %46 = vector.broadcast %cst_35 : f32 to vector<128x256xf32>
    %47 = arith.maximumf %45, %46 : vector<128x256xf32>
    %c1_36 = arith.constant 1 : index
    %c0_37 = arith.constant 0 : index
    %c0_38 = arith.constant 0 : index
    %48 = vector.load %arg4[%c1_36, %c0_37, %c0_38] : memref<2x256x256xf32, #tpu.memory_space<vmem>>, vector<1x256x256xf32>
    %49 = vector.shape_cast %48 : vector<1x256x256xf32> to vector<256x256xf32>
    %cst_39 = arith.constant dense<0.000000e+00> : vector<128x256xf32>
    %50 = tpu.matmul %47, %49, %cst_39 {dimension_numbers = #tpu.dot_dimension_numbers<[1], [0], [0], [1], [0, 0, 1, 1], [], []>} : vector<128x256xf32>, vector<256x256xf32>, vector<128x256xf32> -> vector<128x256xf32>
    %c1_40 = arith.constant 1 : index
    %c0_41 = arith.constant 0 : index
    %c0_42 = arith.constant 0 : index
    %51 = vector.load %arg5[%c1_40, %c0_41, %c0_42] : memref<2x1x256xf32, #tpu.memory_space<vmem>>, vector<1x1x256xf32>
    %52 = vector.shape_cast %51 : vector<1x1x256xf32> to vector<1x256xf32>
    %53 = vector.broadcast %52 : vector<1x256xf32> to vector<128x256xf32>
    %54 = arith.addf %50, %53 : vector<128x256xf32>
    %cst_43 = arith.constant 0.000000e+00 : f32
    %55 = vector.broadcast %cst_43 : f32 to vector<128x256xf32>
    %56 = arith.maximumf %54, %55 : vector<128x256xf32>
    %c1_44 = arith.constant 1 : index
    %c0_45 = arith.constant 0 : index
    %c0_46 = arith.constant 0 : index
    %57 = vector.load %arg6[%c1_44, %c0_45, %c0_46] : memref<2x1x256xf32, #tpu.memory_space<vmem>>, vector<1x1x256xf32>
    %58 = vector.shape_cast %57 : vector<1x1x256xf32> to vector<1x256xf32>
    %59 = vector.broadcast %58 : vector<1x256xf32> to vector<128x256xf32>
    %60 = arith.mulf %56, %59 : vector<128x256xf32>
    %61 = vector.extract_strided_slice %60 {offsets = [0, 0], sizes = [128, 128], strides = [1, 1]} : vector<128x256xf32> to vector<128x128xf32>
    %cst_47 = arith.constant dense<0.000000e+00> : vector<128xf32>
    %62 = vector.multi_reduction <add>, %61, %cst_47 [1] : vector<128x128xf32> to vector<128xf32>
    %c2 = arith.constant 2 : index
    %63 = memref.load %arg7[%c2] : memref<4xf32, #tpu.memory_space<smem>>
    %64 = vector.broadcast %63 : f32 to vector<128xf32>
    %65 = arith.addf %62, %64 : vector<128xf32>
    %c2_48 = arith.constant 2 : index
    %c0_49 = arith.constant 0 : index
    %c0_50 = arith.constant 0 : index
    %66 = vector.load %arg8[%c2_48, %c0_49, %c0_50] : memref<4x1x128xf32, #tpu.memory_space<vmem>>, vector<1x1x128xf32>
    %67 = vector.shape_cast %66 : vector<1x1x128xf32> to vector<128xf32>
    %68 = vector.shape_cast %65 : vector<128xf32> to vector<1x1x128xf32>
    tpu.vector_store %arg8[%c2_48, %c0_49, %c0_50], %68 {strides = array<i32>} : memref<4x1x128xf32, #tpu.memory_space<vmem>>, vector<1x1x128xf32>,
    %69 = vector.extract_strided_slice %60 {offsets = [0, 128], sizes = [128, 128], strides = [1, 1]} : vector<128x256xf32> to vector<128x128xf32>
    %cst_51 = arith.constant dense<0.000000e+00> : vector<128xf32>
    %70 = vector.multi_reduction <add>, %69, %cst_51 [1] : vector<128x128xf32> to vector<128xf32>
    %c3 = arith.constant 3 : index
    %71 = memref.load %arg7[%c3] : memref<4xf32, #tpu.memory_space<smem>>
    %72 = vector.broadcast %71 : f32 to vector<128xf32>
    %73 = arith.addf %70, %72 : vector<128xf32>
    %c3_52 = arith.constant 3 : index
    %c0_53 = arith.constant 0 : index
    %c0_54 = arith.constant 0 : index
    %74 = vector.load %arg8[%c3_52, %c0_53, %c0_54] : memref<4x1x128xf32, #tpu.memory_space<vmem>>, vector<1x1x128xf32>
    %75 = vector.shape_cast %74 : vector<1x1x128xf32> to vector<128xf32>
    %76 = vector.shape_cast %73 : vector<128xf32> to vector<1x1x128xf32>
    tpu.vector_store %arg8[%c3_52, %c0_53, %c0_54], %76 {strides = array<i32>} : memref<4x1x128xf32, #tpu.memory_space<vmem>>, vector<1x1x128xf32>,
    return
  }
  func.func @transform_0(%arg0: i32) -> (i32, i32) {
    %c0_i32 = arith.constant 0 : i32
    %c0_i32_0 = arith.constant 0 : i32
    return %arg0, %c0_i32 : i32, i32
  }
  func.func @transform_1(%arg0: i32) -> (i32, i32, i32) {
    %c0_i32 = arith.constant 0 : i32
    %c0_i32_0 = arith.constant 0 : i32
    %c0_i32_1 = arith.constant 0 : i32
    %c0_i32_2 = arith.constant 0 : i32
    return %c0_i32, %c0_i32_0, %c0_i32_1 : i32, i32, i32
  }
  func.func @transform_2(%arg0: i32) -> (i32, i32, i32) {
    %c0_i32 = arith.constant 0 : i32
    %c0_i32_0 = arith.constant 0 : i32
    %c0_i32_1 = arith.constant 0 : i32
    %c0_i32_2 = arith.constant 0 : i32
    return %c0_i32, %c0_i32_0, %c0_i32_1 : i32, i32, i32
  }
  func.func @transform_3(%arg0: i32) -> (i32, i32, i32) {
    %c0_i32 = arith.constant 0 : i32
    %c0_i32_0 = arith.constant 0 : i32
    %c0_i32_1 = arith.constant 0 : i32
    %c0_i32_2 = arith.constant 0 : i32
    return %c0_i32, %c0_i32_0, %c0_i32_1 : i32, i32, i32
  }
  func.func @transform_4(%arg0: i32) -> (i32, i32, i32) {
    %c0_i32 = arith.constant 0 : i32
    %c0_i32_0 = arith.constant 0 : i32
    %c0_i32_1 = arith.constant 0 : i32
    %c0_i32_2 = arith.constant 0 : i32
    return %c0_i32, %c0_i32_0, %c0_i32_1 : i32, i32, i32
  }
  func.func @transform_5(%arg0: i32) -> (i32, i32, i32) {
    %c0_i32 = arith.constant 0 : i32
    %c0_i32_0 = arith.constant 0 : i32
    %c0_i32_1 = arith.constant 0 : i32
    %c0_i32_2 = arith.constant 0 : i32
    return %c0_i32, %c0_i32_0, %c0_i32_1 : i32, i32, i32
  }
  func.func @transform_6(%arg0: i32) -> i32 {
    %c0_i32 = arith.constant 0 : i32
    %c0_i32_0 = arith.constant 0 : i32
    return %c0_i32 : i32
  }
  func.func @transform_7(%arg0: i32) -> (i32, i32, i32) {
    %c0_i32 = arith.constant 0 : i32
    %c0_i32_0 = arith.constant 0 : i32
    %c0_i32_1 = arith.constant 0 : i32
    return %c0_i32, %c0_i32_0, %arg0 : i32, i32, i32
  }
}

module attributes {stable_mosaic.version = 11 : i64} {
  func.func @kernel(%arg0: i32, %arg1: memref<128x128xf32, #tpu.memory_space<vmem>>, %arg2: memref<2x128x256xf32, #tpu.memory_space<vmem>>, %arg3: memref<2x1x256xf32, #tpu.memory_space<vmem>>, %arg4: memref<2x256x256xf32, #tpu.memory_space<vmem>>, %arg5: memref<2x1x256xf32, #tpu.memory_space<vmem>>, %arg6: memref<2x1x256xf32, #tpu.memory_space<vmem>>, %arg7: memref<4xf32, #tpu.memory_space<smem>>, %arg8: memref<4x1x128xf32, #tpu.memory_space<vmem>>) attributes {dimension_semantics = [#tpu.dimension_semantics<parallel>], iteration_bounds = array<i64: 1>, scalar_prefetch = 0 : i64, scratch_operands = 0 : i64, tpu.core_type = #tpu.core_type<tc>, window_params = [{transform_indices = @transform_0, window_bounds = array<i64: 128, 128>}, {pipeline_mode = #tpu.pipeline_mode<synchronous>, transform_indices = @transform_1, window_bounds = array<i64: 2, 128, 256>}, {pipeline_mode = #tpu.pipeline_mode<synchronous>, transform_indices = @transform_2, window_bounds = array<i64: 2, 1, 256>}, {pipeline_mode = #tpu.pipeline_mode<synchronous>, transform_indices = @transform_3, window_bounds = array<i64: 2, 256, 256>}, {pipeline_mode = #tpu.pipeline_mode<synchronous>, transform_indices = @transform_4, window_bounds = array<i64: 2, 1, 256>}, {pipeline_mode = #tpu.pipeline_mode<synchronous>, transform_indices = @transform_5, window_bounds = array<i64: 2, 1, 256>}, {transform_indices = @transform_6, window_bounds = array<i64: 4>}, {transform_indices = @transform_7, window_bounds = array<i64: 4, 1, 128>}]} {
    %c0 = arith.constant 0 : index
    %c0_0 = arith.constant 0 : index
    %0 = vector.load %arg1[%c0, %c0_0] : memref<128x128xf32, #tpu.memory_space<vmem>>, vector<128x128xf32>
    %c0_1 = arith.constant 0 : index
    %c0_2 = arith.constant 0 : index
    %c0_3 = arith.constant 0 : index
    %1 = vector.load %arg2[%c0_1, %c0_2, %c0_3] : memref<2x128x256xf32, #tpu.memory_space<vmem>>, vector<1x128x256xf32>
    %2 = vector.shape_cast %1 : vector<1x128x256xf32> to vector<128x256xf32>
    %cst = arith.constant dense<0.000000e+00> : vector<128x256xf32>
    %3 = tpu.matmul %0, %2, %cst {dimension_numbers = #tpu.dot_dimension_numbers<[1], [0], [0], [1], [0, 0, 1, 1], [], []>} : vector<128x128xf32>, vector<128x256xf32>, vector<128x256xf32> -> vector<128x256xf32>
    %c0_4 = arith.constant 0 : index
    %c0_5 = arith.constant 0 : index
    %c0_6 = arith.constant 0 : index
    %4 = vector.load %arg3[%c0_4, %c0_5, %c0_6] : memref<2x1x256xf32, #tpu.memory_space<vmem>>, vector<1x1x256xf32>
    %5 = vector.shape_cast %4 : vector<1x1x256xf32> to vector<1x256xf32>
    %6 = vector.broadcast %5 : vector<1x256xf32> to vector<128x256xf32>
    %7 = arith.addf %3, %6 : vector<128x256xf32>
    %cst_7 = arith.constant 0.000000e+00 : f32
    %8 = vector.broadcast %cst_7 : f32 to vector<128x256xf32>
    %9 = arith.maximumf %7, %8 : vector<128x256xf32>
    %c0_8 = arith.constant 0 : index
    %c0_9 = arith.constant 0 : index
    %c0_10 = arith.constant 0 : index
    %10 = vector.load %arg4[%c0_8, %c0_9, %c0_10] : memref<2x256x256xf32, #tpu.memory_space<vmem>>, vector<1x256x256xf32>
    %11 = vector.shape_cast %10 : vector<1x256x256xf32> to vector<256x256xf32>
    %cst_11 = arith.constant dense<0.000000e+00> : vector<128x256xf32>
    %12 = tpu.matmul %9, %11, %cst_11 {dimension_numbers = #tpu.dot_dimension_numbers<[1], [0], [0], [1], [0, 0, 1, 1], [], []>} : vector<128x256xf32>, vector<256x256xf32>, vector<128x256xf32> -> vector<128x256xf32>
    %c0_12 = arith.constant 0 : index
    %c0_13 = arith.constant 0 : index
    %c0_14 = arith.constant 0 : index
    %13 = vector.load %arg5[%c0_12, %c0_13, %c0_14] : memref<2x1x256xf32, #tpu.memory_space<vmem>>, vector<1x1x256xf32>
    %14 = vector.shape_cast %13 : vector<1x1x256xf32> to vector<1x256xf32>
    %15 = vector.broadcast %14 : vector<1x256xf32> to vector<128x256xf32>
    %16 = arith.addf %12, %15 : vector<128x256xf32>
    %cst_15 = arith.constant 0.000000e+00 : f32
    %17 = vector.broadcast %cst_15 : f32 to vector<128x256xf32>
    %18 = arith.maximumf %16, %17 : vector<128x256xf32>
    %c0_16 = arith.constant 0 : index
    %c0_17 = arith.constant 0 : index
    %c0_18 = arith.constant 0 : index
    %19 = vector.load %arg6[%c0_16, %c0_17, %c0_18] : memref<2x1x256xf32, #tpu.memory_space<vmem>>, vector<1x1x256xf32>
    %20 = vector.shape_cast %19 : vector<1x1x256xf32> to vector<1x256xf32>
    %21 = vector.broadcast %20 : vector<1x256xf32> to vector<128x256xf32>
    %22 = arith.mulf %18, %21 : vector<128x256xf32>
    %23 = vector.extract_strided_slice %22 {offsets = [0, 0], sizes = [128, 128], strides = [1, 1]} : vector<128x256xf32> to vector<128x128xf32>
    %cst_19 = arith.constant dense<0.000000e+00> : vector<128xf32>
    %24 = vector.multi_reduction <add>, %23, %cst_19 [1] : vector<128x128xf32> to vector<128xf32>
    %c0_20 = arith.constant 0 : index
    %25 = memref.load %arg7[%c0_20] : memref<4xf32, #tpu.memory_space<smem>>
    %26 = vector.broadcast %25 : f32 to vector<128xf32>
    %27 = arith.addf %24, %26 : vector<128xf32>
    %c0_21 = arith.constant 0 : index
    %c0_22 = arith.constant 0 : index
    %c0_23 = arith.constant 0 : index
    %28 = vector.load %arg8[%c0_21, %c0_22, %c0_23] : memref<4x1x128xf32, #tpu.memory_space<vmem>>, vector<1x1x128xf32>
    %29 = vector.shape_cast %28 : vector<1x1x128xf32> to vector<128xf32>
    %30 = vector.shape_cast %27 : vector<128xf32> to vector<1x1x128xf32>
    tpu.vector_store %arg8[%c0_21, %c0_22, %c0_23], %30 {strides = array<i32>} : memref<4x1x128xf32, #tpu.memory_space<vmem>>, vector<1x1x128xf32>,
    %31 = vector.extract_strided_slice %22 {offsets = [0, 128], sizes = [128, 128], strides = [1, 1]} : vector<128x256xf32> to vector<128x128xf32>
    %cst_24 = arith.constant dense<0.000000e+00> : vector<128xf32>
    %32 = vector.multi_reduction <add>, %31, %cst_24 [1] : vector<128x128xf32> to vector<128xf32>
    %c1 = arith.constant 1 : index
    %33 = memref.load %arg7[%c1] : memref<4xf32, #tpu.memory_space<smem>>
    %34 = vector.broadcast %33 : f32 to vector<128xf32>
    %35 = arith.addf %32, %34 : vector<128xf32>
    %c1_25 = arith.constant 1 : index
    %c0_26 = arith.constant 0 : index
    %c0_27 = arith.constant 0 : index
    %36 = vector.load %arg8[%c1_25, %c0_26, %c0_27] : memref<4x1x128xf32, #tpu.memory_space<vmem>>, vector<1x1x128xf32>
    %37 = vector.shape_cast %36 : vector<1x1x128xf32> to vector<128xf32>
    %38 = vector.shape_cast %35 : vector<128xf32> to vector<1x1x128xf32>
    tpu.vector_store %arg8[%c1_25, %c0_26, %c0_27], %38 {strides = array<i32>} : memref<4x1x128xf32, #tpu.memory_space<vmem>>, vector<1x1x128xf32>,
    %c1_28 = arith.constant 1 : index
    %c0_29 = arith.constant 0 : index
    %c0_30 = arith.constant 0 : index
    %39 = vector.load %arg2[%c1_28, %c0_29, %c0_30] : memref<2x128x256xf32, #tpu.memory_space<vmem>>, vector<1x128x256xf32>
    %40 = vector.shape_cast %39 : vector<1x128x256xf32> to vector<128x256xf32>
    %cst_31 = arith.constant dense<0.000000e+00> : vector<128x256xf32>
    %41 = tpu.matmul %0, %40, %cst_31 {dimension_numbers = #tpu.dot_dimension_numbers<[1], [0], [0], [1], [0, 0, 1, 1], [], []>} : vector<128x128xf32>, vector<128x256xf32>, vector<128x256xf32> -> vector<128x256xf32>
    %c1_32 = arith.constant 1 : index
    %c0_33 = arith.constant 0 : index
    %c0_34 = arith.constant 0 : index
    %42 = vector.load %arg3[%c1_32, %c0_33, %c0_34] : memref<2x1x256xf32, #tpu.memory_space<vmem>>, vector<1x1x256xf32>
    %43 = vector.shape_cast %42 : vector<1x1x256xf32> to vector<1x256xf32>
    %44 = vector.broadcast %43 : vector<1x256xf32> to vector<128x256xf32>
    %45 = arith.addf %41, %44 : vector<128x256xf32>
    %cst_35 = arith.constant 0.000000e+00 : f32
    %46 = vector.broadcast %cst_35 : f32 to vector<128x256xf32>
    %47 = arith.maximumf %45, %46 : vector<128x256xf32>
    %c1_36 = arith.constant 1 : index
    %c0_37 = arith.constant 0 : index
    %c0_38 = arith.constant 0 : index
    %48 = vector.load %arg4[%c1_36, %c0_37, %c0_38] : memref<2x256x256xf32, #tpu.memory_space<vmem>>, vector<1x256x256xf32>
    %49 = vector.shape_cast %48 : vector<1x256x256xf32> to vector<256x256xf32>
    %cst_39 = arith.constant dense<0.000000e+00> : vector<128x256xf32>
    %50 = tpu.matmul %47, %49, %cst_39 {dimension_numbers = #tpu.dot_dimension_numbers<[1], [0], [0], [1], [0, 0, 1, 1], [], []>} : vector<128x256xf32>, vector<256x256xf32>, vector<128x256xf32> -> vector<128x256xf32>
    %c1_40 = arith.constant 1 : index
    %c0_41 = arith.constant 0 : index
    %c0_42 = arith.constant 0 : index
    %51 = vector.load %arg5[%c1_40, %c0_41, %c0_42] : memref<2x1x256xf32, #tpu.memory_space<vmem>>, vector<1x1x256xf32>
    %52 = vector.shape_cast %51 : vector<1x1x256xf32> to vector<1x256xf32>
    %53 = vector.broadcast %52 : vector<1x256xf32> to vector<128x256xf32>
    %54 = arith.addf %50, %53 : vector<128x256xf32>
    %cst_43 = arith.constant 0.000000e+00 : f32
    %55 = vector.broadcast %cst_43 : f32 to vector<128x256xf32>
    %56 = arith.maximumf %54, %55 : vector<128x256xf32>
    %c1_44 = arith.constant 1 : index
    %c0_45 = arith.constant 0 : index
    %c0_46 = arith.constant 0 : index
    %57 = vector.load %arg6[%c1_44, %c0_45, %c0_46] : memref<2x1x256xf32, #tpu.memory_space<vmem>>, vector<1x1x256xf32>
    %58 = vector.shape_cast %57 : vector<1x1x256xf32> to vector<1x256xf32>
    %59 = vector.broadcast %58 : vector<1x256xf32> to vector<128x256xf32>
    %60 = arith.mulf %56, %59 : vector<128x256xf32>
    %61 = vector.extract_strided_slice %60 {offsets = [0, 0], sizes = [128, 128], strides = [1, 1]} : vector<128x256xf32> to vector<128x128xf32>
    %cst_47 = arith.constant dense<0.000000e+00> : vector<128xf32>
    %62 = vector.multi_reduction <add>, %61, %cst_47 [1] : vector<128x128xf32> to vector<128xf32>
    %c2 = arith.constant 2 : index
    %63 = memref.load %arg7[%c2] : memref<4xf32, #tpu.memory_space<smem>>
    %64 = vector.broadcast %63 : f32 to vector<128xf32>
    %65 = arith.addf %62, %64 : vector<128xf32>
    %c2_48 = arith.constant 2 : index
    %c0_49 = arith.constant 0 : index
    %c0_50 = arith.constant 0 : index
    %66 = vector.load %arg8[%c2_48, %c0_49, %c0_50] : memref<4x1x128xf32, #tpu.memory_space<vmem>>, vector<1x1x128xf32>
    %67 = vector.shape_cast %66 : vector<1x1x128xf32> to vector<128xf32>
    %68 = vector.shape_cast %65 : vector<128xf32> to vector<1x1x128xf32>
    tpu.vector_store %arg8[%c2_48, %c0_49, %c0_50], %68 {strides = array<i32>} : memref<4x1x128xf32, #tpu.memory_space<vmem>>, vector<1x1x128xf32>,
    %69 = vector.extract_strided_slice %60 {offsets = [0, 128], sizes = [128, 128], strides = [1, 1]} : vector<128x256xf32> to vector<128x128xf32>
    %cst_51 = arith.constant dense<0.000000e+00> : vector<128xf32>
    %70 = vector.multi_reduction <add>, %69, %cst_51 [1] : vector<128x128xf32> to vector<128xf32>
    %c3 = arith.constant 3 : index
    %71 = memref.load %arg7[%c3] : memref<4xf32, #tpu.memory_space<smem>>
    %72 = vector.broadcast %71 : f32 to vector<128xf32>
    %73 = arith.addf %70, %72 : vector<128xf32>
    %c3_52 = arith.constant 3 : index
    %c0_53 = arith.constant 0 : index
    %c0_54 = arith.constant 0 : index
    %74 = vector.load %arg8[%c3_52, %c0_53, %c0_54] : memref<4x1x128xf32, #tpu.memory_space<vmem>>, vector<1x1x128xf32>
    %75 = vector.shape_cast %74 : vector<1x1x128xf32> to vector<128xf32>
    %76 = vector.shape_cast %73 : vector<128xf32> to vector<1x1x128xf32>
    tpu.vector_store %arg8[%c3_52, %c0_53, %c0_54], %76 {strides = array<i32>} : memref<4x1x128xf32, #tpu.memory_space<vmem>>, vector<1x1x128xf32>,
    return
  }
  func.func @transform_0(%arg0: i32) -> (i32, i32) {
    %c0_i32 = arith.constant 0 : i32
    %c0_i32_0 = arith.constant 0 : i32
    return %arg0, %c0_i32 : i32, i32
  }
  func.func @transform_1(%arg0: i32) -> (i32, i32, i32) {
    %c0_i32 = arith.constant 0 : i32
    %c0_i32_0 = arith.constant 0 : i32
    %c0_i32_1 = arith.constant 0 : i32
    %c0_i32_2 = arith.constant 0 : i32
    return %c0_i32, %c0_i32_0, %c0_i32_1 : i32, i32, i32
  }
  func.func @transform_2(%arg0: i32) -> (i32, i32, i32) {
    %c0_i32 = arith.constant 0 : i32
    %c0_i32_0 = arith.constant 0 : i32
    %c0_i32_1 = arith.constant 0 : i32
    %c0_i32_2 = arith.constant 0 : i32
    return %c0_i32, %c0_i32_0, %c0_i32_1 : i32, i32, i32
  }
  func.func @transform_3(%arg0: i32) -> (i32, i32, i32) {
    %c0_i32 = arith.constant 0 : i32
    %c0_i32_0 = arith.constant 0 : i32
    %c0_i32_1 = arith.constant 0 : i32
    %c0_i32_2 = arith.constant 0 : i32
    return %c0_i32, %c0_i32_0, %c0_i32_1 : i32, i32, i32
  }
  func.func @transform_4(%arg0: i32) -> (i32, i32, i32) {
    %c0_i32 = arith.constant 0 : i32
    %c0_i32_0 = arith.constant 0 : i32
    %c0_i32_1 = arith.constant 0 : i32
    %c0_i32_2 = arith.constant 0 : i32
    return %c0_i32, %c0_i32_0, %c0_i32_1 : i32, i32, i32
  }
  func.func @transform_5(%arg0: i32) -> (i32, i32, i32) {
    %c0_i32 = arith.constant 0 : i32
    %c0_i32_0 = arith.constant 0 : i32
    %c0_i32_1 = arith.constant 0 : i32
    %c0_i32_2 = arith.constant 0 : i32
    return %c0_i32, %c0_i32_0, %c0_i32_1 : i32, i32, i32
  }
  func.func @transform_6(%arg0: i32) -> i32 {
    %c0_i32 = arith.constant 0 : i32
    %c0_i32_0 = arith.constant 0 : i32
    return %c0_i32 : i32
  }
  func.func @transform_7(%arg0: i32) -> (i32, i32, i32) {
    %c0_i32 = arith.constant 0 : i32
    %c0_i32_0 = arith.constant 0 : i32
    %c0_i32_1 = arith.constant 0 : i32
    return %c0_i32, %c0_i32_0, %arg0 : i32, i32, i32
  }
}

</mosaic_0001>

<llo_original>
// kernel: tpu_custom_call.1
$region0: #{tpu_custom_call.1}
  #allocation0 [shape = 'u32[]', space=smem, size = 0x4, offset = 0x4, fixed_abs, tag = 'smem constant byte address 0x4 - core index']
  #allocation1 [shape = 'u32[144,128]{1,0:T(1,128)}', space=vmem, size = 0x12000, scoped, tag = 'internal scratch']
  %s0 = inlined_call_operand.hbm [shape: f32[128,128], index: 0, kind: input, shape index: {}]
  %s1 = inlined_call_operand.hbm [shape: f32[2,128,256], index: 1, kind: input, shape index: {}]
  %s2 = inlined_call_operand.vmem [shape: f32[2,1,256], index: 2, kind: input, shape index: {}]
  %s3 = inlined_call_operand.hbm [shape: f32[2,256,256], index: 3, kind: input, shape index: {}]
  %s4 = inlined_call_operand.vmem [shape: f32[2,1,256], index: 4, kind: input, shape index: {}]
  %s5 = inlined_call_operand.vmem [shape: f32[2,1,256], index: 5, kind: input, shape index: {}]
  %s6 = inlined_call_operand.vmem [shape: f32[4], index: 6, kind: input, shape index: {}]
  %s7 = inlined_call_operand.hbm [shape: f32[4,1,128], index: 7, kind: output, shape index: {}]
  %s8 = sld [smem:[#allocation0]]
  $region54: #{tpu_custom_call.1} parent=0
    _
  %s10 = ssub.s32 1, %s8
  %s11 = scalar_select 0, %s10, %s8
  $region1: #{tpu_custom_call.1} parent=0
    #allocation2 [shape = 'u8[65536]{0}', space=vmem, size = 0x10000, scoped, tag = 'input window, operand 0, single buffered']
    #allocation3 [shape = 's32[1]{0}', space=sflag, size = 0x4, scoped, tag = 'scoped memory for tpu_custom_call.1']
    #allocation4 [shape = 's32[1]{0}', space=sflag, size = 0x4, scoped, tag = 'scoped memory for tpu_custom_call.1']
    #allocation5 [shape = 's32[1]{0}', space=sflag, size = 0x4, scoped, tag = 'scoped memory for tpu_custom_call.1']
    #allocation6 [shape = 'u8[262144]{0}', space=vmem, size = 0x40000, scoped, tag = 'input window, operand 1, single buffered']
    #allocation7 [shape = 's32[1]{0}', space=sflag, size = 0x4, scoped, tag = 'scoped memory for tpu_custom_call.1']
    #allocation8 [shape = 'u8[524288]{0}', space=vmem, size = 0x80000, scoped, tag = 'input window, operand 3, single buffered']
    #allocation9 [shape = 'u8[512]{0}', space=smem, size = 0x200, scoped, tag = 'input window, operand 6, single buffered']
    #allocation10 [shape = 'u8[2048]{0}', space=vmem, size = 0x800, scoped, tag = 'output window, operand 0, single buffered']
    %12 = vsyncpa [#allocation3], 0
    %13 = vsyncpa [#allocation7], 0
    %14 = vsyncpa [#allocation5], 0
    %15 = vsyncpa [#allocation4], 0
    // Predicated region
    $region2: #{tpu_custom_call.1} parent=1 // pred_check
      _
    $region3: #{tpu_custom_call.1} parent=1 // pred_check_branch
      %17 = sbr.rel (0) target = $region5
    $region4: #{tpu_custom_call.1} parent=1 // pred_region
      %s19 = ssub.s32 2048, 2048
      %20 = vsyncadd [#allocation3], %s19
      %s21 = sshll.u32 [#allocation2], 4
      %s22 = int_to_ptr.vmem [resolvable:$true] %s21
      %27 = dma.hbm_to_vmem [thread:$0]  %s0, 2048, %s22, [#allocation3], 128, 128, 8
    $region5: #{tpu_custom_call.1} parent=1 // pred_fallthru
      _
    // Predicated region
    $region6: #{tpu_custom_call.1} parent=1 // pred_check
      _
    $region7: #{tpu_custom_call.1} parent=1 // pred_check_branch
      %29 = sbr.rel (0) target = $region9
    $region8: #{tpu_custom_call.1} parent=1 // pred_region
      %s31 = ssub.s32 8192, 8192
      %32 = vsyncadd [#allocation7], %s31
      %s33 = sshll.u32 [#allocation6], 4
      %s34 = int_to_ptr.vmem [resolvable:$true] %s33
      %39 = dma.hbm_to_vmem [thread:$0]  %s1, 8192, %s34, [#allocation7], 256, 256, 16
    $region9: #{tpu_custom_call.1} parent=1 // pred_fallthru
      _
    // Predicated region
    $region10: #{tpu_custom_call.1} parent=1 // pred_check
      _
    $region11: #{tpu_custom_call.1} parent=1 // pred_check_branch
      %41 = sbr.rel (0) target = $region13
    $region12: #{tpu_custom_call.1} parent=1 // pred_region
      _
    $region13: #{tpu_custom_call.1} parent=1 // pred_fallthru
      _
    // Predicated region
    $region14: #{tpu_custom_call.1} parent=1 // pred_check
      _
    $region15: #{tpu_custom_call.1} parent=1 // pred_check_branch
      %43 = sbr.rel (0) target = $region17
    $region16: #{tpu_custom_call.1} parent=1 // pred_region
      %s45 = ssub.s32 16384, 16384
      %46 = vsyncadd [#allocation7], %s45
      %s47 = sshll.u32 [#allocation8], 4
      %s48 = int_to_ptr.vmem [resolvable:$true] %s47
      %53 = dma.hbm_to_vmem [thread:$0]  %s3, 16384, %s48, [#allocation7], 256, 256, 16
    $region17: #{tpu_custom_call.1} parent=1 // pred_fallthru
      _
    // Predicated region
    $region18: #{tpu_custom_call.1} parent=1 // pred_check
      _
    $region19: #{tpu_custom_call.1} parent=1 // pred_check_branch
      %55 = sbr.rel (0) target = $region21
    $region20: #{tpu_custom_call.1} parent=1 // pred_region
      _
    $region21: #{tpu_custom_call.1} parent=1 // pred_fallthru
      _
    // Predicated region
    $region22: #{tpu_custom_call.1} parent=1 // pred_check
      _
    $region23: #{tpu_custom_call.1} parent=1 // pred_check_branch
      %57 = sbr.rel (0) target = $region25
    $region24: #{tpu_custom_call.1} parent=1 // pred_region
      _
    $region25: #{tpu_custom_call.1} parent=1 // pred_fallthru
      _
    // Predicated region
    $region26: #{tpu_custom_call.1} parent=1 // pred_check
      _
    $region27: #{tpu_custom_call.1} parent=1 // pred_check_branch
      %59 = sbr.rel (0) target = $region29
    $region28: #{tpu_custom_call.1} parent=1 // pred_region
      %s61 = ssub.s32 16, 16
      %62 = vsyncadd [#allocation5], %s61
      %s64 = sshll.u32 %s6, 4
      %s65 = int_to_ptr.vmem [resolvable:$true] %s64
      %67 = dma.vmem_to_smem %s65, 16, [#allocation9], [#allocation5]
    $region29: #{tpu_custom_call.1} parent=1 // pred_fallthru
      _
    // Predicated region
    $region30: #{tpu_custom_call.1} parent=1 // pred_check
      _
    $region31: #{tpu_custom_call.1} parent=1 // pred_check_branch
      %69 = sbr.rel (0) target = $region33
    $region32: #{tpu_custom_call.1} parent=1 // pred_region
      %70 = dma.done [#allocation3], 2048
    $region33: #{tpu_custom_call.1} parent=1 // pred_fallthru
      _
    // Predicated region
    $region34: #{tpu_custom_call.1} parent=1 // pred_check
      _
    $region35: #{tpu_custom_call.1} parent=1 // pred_check_branch
      %72 = sbr.rel (0) target = $region37
    $region36: #{tpu_custom_call.1} parent=1 // pred_region
      %73 = dma.done [#allocation7], 8192
    $region37: #{tpu_custom_call.1} parent=1 // pred_fallthru
      _
    // Predicated region
    $region38: #{tpu_custom_call.1} parent=1 // pred_check
      _
    $region39: #{tpu_custom_call.1} parent=1 // pred_check_branch
      %75 = sbr.rel (0) target = $region41
    $region40: #{tpu_custom_call.1} parent=1 // pred_region
      %76 = dma.done [#allocation7], 16384
    $region41: #{tpu_custom_call.1} parent=1 // pred_fallthru
      _
    // Predicated region
    $region42: #{tpu_custom_call.1} parent=1 // pred_check
      _
    $region43: #{tpu_custom_call.1} parent=1 // pred_check_branch
      %78 = sbr.rel (0) target = $region45
    $region44: #{tpu_custom_call.1} parent=1 // pred_region
      %79 = dma.done [#allocation5], 16
    $region45: #{tpu_custom_call.1} parent=1 // pred_fallthru
      _
    %80 = sfence
    %v81 = vld [vmem:[#allocation2] sm:$0xff]
    %v82 = vld [vmem:[#allocation2 + $0x8] sm:$0xff]
    %v83 = vld [vmem:[#allocation2 + $0x10] sm:$0xff]
    %v84 = vld [vmem:[#allocation2 + $0x18] sm:$0xff]
    %v85 = vld [vmem:[#allocation2 + $0x20] sm:$0xff]
    %v86 = vld [vmem:[#allocation2 + $0x28] sm:$0xff]
    %v87 = vld [vmem:[#allocation2 + $0x30] sm:$0xff]
    %v88 = vld [vmem:[#allocation2 + $0x38] sm:$0xff]
    %v89 = vld [vmem:[#allocation2 + $0x40] sm:$0xff]
    %v90 = vld [vmem:[#allocation2 + $0x48] sm:$0xff]
    %v91 = vld [vmem:[#allocation2 + $0x50] sm:$0xff]
    %v92 = vld [vmem:[#allocation2 + $0x58] sm:$0xff]
    %v93 = vld [vmem:[#allocation2 + $0x60] sm:$0xff]
    %v94 = vld [vmem:[#allocation2 + $0x68] sm:$0xff]
    %v95 = vld [vmem:[#allocation2 + $0x70] sm:$0xff]
    %v96 = vld [vmem:[#allocation2 + $0x78] sm:$0xff]
    %v97 = vld [vmem:[#allocation6] sm:$0xff]
    %v98 = vld [vmem:[#allocation6 + $0x8] sm:$0xff]
    %v99 = vld [vmem:[#allocation6 + $0x10] sm:$0xff]
    %v100 = vld [vmem:[#allocation6 + $0x18] sm:$0xff]
    %v101 = vld [vmem:[#allocation6 + $0x20] sm:$0xff]
    %v102 = vld [vmem:[#allocation6 + $0x28] sm:$0xff]
    %v103 = vld [vmem:[#allocation6 + $0x30] sm:$0xff]
    %v104 = vld [vmem:[#allocation6 + $0x38] sm:$0xff]
    %v105 = vld [vmem:[#allocation6 + $0x40] sm:$0xff]
    %v106 = vld [vmem:[#allocation6 + $0x48] sm:$0xff]
    %v107 = vld [vmem:[#allocation6 + $0x50] sm:$0xff]
    %v108 = vld [vmem:[#allocation6 + $0x58] sm:$0xff]
    %v109 = vld [vmem:[#allocation6 + $0x60] sm:$0xff]
    %v110 = vld [vmem:[#allocation6 + $0x68] sm:$0xff]
    %v111 = vld [vmem:[#allocation6 + $0x70] sm:$0xff]
    %v112 = vld [vmem:[#allocation6 + $0x78] sm:$0xff]
    %v113 = vld [vmem:[#allocation6 + $0x80] sm:$0xff]
    %v114 = vld [vmem:[#allocation6 + $0x88] sm:$0xff]
    %v115 = vld [vmem:[#allocation6 + $0x90] sm:$0xff]
    %v116 = vld [vmem:[#allocation6 + $0x98] sm:$0xff]
    %v117 = vld [vmem:[#allocation6 + $0xa0] sm:$0xff]
    %v118 = vld [vmem:[#allocation6 + $0xa8] sm:$0xff]
    %v119 = vld [vmem:[#allocation6 + $0xb0] sm:$0xff]
    %v120 = vld [vmem:[#allocation6 + $0xb8] sm:$0xff]
    %v121 = vld [vmem:[#allocation6 + $0xc0] sm:$0xff]
    %v122 = vld [vmem:[#allocation6 + $0xc8] sm:$0xff]
    %v123 = vld [vmem:[#allocation6 + $0xd0] sm:$0xff]
    %v124 = vld [vmem:[#allocation6 + $0xd8] sm:$0xff]
    %v125 = vld [vmem:[#allocation6 + $0xe0] sm:$0xff]
    %v126 = vld [vmem:[#allocation6 + $0xe8] sm:$0xff]
    %v127 = vld [vmem:[#allocation6 + $0xf0] sm:$0xff]
    %v128 = vld [vmem:[#allocation6 + $0xf8] sm:$0xff]
    %v129 = vld [vmem:[%s2] sm:$0x3]
    %v131 = vlaneseq
    %v132 = vshrl.u32 %v131, 7
    %v133 = vsub.s32 0, %v132
    %v134 = vrot.slane %v129, %v133
    %v135 = vlaneseq
    %v136 = vshrl.u32 %v135, 7
    %v137 = vsub.s32 1, %v136
    %v138 = vrot.slane %v129, %v137
    %141 = vmatprep.subr.mxu0 %v98
    %142 = vmatpush1.msra.mxu0 %v97
    %143 = vmatprep.subr.mxu0 %v100
    %144 = vmatpush1.msra.mxu0 %v99
    %145 = vmatprep.subr.mxu0 %v102
    %146 = vmatpush1.msra.mxu0 %v101
    %147 = vmatprep.subr.mxu0 %v104
    %148 = vmatpush1.msra.mxu0 %v103
    %149 = vmatprep.subr.mxu0 %v106
    %150 = vmatpush1.msra.mxu0 %v105
    %151 = vmatprep.subr.mxu0 %v108
    %152 = vmatpush1.msra.mxu0 %v107
    %153 = vmatprep.subr.mxu0 %v110
    %154 = vmatpush1.msra.mxu0 %v109
    %155 = vmatprep.subr.mxu0 %v112
    %156 = vmatpush1.msra.mxu0 %v111
    %157 = vmatprep.subr.mxu0 %v114
    %158 = vmatpush1.msra.mxu0 %v113
    %159 = vmatprep.subr.mxu0 %v116
    %160 = vmatpush1.msra.mxu0 %v115
    %161 = vmatprep.subr.mxu0 %v118
    %162 = vmatpush1.msra.mxu0 %v117
    %163 = vmatprep.subr.mxu0 %v120
    %164 = vmatpush1.msra.mxu0 %v119
    %165 = vmatprep.subr.mxu0 %v122
    %166 = vmatpush1.msra.mxu0 %v121
    %167 = vmatprep.subr.mxu0 %v124
    %168 = vmatpush1.msra.mxu0 %v123
    %169 = vmatprep.subr.mxu0 %v126
    %170 = vmatpush1.msra.mxu0 %v125
    %171 = vmatprep.subr.mxu0 %v128
    %172 = vmatpush1.msra.mxu0 %v127
    %173 = vmatprep.subr.mxu0 0.0
    %174 = vmatpush1.msra.mxu0 0.0
    %175 = vmatprep.subr.mxu0 0.0
    %176 = vmatpush1.msra.mxu0 0.0
    %177 = vmatprep.subr.mxu0 0.0
    %178 = vmatpush1.msra.mxu0 0.0
    %179 = vmatprep.subr.mxu0 0.0
    %180 = vmatpush1.msra.mxu0 0.0
    %181 = vmatprep.subr.mxu0 0.0
    %182 = vmatpush1.msra.mxu0 0.0
    %183 = vmatprep.subr.mxu0 0.0
    %184 = vmatpush1.msra.mxu0 0.0
    %185 = vmatprep.subr.mxu0 0.0
    %186 = vmatpush1.msra.mxu0 0.0
    %187 = vmatprep.subr.mxu0 0.0
    %188 = vmatpush1.msra.mxu0 0.0
    %189 = vmatprep.subr.mxu0 0.0
    %190 = vmatpush1.msra.mxu0 0.0
    %191 = vmatprep.subr.mxu0 0.0
    %192 = vmatpush1.msra.mxu0 0.0
    %193 = vmatprep.subr.mxu0 0.0
    %194 = vmatpush1.msra.mxu0 0.0
    %195 = vmatprep.subr.mxu0 0.0
    %196 = vmatpush1.msra.mxu0 0.0
    %197 = vmatprep.subr.mxu0 0.0
    %198 = vmatpush1.msra.mxu0 0.0
    %199 = vmatprep.subr.mxu0 0.0
    %200 = vmatpush1.msra.mxu0 0.0
    %201 = vmatprep.subr.mxu0 0.0
    %202 = vmatpush1.msra.mxu0 0.0
    %203 = vmatprep.subr.mxu0 0.0
    %204 = vmatpush1.msra.mxu0 0.0
    %205 = vmatprep.mubr.f32.mxu0 0.0
    %206 = vmatmul.mubr.f32.gmra.mrb[0].mxu0 %v81
    %v207 = vpop.f32.mrb[0].mxu0
    %v208 = vadd.f32 %v134, %v207
    %v209 = vpop.f32.mrb[0].mxu0
    %v210 = vadd.f32 %v138, %v209
    %211 = vmatprep.mubr.f32.mxu0 0.0
    %212 = vmatmul.mubr.f32.gmra.mrb[0].mxu0 %v82
    %v213 = vpop.f32.mrb[0].mxu0
    %v214 = vadd.f32 %v134, %v213
    %v215 = vpop.f32.mrb[0].mxu0
    %v216 = vadd.f32 %v138, %v215
    %217 = vmatprep.mubr.f32.mxu0 0.0
    %218 = vmatmul.mubr.f32.gmra.mrb[0].mxu0 %v83
    %v219 = vpop.f32.mrb[0].mxu0
    %v220 = vadd.f32 %v134, %v219
    %v221 = vpop.f32.mrb[0].mxu0
    %v222 = vadd.f32 %v138, %v221
    %223 = vmatprep.mubr.f32.mxu0 0.0
    %224 = vmatmul.mubr.f32.gmra.mrb[0].mxu0 %v84
    %v225 = vpop.f32.mrb[0].mxu0
    %v226 = vadd.f32 %v134, %v225
    %v227 = vpop.f32.mrb[0].mxu0
    %v228 = vadd.f32 %v138, %v227
    %229 = vmatprep.mubr.f32.mxu0 0.0
    %230 = vmatmul.mubr.f32.gmra.mrb[0].mxu0 %v85
    %v231 = vpop.f32.mrb[0].mxu0
    %v232 = vadd.f32 %v134, %v231
    %v233 = vpop.f32.mrb[0].mxu0
    %v234 = vadd.f32 %v138, %v233
    %235 = vmatprep.mubr.f32.mxu0 0.0
    %236 = vmatmul.mubr.f32.gmra.mrb[0].mxu0 %v86
    %v237 = vpop.f32.mrb[0].mxu0
    %v238 = vadd.f32 %v134, %v237
    %v239 = vpop.f32.mrb[0].mxu0
    %v240 = vadd.f32 %v138, %v239
    %241 = vmatprep.mubr.f32.mxu0 0.0
    %242 = vmatmul.mubr.f32.gmra.mrb[0].mxu0 %v87
    %v243 = vpop.f32.mrb[0].mxu0
    %v244 = vadd.f32 %v134, %v243
    %v245 = vpop.f32.mrb[0].mxu0
    %v246 = vadd.f32 %v138, %v245
    %247 = vmatprep.mubr.f32.mxu0 0.0
    %248 = vmatmul.mubr.f32.gmra.mrb[0].mxu0 %v88
    %v249 = vpop.f32.mrb[0].mxu0
    %v250 = vadd.f32 %v134, %v249
    %v251 = vpop.f32.mrb[0].mxu0
    %v252 = vadd.f32 %v138, %v251
    %253 = vmatprep.mubr.f32.mxu0 0.0
    %254 = vmatmul.mubr.f32.gmra.mrb[0].mxu0 %v89
    %v255 = vpop.f32.mrb[0].mxu0
    %v256 = vadd.f32 %v134, %v255
    %v257 = vpop.f32.mrb[0].mxu0
    %v258 = vadd.f32 %v138, %v257
    %259 = vmatprep.mubr.f32.mxu0 0.0
    %260 = vmatmul.mubr.f32.gmra.mrb[0].mxu0 %v90
    %v261 = vpop.f32.mrb[0].mxu0
    %v262 = vadd.f32 %v134, %v261
    %v263 = vpop.f32.mrb[0].mxu0
    %v264 = vadd.f32 %v138, %v263
    %265 = vmatprep.mubr.f32.mxu0 0.0
    %266 = vmatmul.mubr.f32.gmra.mrb[0].mxu0 %v91
    %v267 = vpop.f32.mrb[0].mxu0
    %v268 = vadd.f32 %v134, %v267
    %v269 = vpop.f32.mrb[0].mxu0
    %v270 = vadd.f32 %v138, %v269
    %271 = vmatprep.mubr.f32.mxu0 0.0
    %272 = vmatmul.mubr.f32.gmra.mrb[0].mxu0 %v92
    %v273 = vpop.f32.mrb[0].mxu0
    %v274 = vadd.f32 %v134, %v273
    %v275 = vpop.f32.mrb[0].mxu0
    %v276 = vadd.f32 %v138, %v275
    %277 = vmatprep.mubr.f32.mxu0 0.0
    %278 = vmatmul.mubr.f32.gmra.mrb[0].mxu0 %v93
    %v279 = vpop.f32.mrb[0].mxu0
    %v280 = vadd.f32 %v134, %v279
    %v281 = vpop.f32.mrb[0].mxu0
    %v282 = vadd.f32 %v138, %v281
    %283 = vmatprep.mubr.f32.mxu0 0.0
    %284 = vmatmul.mubr.f32.gmra.mrb[0].mxu0 %v94
    %v285 = vpop.f32.mrb[0].mxu0
    %v286 = vadd.f32 %v134, %v285
    %v287 = vpop.f32.mrb[0].mxu0
    %v288 = vadd.f32 %v138, %v287
    %289 = vmatprep.mubr.f32.mxu0 0.0
    %290 = vmatmul.mubr.f32.gmra.mrb[0].mxu0 %v95
    %v291 = vpop.f32.mrb[0].mxu0
    %v292 = vadd.f32 %v134, %v291
    %v293 = vpop.f32.mrb[0].mxu0
    %v294 = vadd.f32 %v138, %v293
    %295 = vmatprep.mubr.f32.mxu0 0.0
    %296 = vmatmul.mubr.f32.gmra.mrb[0].mxu0 %v96
    %v297 = vpop.f32.mrb[0].mxu0
    %v298 = vadd.f32 %v134, %v297
    %v299 = vpop.f32.mrb[0].mxu0
    %v300 = vadd.f32 %v138, %v299
    %301 = vdwg.mxu0
    %v302 = vmax.f32 %v208, 0.0
    %v303 = vmax.f32 %v210, 0.0
    %v304 = vmax.f32 %v214, 0.0
    %v305 = vmax.f32 %v216, 0.0
    %v306 = vmax.f32 %v220, 0.0
    %v307 = vmax.f32 %v222, 0.0
    %v308 = vmax.f32 %v226, 0.0
    %v309 = vmax.f32 %v228, 0.0
    %v310 = vmax.f32 %v232, 0.0
    %v311 = vmax.f32 %v234, 0.0
    %v312 = vmax.f32 %v238, 0.0
    %v313 = vmax.f32 %v240, 0.0
    %v314 = vmax.f32 %v244, 0.0
    %v315 = vmax.f32 %v246, 0.0
    %v316 = vmax.f32 %v250, 0.0
    %v317 = vmax.f32 %v252, 0.0
    %v318 = vmax.f32 %v256, 0.0
    %v319 = vmax.f32 %v258, 0.0
    %v320 = vmax.f32 %v262, 0.0
    %v321 = vmax.f32 %v264, 0.0
    %v322 = vmax.f32 %v268, 0.0
    %v323 = vmax.f32 %v270, 0.0
    %v324 = vmax.f32 %v274, 0.0
    %v325 = vmax.f32 %v276, 0.0
    %v326 = vmax.f32 %v280, 0.0
    %v327 = vmax.f32 %v282, 0.0
    %v328 = vmax.f32 %v286, 0.0
    %v329 = vmax.f32 %v288, 0.0
    %v330 = vmax.f32 %v292, 0.0
    %v331 = vmax.f32 %v294, 0.0
    %v332 = vmax.f32 %v298, 0.0
    %v333 = vmax.f32 %v300, 0.0
    %v334 = vld [vmem:[#allocation8] sm:$0xff]
    %v335 = vld [vmem:[#allocation8 + $0x8] sm:$0xff]
    %v336 = vld [vmem:[#allocation8 + $0x10] sm:$0xff]
    %v337 = vld [vmem:[#allocation8 + $0x18] sm:$0xff]
    %v338 = vld [vmem:[#allocation8 + $0x20] sm:$0xff]
    %v339 = vld [vmem:[#allocation8 + $0x28] sm:$0xff]
    %v340 = vld [vmem:[#allocation8 + $0x30] sm:$0xff]
    %v341 = vld [vmem:[#allocation8 + $0x38] sm:$0xff]
    %v342 = vld [vmem:[#allocation8 + $0x40] sm:$0xff]
    %v343 = vld [vmem:[#allocation8 + $0x48] sm:$0xff]
    %v344 = vld [vmem:[#allocation8 + $0x50] sm:$0xff]
    %v345 = vld [vmem:[#allocation8 + $0x58] sm:$0xff]
    %v346 = vld [vmem:[#allocation8 + $0x60] sm:$0xff]
    %v347 = vld [vmem:[#allocation8 + $0x68] sm:$0xff]
    %v348 = vld [vmem:[#allocation8 + $0x70] sm:$0xff]
    %v349 = vld [vmem:[#allocation8 + $0x78] sm:$0xff]
    %v350 = vld [vmem:[#allocation8 + $0x80] sm:$0xff]
    %v351 = vld [vmem:[#allocation8 + $0x88] sm:$0xff]
    %v352 = vld [vmem:[#allocation8 + $0x90] sm:$0xff]
    %v353 = vld [vmem:[#allocation8 + $0x98] sm:$0xff]
    %v354 = vld [vmem:[#allocation8 + $0xa0] sm:$0xff]
    %v355 = vld [vmem:[#allocation8 + $0xa8] sm:$0xff]
    %v356 = vld [vmem:[#allocation8 + $0xb0] sm:$0xff]
    %v357 = vld [vmem:[#allocation8 + $0xb8] sm:$0xff]
    %v358 = vld [vmem:[#allocation8 + $0xc0] sm:$0xff]
    %v359 = vld [vmem:[#allocation8 + $0xc8] sm:$0xff]
    %v360 = vld [vmem:[#allocation8 + $0xd0] sm:$0xff]
    %v361 = vld [vmem:[#allocation8 + $0xd8] sm:$0xff]
    %v362 = vld [vmem:[#allocation8 + $0xe0] sm:$0xff]
    %v363 = vld [vmem:[#allocation8 + $0xe8] sm:$0xff]
    %v364 = vld [vmem:[#allocation8 + $0xf0] sm:$0xff]
    %v365 = vld [vmem:[#allocation8 + $0xf8] sm:$0xff]
    %v366 = vld [vmem:[#allocation8 + $0x100] sm:$0xff]
    %v367 = vld [vmem:[#allocation8 + $0x108] sm:$0xff]
    %v368 = vld [vmem:[#allocation8 + $0x110] sm:$0xff]
    %v369 = vld [vmem:[#allocation8 + $0x118] sm:$0xff]
    %v370 = vld [vmem:[#allocation8 + $0x120] sm:$0xff]
    %v371 = vld [vmem:[#allocation8 + $0x128] sm:$0xff]
    %v372 = vld [vmem:[#allocation8 + $0x130] sm:$0xff]
    %v373 = vld [vmem:[#allocation8 + $0x138] sm:$0xff]
    %v374 = vld [vmem:[#allocation8 + $0x140] sm:$0xff]
    %v375 = vld [vmem:[#allocation8 + $0x148] sm:$0xff]
    %v376 = vld [vmem:[#allocation8 + $0x150] sm:$0xff]
    %v377 = vld [vmem:[#allocation8 + $0x158] sm:$0xff]
    %v378 = vld [vmem:[#allocation8 + $0x160] sm:$0xff]
    %v379 = vld [vmem:[#allocation8 + $0x168] sm:$0xff]
    %v380 = vld [vmem:[#allocation8 + $0x170] sm:$0xff]
    %v381 = vld [vmem:[#allocation8 + $0x178] sm:$0xff]
    %v382 = vld [vmem:[#allocation8 + $0x180] sm:$0xff]
    %v383 = vld [vmem:[#allocation8 + $0x188] sm:$0xff]
    %v384 = vld [vmem:[#allocation8 + $0x190] sm:$0xff]
    %v385 = vld [vmem:[#allocation8 + $0x198] sm:$0xff]
    %v386 = vld [vmem:[#allocation8 + $0x1a0] sm:$0xff]
    %v387 = vld [vmem:[#allocation8 + $0x1a8] sm:$0xff]
    %v388 = vld [vmem:[#allocation8 + $0x1b0] sm:$0xff]
    %v389 = vld [vmem:[#allocation8 + $0x1b8] sm:$0xff]
    %v390 = vld [vmem:[#allocation8 + $0x1c0] sm:$0xff]
    %v391 = vld [vmem:[#allocation8 + $0x1c8] sm:$0xff]
    %v392 = vld [vmem:[#allocation8 + $0x1d0] sm:$0xff]
    %v393 = vld [vmem:[#allocation8 + $0x1d8] sm:$0xff]
    %v394 = vld [vmem:[#allocation8 + $0x1e0] sm:$0xff]
    %v395 = vld [vmem:[#allocation8 + $0x1e8] sm:$0xff]
    %v396 = vld [vmem:[#allocation8 + $0x1f0] sm:$0xff]
    %v397 = vld [vmem:[#allocation8 + $0x1f8] sm:$0xff]
    %v398 = vld [vmem:[%s4] sm:$0x3]
    %v400 = vlaneseq
    %v401 = vshrl.u32 %v400, 7
    %v402 = vsub.s32 0, %v401
    %v403 = vrot.slane %v398, %v402
    %v404 = vlaneseq
    %v405 = vshrl.u32 %v404, 7
    %v406 = vsub.s32 1, %v405
    %v407 = vrot.slane %v398, %v406
    %410 = vmatprep.subr.mxu0 %v335
    %411 = vmatpush1.msra.mxu0 %v334
    %412 = vmatprep.subr.mxu0 %v337
    %413 = vmatpush1.msra.mxu0 %v336
    %414 = vmatprep.subr.mxu0 %v339
    %415 = vmatpush1.msra.mxu0 %v338
    %416 = vmatprep.subr.mxu0 %v341
    %417 = vmatpush1.msra.mxu0 %v340
    %418 = vmatprep.subr.mxu0 %v343
    %419 = vmatpush1.msra.mxu0 %v342
    %420 = vmatprep.subr.mxu0 %v345
    %421 = vmatpush1.msra.mxu0 %v344
    %422 = vmatprep.subr.mxu0 %v347
    %423 = vmatpush1.msra.mxu0 %v346
    %424 = vmatprep.subr.mxu0 %v349
    %425 = vmatpush1.msra.mxu0 %v348
    %426 = vmatprep.subr.mxu0 %v351
    %427 = vmatpush1.msra.mxu0 %v350
    %428 = vmatprep.subr.mxu0 %v353
    %429 = vmatpush1.msra.mxu0 %v352
    %430 = vmatprep.subr.mxu0 %v355
    %431 = vmatpush1.msra.mxu0 %v354
    %432 = vmatprep.subr.mxu0 %v357
    %433 = vmatpush1.msra.mxu0 %v356
    %434 = vmatprep.subr.mxu0 %v359
    %435 = vmatpush1.msra.mxu0 %v358
    %436 = vmatprep.subr.mxu0 %v361
    %437 = vmatpush1.msra.mxu0 %v360
    %438 = vmatprep.subr.mxu0 %v363
    %439 = vmatpush1.msra.mxu0 %v362
    %440 = vmatprep.subr.mxu0 %v365
    %441 = vmatpush1.msra.mxu0 %v364
    %442 = vmatprep.subr.mxu0 %v367
    %443 = vmatpush1.msra.mxu0 %v366
    %444 = vmatprep.subr.mxu0 %v369
    %445 = vmatpush1.msra.mxu0 %v368
    %446 = vmatprep.subr.mxu0 %v371
    %447 = vmatpush1.msra.mxu0 %v370
    %448 = vmatprep.subr.mxu0 %v373
    %449 = vmatpush1.msra.mxu0 %v372
    %450 = vmatprep.subr.mxu0 %v375
    %451 = vmatpush1.msra.mxu0 %v374
    %452 = vmatprep.subr.mxu0 %v377
    %453 = vmatpush1.msra.mxu0 %v376
    %454 = vmatprep.subr.mxu0 %v379
    %455 = vmatpush1.msra.mxu0 %v378
    %456 = vmatprep.subr.mxu0 %v381
    %457 = vmatpush1.msra.mxu0 %v380
    %458 = vmatprep.subr.mxu0 %v383
    %459 = vmatpush1.msra.mxu0 %v382
    %460 = vmatprep.subr.mxu0 %v385
    %461 = vmatpush1.msra.mxu0 %v384
    %462 = vmatprep.subr.mxu0 %v387
    %463 = vmatpush1.msra.mxu0 %v386
    %464 = vmatprep.subr.mxu0 %v389
    %465 = vmatpush1.msra.mxu0 %v388
    %466 = vmatprep.subr.mxu0 %v391
    %467 = vmatpush1.msra.mxu0 %v390
    %468 = vmatprep.subr.mxu0 %v393
    %469 = vmatpush1.msra.mxu0 %v392
    %470 = vmatprep.subr.mxu0 %v395
    %471 = vmatpush1.msra.mxu0 %v394
    %472 = vmatprep.subr.mxu0 %v397
    %473 = vmatpush1.msra.mxu0 %v396
    %474 = vmatprep.mubr.f32.mxu0 %v303
    %475 = vmatmul.mubr.f32.gmra.mrb[0].mxu0 %v302
    %v476 = vpop.f32.mrb[0].mxu0
    %v477 = vadd.f32 %v403, %v476
    %v478 = vpop.f32.mrb[0].mxu0
    %v479 = vadd.f32 %v407, %v478
    %480 = vmatprep.mubr.f32.mxu0 %v305
    %481 = vmatmul.mubr.f32.gmra.mrb[0].mxu0 %v304
    %v482 = vpop.f32.mrb[0].mxu0
    %v483 = vadd.f32 %v403, %v482
    %v484 = vpop.f32.mrb[0].mxu0
    %v485 = vadd.f32 %v407, %v484
    %486 = vmatprep.mubr.f32.mxu0 %v307
    %487 = vmatmul.mubr.f32.gmra.mrb[0].mxu0 %v306
    %v488 = vpop.f32.mrb[0].mxu0
    %v489 = vadd.f32 %v403, %v488
    %v490 = vpop.f32.mrb[0].mxu0
    %v491 = vadd.f32 %v407, %v490
    %492 = vmatprep.mubr.f32.mxu0 %v309
    %493 = vmatmul.mubr.f32.gmra.mrb[0].mxu0 %v308
    %v494 = vpop.f32.mrb[0].mxu0
    %v495 = vadd.f32 %v403, %v494
    %v496 = vpop.f32.mrb[0].mxu0
    %v497 = vadd.f32 %v407, %v496
    %498 = vmatprep.mubr.f32.mxu0 %v311
    %499 = vmatmul.mubr.f32.gmra.mrb[0].mxu0 %v310
    %v500 = vpop.f32.mrb[0].mxu0
    %v501 = vadd.f32 %v403, %v500
    %v502 = vpop.f32.mrb[0].mxu0
    %v503 = vadd.f32 %v407, %v502
    %504 = vmatprep.mubr.f32.mxu0 %v313
    %505 = vmatmul.mubr.f32.gmra.mrb[0].mxu0 %v312
    %v506 = vpop.f32.mrb[0].mxu0
    %v507 = vadd.f32 %v403, %v506
    %v508 = vpop.f32.mrb[0].mxu0
    %v509 = vadd.f32 %v407, %v508
    %510 = vmatprep.mubr.f32.mxu0 %v315
    %511 = vmatmul.mubr.f32.gmra.mrb[0].mxu0 %v314
    %v512 = vpop.f32.mrb[0].mxu0
    %v513 = vadd.f32 %v403, %v512
    %v514 = vpop.f32.mrb[0].mxu0
    %v515 = vadd.f32 %v407, %v514
    %516 = vmatprep.mubr.f32.mxu0 %v317
    %517 = vmatmul.mubr.f32.gmra.mrb[0].mxu0 %v316
    %v518 = vpop.f32.mrb[0].mxu0
    %v519 = vadd.f32 %v403, %v518
    %v520 = vpop.f32.mrb[0].mxu0
    %v521 = vadd.f32 %v407, %v520
    %522 = vmatprep.mubr.f32.mxu0 %v319
    %523 = vmatmul.mubr.f32.gmra.mrb[0].mxu0 %v318
    %v524 = vpop.f32.mrb[0].mxu0
    %v525 = vadd.f32 %v403, %v524
    %v526 = vpop.f32.mrb[0].mxu0
    %v527 = vadd.f32 %v407, %v526
    %528 = vmatprep.mubr.f32.mxu0 %v321
    %529 = vmatmul.mubr.f32.gmra.mrb[0].mxu0 %v320
    %v530 = vpop.f32.mrb[0].mxu0
    %v531 = vadd.f32 %v403, %v530
    %v532 = vpop.f32.mrb[0].mxu0
    %v533 = vadd.f32 %v407, %v532
    %534 = vmatprep.mubr.f32.mxu0 %v323
    %535 = vmatmul.mubr.f32.gmra.mrb[0].mxu0 %v322
    %v536 = vpop.f32.mrb[0].mxu0
    %v537 = vadd.f32 %v403, %v536
    %v538 = vpop.f32.mrb[0].mxu0
    %v539 = vadd.f32 %v407, %v538
    %540 = vmatprep.mubr.f32.mxu0 %v325
    %541 = vmatmul.mubr.f32.gmra.mrb[0].mxu0 %v324
    %v542 = vpop.f32.mrb[0].mxu0
    %v543 = vadd.f32 %v403, %v542
    %v544 = vpop.f32.mrb[0].mxu0
    %v545 = vadd.f32 %v407, %v544
    %546 = vmatprep.mubr.f32.mxu0 %v327
    %547 = vmatmul.mubr.f32.gmra.mrb[0].mxu0 %v326
    %v548 = vpop.f32.mrb[0].mxu0
    %v549 = vadd.f32 %v403, %v548
    %v550 = vpop.f32.mrb[0].mxu0
    %v551 = vadd.f32 %v407, %v550
    %552 = vmatprep.mubr.f32.mxu0 %v329
    %553 = vmatmul.mubr.f32.gmra.mrb[0].mxu0 %v328
    %v554 = vpop.f32.mrb[0].mxu0
    %v555 = vadd.f32 %v403, %v554
    %v556 = vpop.f32.mrb[0].mxu0
    %v557 = vadd.f32 %v407, %v556
    %558 = vmatprep.mubr.f32.mxu0 %v331
    %559 = vmatmul.mubr.f32.gmra.mrb[0].mxu0 %v330
    %v560 = vpop.f32.mrb[0].mxu0
    %v561 = vadd.f32 %v403, %v560
    %v562 = vpop.f32.mrb[0].mxu0
    %v563 = vadd.f32 %v407, %v562
    %564 = vmatprep.mubr.f32.mxu0 %v333
    %565 = vmatmul.mubr.f32.gmra.mrb[0].mxu0 %v332
    %v566 = vpop.f32.mrb[0].mxu0
    %v567 = vadd.f32 %v403, %v566
    %v568 = vpop.f32.mrb[0].mxu0
    %v569 = vadd.f32 %v407, %v568
    %570 = vdwg.mxu0
    %v571 = vmax.f32 %v477, 0.0
    %v572 = vmax.f32 %v479, 0.0
    %v573 = vmax.f32 %v483, 0.0
    %v574 = vmax.f32 %v485, 0.0
    %v575 = vmax.f32 %v489, 0.0
    %v576 = vmax.f32 %v491, 0.0
    %v577 = vmax.f32 %v495, 0.0
    %v578 = vmax.f32 %v497, 0.0
    %v579 = vmax.f32 %v501, 0.0
    %v580 = vmax.f32 %v503, 0.0
    %v581 = vmax.f32 %v507, 0.0
    %v582 = vmax.f32 %v509, 0.0
    %v583 = vmax.f32 %v513, 0.0
    %v584 = vmax.f32 %v515, 0.0
    %v585 = vmax.f32 %v519, 0.0
    %v586 = vmax.f32 %v521, 0.0
    %v587 = vmax.f32 %v525, 0.0
    %v588 = vmax.f32 %v527, 0.0
    %v589 = vmax.f32 %v531, 0.0
    %v590 = vmax.f32 %v533, 0.0
    %v591 = vmax.f32 %v537, 0.0
    %v592 = vmax.f32 %v539, 0.0
    %v593 = vmax.f32 %v543, 0.0
    %v594 = vmax.f32 %v545, 0.0
    %v595 = vmax.f32 %v549, 0.0
    %v596 = vmax.f32 %v551, 0.0
    %v597 = vmax.f32 %v555, 0.0
    %v598 = vmax.f32 %v557, 0.0
    %v599 = vmax.f32 %v561, 0.0
    %v600 = vmax.f32 %v563, 0.0
    %v601 = vmax.f32 %v567, 0.0
    %v602 = vmax.f32 %v569, 0.0
    %v603 = vld [vmem:[%s5] sm:$0x3]
    %v605 = vlaneseq
    %v606 = vshrl.u32 %v605, 7
    %v607 = vsub.s32 0, %v606
    %v608 = vrot.slane %v603, %v607
    %v609 = vlaneseq
    %v610 = vshrl.u32 %v609, 7
    %v611 = vsub.s32 1, %v610
    %v612 = vrot.slane %v603, %v611
    %v615 = vmul.f32 %v571, %v608
    %v616 = vmul.f32 %v572, %v612
    %v617 = vmul.f32 %v573, %v608
    %v618 = vmul.f32 %v574, %v612
    %v619 = vmul.f32 %v575, %v608
    %v620 = vmul.f32 %v576, %v612
    %v621 = vmul.f32 %v577, %v608
    %v622 = vmul.f32 %v578, %v612
    %v623 = vmul.f32 %v579, %v608
    %v624 = vmul.f32 %v580, %v612
    %v625 = vmul.f32 %v581, %v608
    %v626 = vmul.f32 %v582, %v612
    %v627 = vmul.f32 %v583, %v608
    %v628 = vmul.f32 %v584, %v612
    %v629 = vmul.f32 %v585, %v608
    %v630 = vmul.f32 %v586, %v612
    %v631 = vmul.f32 %v587, %v608
    %v632 = vmul.f32 %v588, %v612
    %v633 = vmul.f32 %v589, %v608
    %v634 = vmul.f32 %v590, %v612
    %v635 = vmul.f32 %v591, %v608
    %v636 = vmul.f32 %v592, %v612
    %v637 = vmul.f32 %v593, %v608
    %v638 = vmul.f32 %v594, %v612
    %v639 = vmul.f32 %v595, %v608
    %v640 = vmul.f32 %v596, %v612
    %v641 = vmul.f32 %v597, %v608
    %v642 = vmul.f32 %v598, %v612
    %v643 = vmul.f32 %v599, %v608
    %v644 = vmul.f32 %v600, %v612
    %v645 = vmul.f32 %v601, %v608
    %v646 = vmul.f32 %v602, %v612
    %647 = vadd.xlane.f32.xlu0 %v615
    %v648 = vpop.xlane.xlu0 %647
    %649 = vadd.xlane.f32.xlu0 %v617
    %v650 = vpop.xlane.xlu0 %649
    %651 = vadd.xlane.f32.xlu0 %v619
    %v652 = vpop.xlane.xlu0 %651
    %653 = vadd.xlane.f32.xlu0 %v621
    %v654 = vpop.xlane.xlu0 %653
    %655 = vadd.xlane.f32.xlu0 %v623
    %v656 = vpop.xlane.xlu0 %655
    %657 = vadd.xlane.f32.xlu0 %v625
    %v658 = vpop.xlane.xlu0 %657
    %659 = vadd.xlane.f32.xlu0 %v627
    %v660 = vpop.xlane.xlu0 %659
    %661 = vadd.xlane.f32.xlu0 %v629
    %v662 = vpop.xlane.xlu0 %661
    %663 = vadd.xlane.f32.xlu0 %v631
    %v664 = vpop.xlane.xlu0 %663
    %665 = vadd.xlane.f32.xlu0 %v633
    %v666 = vpop.xlane.xlu0 %665
    %667 = vadd.xlane.f32.xlu0 %v635
    %v668 = vpop.xlane.xlu0 %667
    %669 = vadd.xlane.f32.xlu0 %v637
    %v670 = vpop.xlane.xlu0 %669
    %671 = vadd.xlane.f32.xlu0 %v639
    %v672 = vpop.xlane.xlu0 %671
    %673 = vadd.xlane.f32.xlu0 %v641
    %v674 = vpop.xlane.xlu0 %673
    %675 = vadd.xlane.f32.xlu0 %v643
    %v676 = vpop.xlane.xlu0 %675
    %677 = vadd.xlane.f32.xlu0 %v645
    %v678 = vpop.xlane.xlu0 %677
    %s679 = sld [smem:[#allocation9]]
    %v680 = vstv %s679
    %v681 = vadd.f32 %v648, %v680
    %v682 = vadd.f32 %v650, %v680
    %v683 = vadd.f32 %v652, %v680
    %v684 = vadd.f32 %v654, %v680
    %v685 = vadd.f32 %v656, %v680
    %v686 = vadd.f32 %v658, %v680
    %v687 = vadd.f32 %v660, %v680
    %v688 = vadd.f32 %v662, %v680
    %v689 = vadd.f32 %v664, %v680
    %v690 = vadd.f32 %v666, %v680
    %v691 = vadd.f32 %v668, %v680
    %v692 = vadd.f32 %v670, %v680
    %v693 = vadd.f32 %v672, %v680
    %v694 = vadd.f32 %v674, %v680
    %v695 = vadd.f32 %v676, %v680
    %v696 = vadd.f32 %v678, %v680
    %v713 = vlaneseq
    %v714 = vand.u32 %v713, 127
    %v715 = vlaneseq
    %v716 = vshrl.u32 %v715, 7
    %v717 = vsub.s32 %v714, %v716
    %v718 = vrot.slane %v681, %v717
    %v719 = vadd.s32 %v714, 4294967288
    %v720 = vlaneseq
    %v721 = vshrl.u32 %v720, 7
    %v722 = vsub.s32 %v719, %v721
    %v723 = vrot.slane %v682, %v722
    %vm724 = vcmask 130112
    %v725 = vsel %vm724, %v723, %v718
    %v726 = vadd.s32 %v714, 4294967280
    %v727 = vlaneseq
    %v728 = vshrl.u32 %v727, 7
    %v729 = vsub.s32 %v726, %v728
    %v730 = vrot.slane %v683, %v729
    %vm731 = vcmask 195712
    %v732 = vsel %vm731, %v730, %v725
    %v733 = vadd.s32 %v714, 4294967272
    %v734 = vlaneseq
    %v735 = vshrl.u32 %v734, 7
    %v736 = vsub.s32 %v733, %v735
    %v737 = vrot.slane %v684, %v736
    %vm738 = vcmask 261312
    %v739 = vsel %vm738, %v737, %v732
    %v740 = vadd.s32 %v714, 4294967264
    %v741 = vlaneseq
    %v742 = vshrl.u32 %v741, 7
    %v743 = vsub.s32 %v740, %v742
    %v744 = vrot.slane %v685, %v743
    %vm745 = vcmask 326912
    %v746 = vsel %vm745, %v744, %v739
    %v747 = vadd.s32 %v714, 4294967256
    %v748 = vlaneseq
    %v749 = vshrl.u32 %v748, 7
    %v750 = vsub.s32 %v747, %v749
    %v751 = vrot.slane %v686, %v750
    %vm752 = vcmask 392512
    %v753 = vsel %vm752, %v751, %v746
    %v754 = vadd.s32 %v714, 4294967248
    %v755 = vlaneseq
    %v756 = vshrl.u32 %v755, 7
    %v757 = vsub.s32 %v754, %v756
    %v758 = vrot.slane %v687, %v757
    %vm759 = vcmask 458112
    %v760 = vsel %vm759, %v758, %v753
    %v761 = vadd.s32 %v714, 4294967240
    %v762 = vlaneseq
    %v763 = vshrl.u32 %v762, 7
    %v764 = vsub.s32 %v761, %v763
    %v765 = vrot.slane %v688, %v764
    %vm766 = vcmask 523712
    %v767 = vsel %vm766, %v765, %v760
    %v768 = vadd.s32 %v714, 4294967232
    %v769 = vlaneseq
    %v770 = vshrl.u32 %v769, 7
    %v771 = vsub.s32 %v768, %v770
    %v772 = vrot.slane %v689, %v771
    %vm773 = vcmask 589312
    %v774 = vsel %vm773, %v772, %v767
    %v775 = vadd.s32 %v714, 4294967224
    %v776 = vlaneseq
    %v777 = vshrl.u32 %v776, 7
    %v778 = vsub.s32 %v775, %v777
    %v779 = vrot.slane %v690, %v778
    %vm780 = vcmask 654912
    %v781 = vsel %vm780, %v779, %v774
    %v782 = vadd.s32 %v714, 4294967216
    %v783 = vlaneseq
    %v784 = vshrl.u32 %v783, 7
    %v785 = vsub.s32 %v782, %v784
    %v786 = vrot.slane %v691, %v785
    %vm787 = vcmask 720512
    %v788 = vsel %vm787, %v786, %v781
    %v789 = vadd.s32 %v714, 4294967208
    %v790 = vlaneseq
    %v791 = vshrl.u32 %v790, 7
    %v792 = vsub.s32 %v789, %v791
    %v793 = vrot.slane %v692, %v792
    %vm794 = vcmask 786112
    %v795 = vsel %vm794, %v793, %v788
    %v796 = vadd.s32 %v714, 4294967200
    %v797 = vlaneseq
    %v798 = vshrl.u32 %v797, 7
    %v799 = vsub.s32 %v796, %v798
    %v800 = vrot.slane %v693, %v799
    %vm801 = vcmask 851712
    %v802 = vsel %vm801, %v800, %v795
    %v803 = vadd.s32 %v714, 4294967192
    %v804 = vlaneseq
    %v805 = vshrl.u32 %v804, 7
    %v806 = vsub.s32 %v803, %v805
    %v807 = vrot.slane %v694, %v806
    %vm808 = vcmask 917312
    %v809 = vsel %vm808, %v807, %v802
    %v810 = vadd.s32 %v714, 4294967184
    %v811 = vlaneseq
    %v812 = vshrl.u32 %v811, 7
    %v813 = vsub.s32 %v810, %v812
    %v814 = vrot.slane %v695, %v813
    %vm815 = vcmask 982912
    %v816 = vsel %vm815, %v814, %v809
    %v817 = vadd.s32 %v714, 4294967176
    %v818 = vlaneseq
    %v819 = vshrl.u32 %v818, 7
    %v820 = vsub.s32 %v817, %v819
    %v821 = vrot.slane %v696, %v820
    %vm822 = vcmask 1048512
    %v823 = vsel %vm822, %v821, %v816
    %825 = vst [vmem:[#allocation10] sm:$0x1] %v823
    %826 = vadd.xlane.f32.xlu0 %v616
    %v827 = vpop.xlane.xlu0 %826
    %828 = vadd.xlane.f32.xlu0 %v618
    %v829 = vpop.xlane.xlu0 %828
    %830 = vadd.xlane.f32.xlu0 %v620
    %v831 = vpop.xlane.xlu0 %830
    %832 = vadd.xlane.f32.xlu0 %v622
    %v833 = vpop.xlane.xlu0 %832
    %834 = vadd.xlane.f32.xlu0 %v624
    %v835 = vpop.xlane.xlu0 %834
    %836 = vadd.xlane.f32.xlu0 %v626
    %v837 = vpop.xlane.xlu0 %836
    %838 = vadd.xlane.f32.xlu0 %v628
    %v839 = vpop.xlane.xlu0 %838
    %840 = vadd.xlane.f32.xlu0 %v630
    %v841 = vpop.xlane.xlu0 %840
    %842 = vadd.xlane.f32.xlu0 %v632
    %v843 = vpop.xlane.xlu0 %842
    %844 = vadd.xlane.f32.xlu0 %v634
    %v845 = vpop.xlane.xlu0 %844
    %846 = vadd.xlane.f32.xlu0 %v636
    %v847 = vpop.xlane.xlu0 %846
    %848 = vadd.xlane.f32.xlu0 %v638
    %v849 = vpop.xlane.xlu0 %848
    %850 = vadd.xlane.f32.xlu0 %v640
    %v851 = vpop.xlane.xlu0 %850
    %852 = vadd.xlane.f32.xlu0 %v642
    %v853 = vpop.xlane.xlu0 %852
    %854 = vadd.xlane.f32.xlu0 %v644
    %v855 = vpop.xlane.xlu0 %854
    %856 = vadd.xlane.f32.xlu0 %v646
    %v857 = vpop.xlane.xlu0 %856
    %s858 = sld [smem:[#allocation9 + $0x1]]
    %v859 = vstv %s858
    %v860 = vadd.f32 %v827, %v859
    %v861 = vadd.f32 %v829, %v859
    %v862 = vadd.f32 %v831, %v859
    %v863 = vadd.f32 %v833, %v859
    %v864 = vadd.f32 %v835, %v859
    %v865 = vadd.f32 %v837, %v859
    %v866 = vadd.f32 %v839, %v859
    %v867 = vadd.f32 %v841, %v859
    %v868 = vadd.f32 %v843, %v859
    %v869 = vadd.f32 %v845, %v859
    %v870 = vadd.f32 %v847, %v859
    %v871 = vadd.f32 %v849, %v859
    %v872 = vadd.f32 %v851, %v859
    %v873 = vadd.f32 %v853, %v859
    %v874 = vadd.f32 %v855, %v859
    %v875 = vadd.f32 %v857, %v859
    %v892 = vlaneseq
    %v893 = vshrl.u32 %v892, 7
    %v894 = vsub.s32 %v714, %v893
    %v895 = vrot.slane %v860, %v894
    %v896 = vlaneseq
    %v897 = vshrl.u32 %v896, 7
    %v898 = vsub.s32 %v719, %v897
    %v899 = vrot.slane %v861, %v898
    %v900 = vsel %vm724, %v899, %v895
    %v901 = vlaneseq
    %v902 = vshrl.u32 %v901, 7
    %v903 = vsub.s32 %v726, %v902
    %v904 = vrot.slane %v862, %v903
    %v905 = vsel %vm731, %v904, %v900
    %v906 = vlaneseq
    %v907 = vshrl.u32 %v906, 7
    %v908 = vsub.s32 %v733, %v907
    %v909 = vrot.slane %v863, %v908
    %v910 = vsel %vm738, %v909, %v905
    %v911 = vlaneseq
    %v912 = vshrl.u32 %v911, 7
    %v913 = vsub.s32 %v740, %v912
    %v914 = vrot.slane %v864, %v913
    %v915 = vsel %vm745, %v914, %v910
    %v916 = vlaneseq
    %v917 = vshrl.u32 %v916, 7
    %v918 = vsub.s32 %v747, %v917
    %v919 = vrot.slane %v865, %v918
    %v920 = vsel %vm752, %v919, %v915
    %v921 = vlaneseq
    %v922 = vshrl.u32 %v921, 7
    %v923 = vsub.s32 %v754, %v922
    %v924 = vrot.slane %v866, %v923
    %v925 = vsel %vm759, %v924, %v920
    %v926 = vlaneseq
    %v927 = vshrl.u32 %v926, 7
    %v928 = vsub.s32 %v761, %v927
    %v929 = vrot.slane %v867, %v928
    %v930 = vsel %vm766, %v929, %v925
    %v931 = vlaneseq
    %v932 = vshrl.u32 %v931, 7
    %v933 = vsub.s32 %v768, %v932
    %v934 = vrot.slane %v868, %v933
    %v935 = vsel %vm773, %v934, %v930
    %v936 = vlaneseq
    %v937 = vshrl.u32 %v936, 7
    %v938 = vsub.s32 %v775, %v937
    %v939 = vrot.slane %v869, %v938
    %v940 = vsel %vm780, %v939, %v935
    %v941 = vlaneseq
    %v942 = vshrl.u32 %v941, 7
    %v943 = vsub.s32 %v782, %v942
    %v944 = vrot.slane %v870, %v943
    %v945 = vsel %vm787, %v944, %v940
    %v946 = vlaneseq
    %v947 = vshrl.u32 %v946, 7
    %v948 = vsub.s32 %v789, %v947
    %v949 = vrot.slane %v871, %v948
    %v950 = vsel %vm794, %v949, %v945
    %v951 = vlaneseq
    %v952 = vshrl.u32 %v951, 7
    %v953 = vsub.s32 %v796, %v952
    %v954 = vrot.slane %v872, %v953
    %v955 = vsel %vm801, %v954, %v950
    %v956 = vlaneseq
    %v957 = vshrl.u32 %v956, 7
    %v958 = vsub.s32 %v803, %v957
    %v959 = vrot.slane %v873, %v958
    %v960 = vsel %vm808, %v959, %v955
    %v961 = vlaneseq
    %v962 = vshrl.u32 %v961, 7
    %v963 = vsub.s32 %v810, %v962
    %v964 = vrot.slane %v874, %v963
    %v965 = vsel %vm815, %v964, %v960
    %v966 = vlaneseq
    %v967 = vshrl.u32 %v966, 7
    %v968 = vsub.s32 %v817, %v967
    %v969 = vrot.slane %v875, %v968
    %v970 = vsel %vm822, %v969, %v965
    %s972 = scalar_lea.vmem [#allocation10], 1
    %973 = vst [vmem:[%s972] sm:$0x1] %v970
    %s974 = scalar_lea.vmem [#allocation6], 256
    %v975 = vld [vmem:[%s974] sm:$0xff]
    %v976 = vld [vmem:[%s974 + $0x8] sm:$0xff]
    %v977 = vld [vmem:[%s974 + $0x10] sm:$0xff]
    %v978 = vld [vmem:[%s974 + $0x18] sm:$0xff]
    %v979 = vld [vmem:[%s974 + $0x20] sm:$0xff]
    %v980 = vld [vmem:[%s974 + $0x28] sm:$0xff]
    %v981 = vld [vmem:[%s974 + $0x30] sm:$0xff]
    %v982 = vld [vmem:[%s974 + $0x38] sm:$0xff]
    %v983 = vld [vmem:[%s974 + $0x40] sm:$0xff]
    %v984 = vld [vmem:[%s974 + $0x48] sm:$0xff]
    %v985 = vld [vmem:[%s974 + $0x50] sm:$0xff]
    %v986 = vld [vmem:[%s974 + $0x58] sm:$0xff]
    %v987 = vld [vmem:[%s974 + $0x60] sm:$0xff]
    %v988 = vld [vmem:[%s974 + $0x68] sm:$0xff]
    %v989 = vld [vmem:[%s974 + $0x70] sm:$0xff]
    %v990 = vld [vmem:[%s974 + $0x78] sm:$0xff]
    %v991 = vld [vmem:[%s974 + $0x80] sm:$0xff]
    %v992 = vld [vmem:[%s974 + $0x88] sm:$0xff]
    %v993 = vld [vmem:[%s974 + $0x90] sm:$0xff]
    %v994 = vld [vmem:[%s974 + $0x98] sm:$0xff]
    %v995 = vld [vmem:[%s974 + $0xa0] sm:$0xff]
    %v996 = vld [vmem:[%s974 + $0xa8] sm:$0xff]
    %v997 = vld [vmem:[%s974 + $0xb0] sm:$0xff]
    %v998 = vld [vmem:[%s974 + $0xb8] sm:$0xff]
    %v999 = vld [vmem:[%s974 + $0xc0] sm:$0xff]
    %v1000 = vld [vmem:[%s974 + $0xc8] sm:$0xff]
    %v1001 = vld [vmem:[%s974 + $0xd0] sm:$0xff]
    %v1002 = vld [vmem:[%s974 + $0xd8] sm:$0xff]
    %v1003 = vld [vmem:[%s974 + $0xe0] sm:$0xff]
    %v1004 = vld [vmem:[%s974 + $0xe8] sm:$0xff]
    %v1005 = vld [vmem:[%s974 + $0xf0] sm:$0xff]
    %v1006 = vld [vmem:[%s974 + $0xf8] sm:$0xff]
    %s1007 = scalar_lea.vmem %s2, 2
    %v1008 = vld [vmem:[%s1007] sm:$0x3]
    %v1010 = vlaneseq
    %v1011 = vshrl.u32 %v1010, 7
    %v1012 = vsub.s32 0, %v1011
    %v1013 = vrot.slane %v1008, %v1012
    %v1014 = vlaneseq
    %v1015 = vshrl.u32 %v1014, 7
    %v1016 = vsub.s32 1, %v1015
    %v1017 = vrot.slane %v1008, %v1016
    %1020 = vmatprep.subr.mxu0 %v976
    %1021 = vmatpush1.msra.mxu0 %v975
    %1022 = vmatprep.subr.mxu0 %v978
    %1023 = vmatpush1.msra.mxu0 %v977
    %1024 = vmatprep.subr.mxu0 %v980
    %1025 = vmatpush1.msra.mxu0 %v979
    %1026 = vmatprep.subr.mxu0 %v982
    %1027 = vmatpush1.msra.mxu0 %v981
    %1028 = vmatprep.subr.mxu0 %v984
    %1029 = vmatpush1.msra.mxu0 %v983
    %1030 = vmatprep.subr.mxu0 %v986
    %1031 = vmatpush1.msra.mxu0 %v985
    %1032 = vmatprep.subr.mxu0 %v988
    %1033 = vmatpush1.msra.mxu0 %v987
    %1034 = vmatprep.subr.mxu0 %v990
    %1035 = vmatpush1.msra.mxu0 %v989
    %1036 = vmatprep.subr.mxu0 %v992
    %1037 = vmatpush1.msra.mxu0 %v991
    %1038 = vmatprep.subr.mxu0 %v994
    %1039 = vmatpush1.msra.mxu0 %v993
    %1040 = vmatprep.subr.mxu0 %v996
    %1041 = vmatpush1.msra.mxu0 %v995
    %1042 = vmatprep.subr.mxu0 %v998
    %1043 = vmatpush1.msra.mxu0 %v997
    %1044 = vmatprep.subr.mxu0 %v1000
    %1045 = vmatpush1.msra.mxu0 %v999
    %1046 = vmatprep.subr.mxu0 %v1002
    %1047 = vmatpush1.msra.mxu0 %v1001
    %1048 = vmatprep.subr.mxu0 %v1004
    %1049 = vmatpush1.msra.mxu0 %v1003
    %1050 = vmatprep.subr.mxu0 %v1006
    %1051 = vmatpush1.msra.mxu0 %v1005
    %1052 = vmatprep.subr.mxu0 0.0
    %1053 = vmatpush1.msra.mxu0 0.0
    %1054 = vmatprep.subr.mxu0 0.0
    %1055 = vmatpush1.msra.mxu0 0.0
    %1056 = vmatprep.subr.mxu0 0.0
    %1057 = vmatpush1.msra.mxu0 0.0
    %1058 = vmatprep.subr.mxu0 0.0
    %1059 = vmatpush1.msra.mxu0 0.0
    %1060 = vmatprep.subr.mxu0 0.0
    %1061 = vmatpush1.msra.mxu0 0.0
    %1062 = vmatprep.subr.mxu0 0.0
    %1063 = vmatpush1.msra.mxu0 0.0
    %1064 = vmatprep.subr.mxu0 0.0
    %1065 = vmatpush1.msra.mxu0 0.0
    %1066 = vmatprep.subr.mxu0 0.0
    %1067 = vmatpush1.msra.mxu0 0.0
    %1068 = vmatprep.subr.mxu0 0.0
    %1069 = vmatpush1.msra.mxu0 0.0
    %1070 = vmatprep.subr.mxu0 0.0
    %1071 = vmatpush1.msra.mxu0 0.0
    %1072 = vmatprep.subr.mxu0 0.0
    %1073 = vmatpush1.msra.mxu0 0.0
    %1074 = vmatprep.subr.mxu0 0.0
    %1075 = vmatpush1.msra.mxu0 0.0
    %1076 = vmatprep.subr.mxu0 0.0
    %1077 = vmatpush1.msra.mxu0 0.0
    %1078 = vmatprep.subr.mxu0 0.0
    %1079 = vmatpush1.msra.mxu0 0.0
    %1080 = vmatprep.subr.mxu0 0.0
    %1081 = vmatpush1.msra.mxu0 0.0
    %1082 = vmatprep.subr.mxu0 0.0
    %1083 = vmatpush1.msra.mxu0 0.0
    %1084 = vmatprep.mubr.f32.mxu0 0.0
    %1085 = vmatmul.mubr.f32.gmra.mrb[0].mxu0 %v81
    %v1086 = vpop.f32.mrb[0].mxu0
    %v1087 = vadd.f32 %v1013, %v1086
    %v1088 = vpop.f32.mrb[0].mxu0
    %v1089 = vadd.f32 %v1017, %v1088
    %1090 = vmatprep.mubr.f32.mxu0 0.0
    %1091 = vmatmul.mubr.f32.gmra.mrb[0].mxu0 %v82
    %v1092 = vpop.f32.mrb[0].mxu0
    %v1093 = vadd.f32 %v1013, %v1092
    %v1094 = vpop.f32.mrb[0].mxu0
    %v1095 = vadd.f32 %v1017, %v1094
    %1096 = vmatprep.mubr.f32.mxu0 0.0
    %1097 = vmatmul.mubr.f32.gmra.mrb[0].mxu0 %v83
    %v1098 = vpop.f32.mrb[0].mxu0
    %v1099 = vadd.f32 %v1013, %v1098
    %v1100 = vpop.f32.mrb[0].mxu0
    %v1101 = vadd.f32 %v1017, %v1100
    %1102 = vmatprep.mubr.f32.mxu0 0.0
    %1103 = vmatmul.mubr.f32.gmra.mrb[0].mxu0 %v84
    %v1104 = vpop.f32.mrb[0].mxu0
    %v1105 = vadd.f32 %v1013, %v1104
    %v1106 = vpop.f32.mrb[0].mxu0
    %v1107 = vadd.f32 %v1017, %v1106
    %1108 = vmatprep.mubr.f32.mxu0 0.0
    %1109 = vmatmul.mubr.f32.gmra.mrb[0].mxu0 %v85
    %v1110 = vpop.f32.mrb[0].mxu0
    %v1111 = vadd.f32 %v1013, %v1110
    %v1112 = vpop.f32.mrb[0].mxu0
    %v1113 = vadd.f32 %v1017, %v1112
    %1114 = vmatprep.mubr.f32.mxu0 0.0
    %1115 = vmatmul.mubr.f32.gmra.mrb[0].mxu0 %v86
    %v1116 = vpop.f32.mrb[0].mxu0
    %v1117 = vadd.f32 %v1013, %v1116
    %v1118 = vpop.f32.mrb[0].mxu0
    %v1119 = vadd.f32 %v1017, %v1118
    %1120 = vmatprep.mubr.f32.mxu0 0.0
    %1121 = vmatmul.mubr.f32.gmra.mrb[0].mxu0 %v87
    %v1122 = vpop.f32.mrb[0].mxu0
    %v1123 = vadd.f32 %v1013, %v1122
    %v1124 = vpop.f32.mrb[0].mxu0
    %v1125 = vadd.f32 %v1017, %v1124
    %1126 = vmatprep.mubr.f32.mxu0 0.0
    %1127 = vmatmul.mubr.f32.gmra.mrb[0].mxu0 %v88
    %v1128 = vpop.f32.mrb[0].mxu0
    %v1129 = vadd.f32 %v1013, %v1128
    %v1130 = vpop.f32.mrb[0].mxu0
    %v1131 = vadd.f32 %v1017, %v1130
    %1132 = vmatprep.mubr.f32.mxu0 0.0
    %1133 = vmatmul.mubr.f32.gmra.mrb[0].mxu0 %v89
    %v1134 = vpop.f32.mrb[0].mxu0
    %v1135 = vadd.f32 %v1013, %v1134
    %v1136 = vpop.f32.mrb[0].mxu0
    %v1137 = vadd.f32 %v1017, %v1136
    %1138 = vmatprep.mubr.f32.mxu0 0.0
    %1139 = vmatmul.mubr.f32.gmra.mrb[0].mxu0 %v90
    %v1140 = vpop.f32.mrb[0].mxu0
    %v1141 = vadd.f32 %v1013, %v1140
    %v1142 = vpop.f32.mrb[0].mxu0
    %v1143 = vadd.f32 %v1017, %v1142
    %1144 = vmatprep.mubr.f32.mxu0 0.0
    %1145 = vmatmul.mubr.f32.gmra.mrb[0].mxu0 %v91
    %v1146 = vpop.f32.mrb[0].mxu0
    %v1147 = vadd.f32 %v1013, %v1146
    %v1148 = vpop.f32.mrb[0].mxu0
    %v1149 = vadd.f32 %v1017, %v1148
    %1150 = vmatprep.mubr.f32.mxu0 0.0
    %1151 = vmatmul.mubr.f32.gmra.mrb[0].mxu0 %v92
    %v1152 = vpop.f32.mrb[0].mxu0
    %v1153 = vadd.f32 %v1013, %v1152
    %v1154 = vpop.f32.mrb[0].mxu0
    %v1155 = vadd.f32 %v1017, %v1154
    %1156 = vmatprep.mubr.f32.mxu0 0.0
    %1157 = vmatmul.mubr.f32.gmra.mrb[0].mxu0 %v93
    %v1158 = vpop.f32.mrb[0].mxu0
    %v1159 = vadd.f32 %v1013, %v1158
    %v1160 = vpop.f32.mrb[0].mxu0
    %v1161 = vadd.f32 %v1017, %v1160
    %1162 = vmatprep.mubr.f32.mxu0 0.0
    %1163 = vmatmul.mubr.f32.gmra.mrb[0].mxu0 %v94
    %v1164 = vpop.f32.mrb[0].mxu0
    %v1165 = vadd.f32 %v1013, %v1164
    %v1166 = vpop.f32.mrb[0].mxu0
    %v1167 = vadd.f32 %v1017, %v1166
    %1168 = vmatprep.mubr.f32.mxu0 0.0
    %1169 = vmatmul.mubr.f32.gmra.mrb[0].mxu0 %v95
    %v1170 = vpop.f32.mrb[0].mxu0
    %v1171 = vadd.f32 %v1013, %v1170
    %v1172 = vpop.f32.mrb[0].mxu0
    %v1173 = vadd.f32 %v1017, %v1172
    %1174 = vmatprep.mubr.f32.mxu0 0.0
    %1175 = vmatmul.mubr.f32.gmra.mrb[0].mxu0 %v96
    %v1176 = vpop.f32.mrb[0].mxu0
    %v1177 = vadd.f32 %v1013, %v1176
    %v1178 = vpop.f32.mrb[0].mxu0
    %v1179 = vadd.f32 %v1017, %v1178
    %1180 = vdwg.mxu0
    %v1181 = vmax.f32 %v1087, 0.0
    %v1182 = vmax.f32 %v1089, 0.0
    %v1183 = vmax.f32 %v1093, 0.0
    %v1184 = vmax.f32 %v1095, 0.0
    %v1185 = vmax.f32 %v1099, 0.0
    %v1186 = vmax.f32 %v1101, 0.0
    %v1187 = vmax.f32 %v1105, 0.0
    %v1188 = vmax.f32 %v1107, 0.0
    %v1189 = vmax.f32 %v1111, 0.0
    %v1190 = vmax.f32 %v1113, 0.0
    %v1191 = vmax.f32 %v1117, 0.0
    %v1192 = vmax.f32 %v1119, 0.0
    %v1193 = vmax.f32 %v1123, 0.0
    %v1194 = vmax.f32 %v1125, 0.0
    %v1195 = vmax.f32 %v1129, 0.0
    %v1196 = vmax.f32 %v1131, 0.0
    %v1197 = vmax.f32 %v1135, 0.0
    %v1198 = vmax.f32 %v1137, 0.0
    %v1199 = vmax.f32 %v1141, 0.0
    %v1200 = vmax.f32 %v1143, 0.0
    %v1201 = vmax.f32 %v1147, 0.0
    %v1202 = vmax.f32 %v1149, 0.0
    %v1203 = vmax.f32 %v1153, 0.0
    %v1204 = vmax.f32 %v1155, 0.0
    %v1205 = vmax.f32 %v1159, 0.0
    %v1206 = vmax.f32 %v1161, 0.0
    %v1207 = vmax.f32 %v1165, 0.0
    %v1208 = vmax.f32 %v1167, 0.0
    %v1209 = vmax.f32 %v1171, 0.0
    %v1210 = vmax.f32 %v1173, 0.0
    %v1211 = vmax.f32 %v1177, 0.0
    %v1212 = vmax.f32 %v1179, 0.0
    %s1213 = scalar_lea.vmem [#allocation8], 512
    %v1214 = vld [vmem:[%s1213] sm:$0xff]
    %v1215 = vld [vmem:[%s1213 + $0x8] sm:$0xff]
    %v1216 = vld [vmem:[%s1213 + $0x10] sm:$0xff]
    %v1217 = vld [vmem:[%s1213 + $0x18] sm:$0xff]
    %v1218 = vld [vmem:[%s1213 + $0x20] sm:$0xff]
    %v1219 = vld [vmem:[%s1213 + $0x28] sm:$0xff]
    %v1220 = vld [vmem:[%s1213 + $0x30] sm:$0xff]
    %v1221 = vld [vmem:[%s1213 + $0x38] sm:$0xff]
    %v1222 = vld [vmem:[%s1213 + $0x40] sm:$0xff]
    %v1223 = vld [vmem:[%s1213 + $0x48] sm:$0xff]
    %v1224 = vld [vmem:[%s1213 + $0x50] sm:$0xff]
    %v1225 = vld [vmem:[%s1213 + $0x58] sm:$0xff]
    %v1226 = vld [vmem:[%s1213 + $0x60] sm:$0xff]
    %v1227 = vld [vmem:[%s1213 + $0x68] sm:$0xff]
    %v1228 = vld [vmem:[%s1213 + $0x70] sm:$0xff]
    %v1229 = vld [vmem:[%s1213 + $0x78] sm:$0xff]
    %v1230 = vld [vmem:[%s1213 + $0x80] sm:$0xff]
    %v1231 = vld [vmem:[%s1213 + $0x88] sm:$0xff]
    %v1232 = vld [vmem:[%s1213 + $0x90] sm:$0xff]
    %v1233 = vld [vmem:[%s1213 + $0x98] sm:$0xff]
    %v1234 = vld [vmem:[%s1213 + $0xa0] sm:$0xff]
    %v1235 = vld [vmem:[%s1213 + $0xa8] sm:$0xff]
    %v1236 = vld [vmem:[%s1213 + $0xb0] sm:$0xff]
    %v1237 = vld [vmem:[%s1213 + $0xb8] sm:$0xff]
    %v1238 = vld [vmem:[%s1213 + $0xc0] sm:$0xff]
    %v1239 = vld [vmem:[%s1213 + $0xc8] sm:$0xff]
    %v1240 = vld [vmem:[%s1213 + $0xd0] sm:$0xff]
    %v1241 = vld [vmem:[%s1213 + $0xd8] sm:$0xff]
    %v1242 = vld [vmem:[%s1213 + $0xe0] sm:$0xff]
    %v1243 = vld [vmem:[%s1213 + $0xe8] sm:$0xff]
    %v1244 = vld [vmem:[%s1213 + $0xf0] sm:$0xff]
    %v1245 = vld [vmem:[%s1213 + $0xf8] sm:$0xff]
    %v1246 = vld [vmem:[%s1213 + $0x100] sm:$0xff]
    %v1247 = vld [vmem:[%s1213 + $0x108] sm:$0xff]
    %v1248 = vld [vmem:[%s1213 + $0x110] sm:$0xff]
    %v1249 = vld [vmem:[%s1213 + $0x118] sm:$0xff]
    %v1250 = vld [vmem:[%s1213 + $0x120] sm:$0xff]
    %v1251 = vld [vmem:[%s1213 + $0x128] sm:$0xff]
    %v1252 = vld [vmem:[%s1213 + $0x130] sm:$0xff]
    %v1253 = vld [vmem:[%s1213 + $0x138] sm:$0xff]
    %v1254 = vld [vmem:[%s1213 + $0x140] sm:$0xff]
    %v1255 = vld [vmem:[%s1213 + $0x148] sm:$0xff]
    %v1256 = vld [vmem:[%s1213 + $0x150] sm:$0xff]
    %v1257 = vld [vmem:[%s1213 + $0x158] sm:$0xff]
    %v1258 = vld [vmem:[%s1213 + $0x160] sm:$0xff]
    %v1259 = vld [vmem:[%s1213 + $0x168] sm:$0xff]
    %v1260 = vld [vmem:[%s1213 + $0x170] sm:$0xff]
    %v1261 = vld [vmem:[%s1213 + $0x178] sm:$0xff]
    %v1262 = vld [vmem:[%s1213 + $0x180] sm:$0xff]
    %v1263 = vld [vmem:[%s1213 + $0x188] sm:$0xff]
    %v1264 = vld [vmem:[%s1213 + $0x190] sm:$0xff]
    %v1265 = vld [vmem:[%s1213 + $0x198] sm:$0xff]
    %v1266 = vld [vmem:[%s1213 + $0x1a0] sm:$0xff]
    %v1267 = vld [vmem:[%s1213 + $0x1a8] sm:$0xff]
    %v1268 = vld [vmem:[%s1213 + $0x1b0] sm:$0xff]
    %v1269 = vld [vmem:[%s1213 + $0x1b8] sm:$0xff]
    %v1270 = vld [vmem:[%s1213 + $0x1c0] sm:$0xff]
    %v1271 = vld [vmem:[%s1213 + $0x1c8] sm:$0xff]
    %v1272 = vld [vmem:[%s1213 + $0x1d0] sm:$0xff]
    %v1273 = vld [vmem:[%s1213 + $0x1d8] sm:$0xff]
    %v1274 = vld [vmem:[%s1213 + $0x1e0] sm:$0xff]
    %v1275 = vld [vmem:[%s1213 + $0x1e8] sm:$0xff]
    %v1276 = vld [vmem:[%s1213 + $0x1f0] sm:$0xff]
    %v1277 = vld [vmem:[%s1213 + $0x1f8] sm:$0xff]
    %s1278 = scalar_lea.vmem %s4, 2
    %v1279 = vld [vmem:[%s1278] sm:$0x3]
    %v1281 = vlaneseq
    %v1282 = vshrl.u32 %v1281, 7
    %v1283 = vsub.s32 0, %v1282
    %v1284 = vrot.slane %v1279, %v1283
    %v1285 = vlaneseq
    %v1286 = vshrl.u32 %v1285, 7
    %v1287 = vsub.s32 1, %v1286
    %v1288 = vrot.slane %v1279, %v1287
    %1291 = vmatprep.subr.mxu0 %v1215
    %1292 = vmatpush1.msra.mxu0 %v1214
    %1293 = vmatprep.subr.mxu0 %v1217
    %1294 = vmatpush1.msra.mxu0 %v1216
    %1295 = vmatprep.subr.mxu0 %v1219
    %1296 = vmatpush1.msra.mxu0 %v1218
    %1297 = vmatprep.subr.mxu0 %v1221
    %1298 = vmatpush1.msra.mxu0 %v1220
    %1299 = vmatprep.subr.mxu0 %v1223
    %1300 = vmatpush1.msra.mxu0 %v1222
    %1301 = vmatprep.subr.mxu0 %v1225
    %1302 = vmatpush1.msra.mxu0 %v1224
    %1303 = vmatprep.subr.mxu0 %v1227
    %1304 = vmatpush1.msra.mxu0 %v1226
    %1305 = vmatprep.subr.mxu0 %v1229
    %1306 = vmatpush1.msra.mxu0 %v1228
    %1307 = vmatprep.subr.mxu0 %v1231
    %1308 = vmatpush1.msra.mxu0 %v1230
    %1309 = vmatprep.subr.mxu0 %v1233
    %1310 = vmatpush1.msra.mxu0 %v1232
    %1311 = vmatprep.subr.mxu0 %v1235
    %1312 = vmatpush1.msra.mxu0 %v1234
    %1313 = vmatprep.subr.mxu0 %v1237
    %1314 = vmatpush1.msra.mxu0 %v1236
    %1315 = vmatprep.subr.mxu0 %v1239
    %1316 = vmatpush1.msra.mxu0 %v1238
    %1317 = vmatprep.subr.mxu0 %v1241
    %1318 = vmatpush1.msra.mxu0 %v1240
    %1319 = vmatprep.subr.mxu0 %v1243
    %1320 = vmatpush1.msra.mxu0 %v1242
    %1321 = vmatprep.subr.mxu0 %v1245
    %1322 = vmatpush1.msra.mxu0 %v1244
    %1323 = vmatprep.subr.mxu0 %v1247
    %1324 = vmatpush1.msra.mxu0 %v1246
    %1325 = vmatprep.subr.mxu0 %v1249
    %1326 = vmatpush1.msra.mxu0 %v1248
    %1327 = vmatprep.subr.mxu0 %v1251
    %1328 = vmatpush1.msra.mxu0 %v1250
    %1329 = vmatprep.subr.mxu0 %v1253
    %1330 = vmatpush1.msra.mxu0 %v1252
    %1331 = vmatprep.subr.mxu0 %v1255
    %1332 = vmatpush1.msra.mxu0 %v1254
    %1333 = vmatprep.subr.mxu0 %v1257
    %1334 = vmatpush1.msra.mxu0 %v1256
    %1335 = vmatprep.subr.mxu0 %v1259
    %1336 = vmatpush1.msra.mxu0 %v1258
    %1337 = vmatprep.subr.mxu0 %v1261
    %1338 = vmatpush1.msra.mxu0 %v1260
    %1339 = vmatprep.subr.mxu0 %v1263
    %1340 = vmatpush1.msra.mxu0 %v1262
    %1341 = vmatprep.subr.mxu0 %v1265
    %1342 = vmatpush1.msra.mxu0 %v1264
    %1343 = vmatprep.subr.mxu0 %v1267
    %1344 = vmatpush1.msra.mxu0 %v1266
    %1345 = vmatprep.subr.mxu0 %v1269
    %1346 = vmatpush1.msra.mxu0 %v1268
    %1347 = vmatprep.subr.mxu0 %v1271
    %1348 = vmatpush1.msra.mxu0 %v1270
    %1349 = vmatprep.subr.mxu0 %v1273
    %1350 = vmatpush1.msra.mxu0 %v1272
    %1351 = vmatprep.subr.mxu0 %v1275
    %1352 = vmatpush1.msra.mxu0 %v1274
    %1353 = vmatprep.subr.mxu0 %v1277
    %1354 = vmatpush1.msra.mxu0 %v1276
    %1355 = vmatprep.mubr.f32.mxu0 %v1182
    %1356 = vmatmul.mubr.f32.gmra.mrb[0].mxu0 %v1181
    %v1357 = vpop.f32.mrb[0].mxu0
    %v1358 = vadd.f32 %v1284, %v1357
    %v1359 = vpop.f32.mrb[0].mxu0
    %v1360 = vadd.f32 %v1288, %v1359
    %1361 = vmatprep.mubr.f32.mxu0 %v1184
    %1362 = vmatmul.mubr.f32.gmra.mrb[0].mxu0 %v1183
    %v1363 = vpop.f32.mrb[0].mxu0
    %v1364 = vadd.f32 %v1284, %v1363
    %v1365 = vpop.f32.mrb[0].mxu0
    %v1366 = vadd.f32 %v1288, %v1365
    %1367 = vmatprep.mubr.f32.mxu0 %v1186
    %1368 = vmatmul.mubr.f32.gmra.mrb[0].mxu0 %v1185
    %v1369 = vpop.f32.mrb[0].mxu0
    %v1370 = vadd.f32 %v1284, %v1369
    %v1371 = vpop.f32.mrb[0].mxu0
    %v1372 = vadd.f32 %v1288, %v1371
    %1373 = vmatprep.mubr.f32.mxu0 %v1188
    %1374 = vmatmul.mubr.f32.gmra.mrb[0].mxu0 %v1187
    %v1375 = vpop.f32.mrb[0].mxu0
    %v1376 = vadd.f32 %v1284, %v1375
    %v1377 = vpop.f32.mrb[0].mxu0
    %v1378 = vadd.f32 %v1288, %v1377
    %1379 = vmatprep.mubr.f32.mxu0 %v1190
    %1380 = vmatmul.mubr.f32.gmra.mrb[0].mxu0 %v1189
    %v1381 = vpop.f32.mrb[0].mxu0
    %v1382 = vadd.f32 %v1284, %v1381
    %v1383 = vpop.f32.mrb[0].mxu0
    %v1384 = vadd.f32 %v1288, %v1383
    %1385 = vmatprep.mubr.f32.mxu0 %v1192
    %1386 = vmatmul.mubr.f32.gmra.mrb[0].mxu0 %v1191
    %v1387 = vpop.f32.mrb[0].mxu0
    %v1388 = vadd.f32 %v1284, %v1387
    %v1389 = vpop.f32.mrb[0].mxu0
    %v1390 = vadd.f32 %v1288, %v1389
    %1391 = vmatprep.mubr.f32.mxu0 %v1194
    %1392 = vmatmul.mubr.f32.gmra.mrb[0].mxu0 %v1193
    %v1393 = vpop.f32.mrb[0].mxu0
    %v1394 = vadd.f32 %v1284, %v1393
    %v1395 = vpop.f32.mrb[0].mxu0
    %v1396 = vadd.f32 %v1288, %v1395
    %1397 = vmatprep.mubr.f32.mxu0 %v1196
    %1398 = vmatmul.mubr.f32.gmra.mrb[0].mxu0 %v1195
    %v1399 = vpop.f32.mrb[0].mxu0
    %v1400 = vadd.f32 %v1284, %v1399
    %v1401 = vpop.f32.mrb[0].mxu0
    %v1402 = vadd.f32 %v1288, %v1401
    %1403 = vmatprep.mubr.f32.mxu0 %v1198
    %1404 = vmatmul.mubr.f32.gmra.mrb[0].mxu0 %v1197
    %v1405 = vpop.f32.mrb[0].mxu0
    %v1406 = vadd.f32 %v1284, %v1405
    %v1407 = vpop.f32.mrb[0].mxu0
    %v1408 = vadd.f32 %v1288, %v1407
    %1409 = vmatprep.mubr.f32.mxu0 %v1200
    %1410 = vmatmul.mubr.f32.gmra.mrb[0].mxu0 %v1199
    %v1411 = vpop.f32.mrb[0].mxu0
    %v1412 = vadd.f32 %v1284, %v1411
    %v1413 = vpop.f32.mrb[0].mxu0
    %v1414 = vadd.f32 %v1288, %v1413
    %1415 = vmatprep.mubr.f32.mxu0 %v1202
    %1416 = vmatmul.mubr.f32.gmra.mrb[0].mxu0 %v1201
    %v1417 = vpop.f32.mrb[0].mxu0
    %v1418 = vadd.f32 %v1284, %v1417
    %v1419 = vpop.f32.mrb[0].mxu0
    %v1420 = vadd.f32 %v1288, %v1419
    %1421 = vmatprep.mubr.f32.mxu0 %v1204
    %1422 = vmatmul.mubr.f32.gmra.mrb[0].mxu0 %v1203
    %v1423 = vpop.f32.mrb[0].mxu0
    %v1424 = vadd.f32 %v1284, %v1423
    %v1425 = vpop.f32.mrb[0].mxu0
    %v1426 = vadd.f32 %v1288, %v1425
    %1427 = vmatprep.mubr.f32.mxu0 %v1206
    %1428 = vmatmul.mubr.f32.gmra.mrb[0].mxu0 %v1205
    %v1429 = vpop.f32.mrb[0].mxu0
    %v1430 = vadd.f32 %v1284, %v1429
    %v1431 = vpop.f32.mrb[0].mxu0
    %v1432 = vadd.f32 %v1288, %v1431
    %1433 = vmatprep.mubr.f32.mxu0 %v1208
    %1434 = vmatmul.mubr.f32.gmra.mrb[0].mxu0 %v1207
    %v1435 = vpop.f32.mrb[0].mxu0
    %v1436 = vadd.f32 %v1284, %v1435
    %v1437 = vpop.f32.mrb[0].mxu0
    %v1438 = vadd.f32 %v1288, %v1437
    %1439 = vmatprep.mubr.f32.mxu0 %v1210
    %1440 = vmatmul.mubr.f32.gmra.mrb[0].mxu0 %v1209
    %v1441 = vpop.f32.mrb[0].mxu0
    %v1442 = vadd.f32 %v1284, %v1441
    %v1443 = vpop.f32.mrb[0].mxu0
    %v1444 = vadd.f32 %v1288, %v1443
    %1445 = vmatprep.mubr.f32.mxu0 %v1212
    %1446 = vmatmul.mubr.f32.gmra.mrb[0].mxu0 %v1211
    %v1447 = vpop.f32.mrb[0].mxu0
    %v1448 = vadd.f32 %v1284, %v1447
    %v1449 = vpop.f32.mrb[0].mxu0
    %v1450 = vadd.f32 %v1288, %v1449
    %1451 = vdwg.mxu0
    %v1452 = vmax.f32 %v1358, 0.0
    %v1453 = vmax.f32 %v1360, 0.0
    %v1454 = vmax.f32 %v1364, 0.0
    %v1455 = vmax.f32 %v1366, 0.0
    %v1456 = vmax.f32 %v1370, 0.0
    %v1457 = vmax.f32 %v1372, 0.0
    %v1458 = vmax.f32 %v1376, 0.0
    %v1459 = vmax.f32 %v1378, 0.0
    %v1460 = vmax.f32 %v1382, 0.0
    %v1461 = vmax.f32 %v1384, 0.0
    %v1462 = vmax.f32 %v1388, 0.0
    %v1463 = vmax.f32 %v1390, 0.0
    %v1464 = vmax.f32 %v1394, 0.0
    %v1465 = vmax.f32 %v1396, 0.0
    %v1466 = vmax.f32 %v1400, 0.0
    %v1467 = vmax.f32 %v1402, 0.0
    %v1468 = vmax.f32 %v1406, 0.0
    %v1469 = vmax.f32 %v1408, 0.0
    %v1470 = vmax.f32 %v1412, 0.0
    %v1471 = vmax.f32 %v1414, 0.0
    %v1472 = vmax.f32 %v1418, 0.0
    %v1473 = vmax.f32 %v1420, 0.0
    %v1474 = vmax.f32 %v1424, 0.0
    %v1475 = vmax.f32 %v1426, 0.0
    %v1476 = vmax.f32 %v1430, 0.0
    %v1477 = vmax.f32 %v1432, 0.0
    %v1478 = vmax.f32 %v1436, 0.0
    %v1479 = vmax.f32 %v1438, 0.0
    %v1480 = vmax.f32 %v1442, 0.0
    %v1481 = vmax.f32 %v1444, 0.0
    %v1482 = vmax.f32 %v1448, 0.0
    %v1483 = vmax.f32 %v1450, 0.0
    %s1484 = scalar_lea.vmem %s5, 2
    %v1485 = vld [vmem:[%s1484] sm:$0x3]
    %v1487 = vlaneseq
    %v1488 = vshrl.u32 %v1487, 7
    %v1489 = vsub.s32 0, %v1488
    %v1490 = vrot.slane %v1485, %v1489
    %v1491 = vlaneseq
    %v1492 = vshrl.u32 %v1491, 7
    %v1493 = vsub.s32 1, %v1492
    %v1494 = vrot.slane %v1485, %v1493
    %v1497 = vmul.f32 %v1452, %v1490
    %v1498 = vmul.f32 %v1453, %v1494
    %v1499 = vmul.f32 %v1454, %v1490
    %v1500 = vmul.f32 %v1455, %v1494
    %v1501 = vmul.f32 %v1456, %v1490
    %v1502 = vmul.f32 %v1457, %v1494
    %v1503 = vmul.f32 %v1458, %v1490
    %v1504 = vmul.f32 %v1459, %v1494
    %v1505 = vmul.f32 %v1460, %v1490
    %v1506 = vmul.f32 %v1461, %v1494
    %v1507 = vmul.f32 %v1462, %v1490
    %v1508 = vmul.f32 %v1463, %v1494
    %v1509 = vmul.f32 %v1464, %v1490
    %v1510 = vmul.f32 %v1465, %v1494
    %v1511 = vmul.f32 %v1466, %v1490
    %v1512 = vmul.f32 %v1467, %v1494
    %v1513 = vmul.f32 %v1468, %v1490
    %v1514 = vmul.f32 %v1469, %v1494
    %v1515 = vmul.f32 %v1470, %v1490
    %v1516 = vmul.f32 %v1471, %v1494
    %v1517 = vmul.f32 %v1472, %v1490
    %v1518 = vmul.f32 %v1473, %v1494
    %v1519 = vmul.f32 %v1474, %v1490
    %v1520 = vmul.f32 %v1475, %v1494
    %v1521 = vmul.f32 %v1476, %v1490
    %v1522 = vmul.f32 %v1477, %v1494
    %v1523 = vmul.f32 %v1478, %v1490
    %v1524 = vmul.f32 %v1479, %v1494
    %v1525 = vmul.f32 %v1480, %v1490
    %v1526 = vmul.f32 %v1481, %v1494
    %v1527 = vmul.f32 %v1482, %v1490
    %v1528 = vmul.f32 %v1483, %v1494
    %1529 = vadd.xlane.f32.xlu0 %v1497
    %v1530 = vpop.xlane.xlu0 %1529
    %1531 = vadd.xlane.f32.xlu0 %v1499
    %v1532 = vpop.xlane.xlu0 %1531
    %1533 = vadd.xlane.f32.xlu0 %v1501
    %v1534 = vpop.xlane.xlu0 %1533
    %1535 = vadd.xlane.f32.xlu0 %v1503
    %v1536 = vpop.xlane.xlu0 %1535
    %1537 = vadd.xlane.f32.xlu0 %v1505
    %v1538 = vpop.xlane.xlu0 %1537
    %1539 = vadd.xlane.f32.xlu0 %v1507
    %v1540 = vpop.xlane.xlu0 %1539
    %1541 = vadd.xlane.f32.xlu0 %v1509
    %v1542 = vpop.xlane.xlu0 %1541
    %1543 = vadd.xlane.f32.xlu0 %v1511
    %v1544 = vpop.xlane.xlu0 %1543
    %1545 = vadd.xlane.f32.xlu0 %v1513
    %v1546 = vpop.xlane.xlu0 %1545
    %1547 = vadd.xlane.f32.xlu0 %v1515
    %v1548 = vpop.xlane.xlu0 %1547
    %1549 = vadd.xlane.f32.xlu0 %v1517
    %v1550 = vpop.xlane.xlu0 %1549
    %1551 = vadd.xlane.f32.xlu0 %v1519
    %v1552 = vpop.xlane.xlu0 %1551
    %1553 = vadd.xlane.f32.xlu0 %v1521
    %v1554 = vpop.xlane.xlu0 %1553
    %1555 = vadd.xlane.f32.xlu0 %v1523
    %v1556 = vpop.xlane.xlu0 %1555
    %1557 = vadd.xlane.f32.xlu0 %v1525
    %v1558 = vpop.xlane.xlu0 %1557
    %1559 = vadd.xlane.f32.xlu0 %v1527
    %v1560 = vpop.xlane.xlu0 %1559
    %s1561 = sld [smem:[#allocation9 + $0x2]]
    %v1562 = vstv %s1561
    %v1563 = vadd.f32 %v1530, %v1562
    %v1564 = vadd.f32 %v1532, %v1562
    %v1565 = vadd.f32 %v1534, %v1562
    %v1566 = vadd.f32 %v1536, %v1562
    %v1567 = vadd.f32 %v1538, %v1562
    %v1568 = vadd.f32 %v1540, %v1562
    %v1569 = vadd.f32 %v1542, %v1562
    %v1570 = vadd.f32 %v1544, %v1562
    %v1571 = vadd.f32 %v1546, %v1562
    %v1572 = vadd.f32 %v1548, %v1562
    %v1573 = vadd.f32 %v1550, %v1562
    %v1574 = vadd.f32 %v1552, %v1562
    %v1575 = vadd.f32 %v1554, %v1562
    %v1576 = vadd.f32 %v1556, %v1562
    %v1577 = vadd.f32 %v1558, %v1562
    %v1578 = vadd.f32 %v1560, %v1562
    %v1595 = vlaneseq
    %v1596 = vshrl.u32 %v1595, 7
    %v1597 = vsub.s32 %v714, %v1596
    %v1598 = vrot.slane %v1563, %v1597
    %v1599 = vlaneseq
    %v1600 = vshrl.u32 %v1599, 7
    %v1601 = vsub.s32 %v719, %v1600
    %v1602 = vrot.slane %v1564, %v1601
    %v1603 = vsel %vm724, %v1602, %v1598
    %v1604 = vlaneseq
    %v1605 = vshrl.u32 %v1604, 7
    %v1606 = vsub.s32 %v726, %v1605
    %v1607 = vrot.slane %v1565, %v1606
    %v1608 = vsel %vm731, %v1607, %v1603
    %v1609 = vlaneseq
    %v1610 = vshrl.u32 %v1609, 7
    %v1611 = vsub.s32 %v733, %v1610
    %v1612 = vrot.slane %v1566, %v1611
    %v1613 = vsel %vm738, %v1612, %v1608
    %v1614 = vlaneseq
    %v1615 = vshrl.u32 %v1614, 7
    %v1616 = vsub.s32 %v740, %v1615
    %v1617 = vrot.slane %v1567, %v1616
    %v1618 = vsel %vm745, %v1617, %v1613
    %v1619 = vlaneseq
    %v1620 = vshrl.u32 %v1619, 7
    %v1621 = vsub.s32 %v747, %v1620
    %v1622 = vrot.slane %v1568, %v1621
    %v1623 = vsel %vm752, %v1622, %v1618
    %v1624 = vlaneseq
    %v1625 = vshrl.u32 %v1624, 7
    %v1626 = vsub.s32 %v754, %v1625
    %v1627 = vrot.slane %v1569, %v1626
    %v1628 = vsel %vm759, %v1627, %v1623
    %v1629 = vlaneseq
    %v1630 = vshrl.u32 %v1629, 7
    %v1631 = vsub.s32 %v761, %v1630
    %v1632 = vrot.slane %v1570, %v1631
    %v1633 = vsel %vm766, %v1632, %v1628
    %v1634 = vlaneseq
    %v1635 = vshrl.u32 %v1634, 7
    %v1636 = vsub.s32 %v768, %v1635
    %v1637 = vrot.slane %v1571, %v1636
    %v1638 = vsel %vm773, %v1637, %v1633
    %v1639 = vlaneseq
    %v1640 = vshrl.u32 %v1639, 7
    %v1641 = vsub.s32 %v775, %v1640
    %v1642 = vrot.slane %v1572, %v1641
    %v1643 = vsel %vm780, %v1642, %v1638
    %v1644 = vlaneseq
    %v1645 = vshrl.u32 %v1644, 7
    %v1646 = vsub.s32 %v782, %v1645
    %v1647 = vrot.slane %v1573, %v1646
    %v1648 = vsel %vm787, %v1647, %v1643
    %v1649 = vlaneseq
    %v1650 = vshrl.u32 %v1649, 7
    %v1651 = vsub.s32 %v789, %v1650
    %v1652 = vrot.slane %v1574, %v1651
    %v1653 = vsel %vm794, %v1652, %v1648
    %v1654 = vlaneseq
    %v1655 = vshrl.u32 %v1654, 7
    %v1656 = vsub.s32 %v796, %v1655
    %v1657 = vrot.slane %v1575, %v1656
    %v1658 = vsel %vm801, %v1657, %v1653
    %v1659 = vlaneseq
    %v1660 = vshrl.u32 %v1659, 7
    %v1661 = vsub.s32 %v803, %v1660
    %v1662 = vrot.slane %v1576, %v1661
    %v1663 = vsel %vm808, %v1662, %v1658
    %v1664 = vlaneseq
    %v1665 = vshrl.u32 %v1664, 7
    %v1666 = vsub.s32 %v810, %v1665
    %v1667 = vrot.slane %v1577, %v1666
    %v1668 = vsel %vm815, %v1667, %v1663
    %v1669 = vlaneseq
    %v1670 = vshrl.u32 %v1669, 7
    %v1671 = vsub.s32 %v817, %v1670
    %v1672 = vrot.slane %v1578, %v1671
    %v1673 = vsel %vm822, %v1672, %v1668
    %s1675 = scalar_lea.vmem [#allocation10], 2
    %1676 = vst [vmem:[%s1675] sm:$0x1] %v1673
    %1677 = vadd.xlane.f32.xlu0 %v1498
    %v1678 = vpop.xlane.xlu0 %1677
    %1679 = vadd.xlane.f32.xlu0 %v1500
    %v1680 = vpop.xlane.xlu0 %1679
    %1681 = vadd.xlane.f32.xlu0 %v1502
    %v1682 = vpop.xlane.xlu0 %1681
    %1683 = vadd.xlane.f32.xlu0 %v1504
    %v1684 = vpop.xlane.xlu0 %1683
    %1685 = vadd.xlane.f32.xlu0 %v1506
    %v1686 = vpop.xlane.xlu0 %1685
    %1687 = vadd.xlane.f32.xlu0 %v1508
    %v1688 = vpop.xlane.xlu0 %1687
    %1689 = vadd.xlane.f32.xlu0 %v1510
    %v1690 = vpop.xlane.xlu0 %1689
    %1691 = vadd.xlane.f32.xlu0 %v1512
    %v1692 = vpop.xlane.xlu0 %1691
    %1693 = vadd.xlane.f32.xlu0 %v1514
    %v1694 = vpop.xlane.xlu0 %1693
    %1695 = vadd.xlane.f32.xlu0 %v1516
    %v1696 = vpop.xlane.xlu0 %1695
    %1697 = vadd.xlane.f32.xlu0 %v1518
    %v1698 = vpop.xlane.xlu0 %1697
    %1699 = vadd.xlane.f32.xlu0 %v1520
    %v1700 = vpop.xlane.xlu0 %1699
    %1701 = vadd.xlane.f32.xlu0 %v1522
    %v1702 = vpop.xlane.xlu0 %1701
    %1703 = vadd.xlane.f32.xlu0 %v1524
    %v1704 = vpop.xlane.xlu0 %1703
    %1705 = vadd.xlane.f32.xlu0 %v1526
    %v1706 = vpop.xlane.xlu0 %1705
    %1707 = vadd.xlane.f32.xlu0 %v1528
    %v1708 = vpop.xlane.xlu0 %1707
    %s1709 = sld [smem:[#allocation9 + $0x3]]
    %v1710 = vstv %s1709
    %v1711 = vadd.f32 %v1678, %v1710
    %v1712 = vadd.f32 %v1680, %v1710
    %v1713 = vadd.f32 %v1682, %v1710
    %v1714 = vadd.f32 %v1684, %v1710
    %v1715 = vadd.f32 %v1686, %v1710
    %v1716 = vadd.f32 %v1688, %v1710
    %v1717 = vadd.f32 %v1690, %v1710
    %v1718 = vadd.f32 %v1692, %v1710
    %v1719 = vadd.f32 %v1694, %v1710
    %v1720 = vadd.f32 %v1696, %v1710
    %v1721 = vadd.f32 %v1698, %v1710
    %v1722 = vadd.f32 %v1700, %v1710
    %v1723 = vadd.f32 %v1702, %v1710
    %v1724 = vadd.f32 %v1704, %v1710
    %v1725 = vadd.f32 %v1706, %v1710
    %v1726 = vadd.f32 %v1708, %v1710
    %v1743 = vlaneseq
    %v1744 = vshrl.u32 %v1743, 7
    %v1745 = vsub.s32 %v714, %v1744
    %v1746 = vrot.slane %v1711, %v1745
    %v1747 = vlaneseq
    %v1748 = vshrl.u32 %v1747, 7
    %v1749 = vsub.s32 %v719, %v1748
    %v1750 = vrot.slane %v1712, %v1749
    %v1751 = vsel %vm724, %v1750, %v1746
    %v1752 = vlaneseq
    %v1753 = vshrl.u32 %v1752, 7
    %v1754 = vsub.s32 %v726, %v1753
    %v1755 = vrot.slane %v1713, %v1754
    %v1756 = vsel %vm731, %v1755, %v1751
    %v1757 = vlaneseq
    %v1758 = vshrl.u32 %v1757, 7
    %v1759 = vsub.s32 %v733, %v1758
    %v1760 = vrot.slane %v1714, %v1759
    %v1761 = vsel %vm738, %v1760, %v1756
    %v1762 = vlaneseq
    %v1763 = vshrl.u32 %v1762, 7
    %v1764 = vsub.s32 %v740, %v1763
    %v1765 = vrot.slane %v1715, %v1764
    %v1766 = vsel %vm745, %v1765, %v1761
    %v1767 = vlaneseq
    %v1768 = vshrl.u32 %v1767, 7
    %v1769 = vsub.s32 %v747, %v1768
    %v1770 = vrot.slane %v1716, %v1769
    %v1771 = vsel %vm752, %v1770, %v1766
    %v1772 = vlaneseq
    %v1773 = vshrl.u32 %v1772, 7
    %v1774 = vsub.s32 %v754, %v1773
    %v1775 = vrot.slane %v1717, %v1774
    %v1776 = vsel %vm759, %v1775, %v1771
    %v1777 = vlaneseq
    %v1778 = vshrl.u32 %v1777, 7
    %v1779 = vsub.s32 %v761, %v1778
    %v1780 = vrot.slane %v1718, %v1779
    %v1781 = vsel %vm766, %v1780, %v1776
    %v1782 = vlaneseq
    %v1783 = vshrl.u32 %v1782, 7
    %v1784 = vsub.s32 %v768, %v1783
    %v1785 = vrot.slane %v1719, %v1784
    %v1786 = vsel %vm773, %v1785, %v1781
    %v1787 = vlaneseq
    %v1788 = vshrl.u32 %v1787, 7
    %v1789 = vsub.s32 %v775, %v1788
    %v1790 = vrot.slane %v1720, %v1789
    %v1791 = vsel %vm780, %v1790, %v1786
    %v1792 = vlaneseq
    %v1793 = vshrl.u32 %v1792, 7
    %v1794 = vsub.s32 %v782, %v1793
    %v1795 = vrot.slane %v1721, %v1794
    %v1796 = vsel %vm787, %v1795, %v1791
    %v1797 = vlaneseq
    %v1798 = vshrl.u32 %v1797, 7
    %v1799 = vsub.s32 %v789, %v1798
    %v1800 = vrot.slane %v1722, %v1799
    %v1801 = vsel %vm794, %v1800, %v1796
    %v1802 = vlaneseq
    %v1803 = vshrl.u32 %v1802, 7
    %v1804 = vsub.s32 %v796, %v1803
    %v1805 = vrot.slane %v1723, %v1804
    %v1806 = vsel %vm801, %v1805, %v1801
    %v1807 = vlaneseq
    %v1808 = vshrl.u32 %v1807, 7
    %v1809 = vsub.s32 %v803, %v1808
    %v1810 = vrot.slane %v1724, %v1809
    %v1811 = vsel %vm808, %v1810, %v1806
    %v1812 = vlaneseq
    %v1813 = vshrl.u32 %v1812, 7
    %v1814 = vsub.s32 %v810, %v1813
    %v1815 = vrot.slane %v1725, %v1814
    %v1816 = vsel %vm815, %v1815, %v1811
    %v1817 = vlaneseq
    %v1818 = vshrl.u32 %v1817, 7
    %v1819 = vsub.s32 %v817, %v1818
    %v1820 = vrot.slane %v1726, %v1819
    %v1821 = vsel %vm822, %v1820, %v1816
    %s1823 = scalar_lea.vmem [#allocation10], 3
    %1824 = vst [vmem:[%s1823] sm:$0x1] %v1821
    // Predicated region
    $region46: #{tpu_custom_call.1} parent=1 // pred_check
      _
    $region47: #{tpu_custom_call.1} parent=1 // pred_check_branch
      %1826 = sbr.rel (0) target = $region49
    $region48: #{tpu_custom_call.1} parent=1 // pred_region
      %s1828 = ssub.s32 64, 64
      %1829 = vsyncadd [#allocation4], %s1828
      %s1830 = sshll.u32 [#allocation10], 4
      %s1831 = int_to_ptr.vmem [resolvable:$true] %s1830
      %1836 = dma.vmem_to_hbm [thread:$0]  %s1831, 64, %s7, [#allocation4], 16, 16, 1
    $region49: #{tpu_custom_call.1} parent=1 // pred_fallthru
      _
    // Predicated region
    $region50: #{tpu_custom_call.1} parent=1 // pred_check
      _
    $region51: #{tpu_custom_call.1} parent=1 // pred_check_branch
      %1838 = sbr.rel (0) target = $region53
    $region52: #{tpu_custom_call.1} parent=1 // pred_region
      %1839 = dma.done [#allocation4], 64
    $region53: #{tpu_custom_call.1} parent=1 // pred_fallthru
      _
    %1840 = vsyncpa [#allocation3], 1
    %1841 = vsyncpa [#allocation7], 1
    %1842 = vsyncpa [#allocation4], 1
    %1843 = vsyncpa [#allocation5], 1

// kernel: tpu_custom_call.1
$region0: #{tpu_custom_call.1}
  #allocation0 [shape = 'u32[]', space=smem, size = 0x4, offset = 0x4, fixed_abs, tag = 'smem constant byte address 0x4 - core index']
  #allocation1 [shape = 'u32[144,128]{1,0:T(1,128)}', space=vmem, size = 0x12000, scoped, tag = 'internal scratch']
  %s0 = inlined_call_operand.hbm [shape: f32[128,128], index: 0, kind: input, shape index: {}]
  %s1 = inlined_call_operand.hbm [shape: f32[2,128,256], index: 1, kind: input, shape index: {}]
  %s2 = inlined_call_operand.vmem [shape: f32[2,1,256], index: 2, kind: input, shape index: {}]
  %s3 = inlined_call_operand.hbm [shape: f32[2,256,256], index: 3, kind: input, shape index: {}]
  %s4 = inlined_call_operand.vmem [shape: f32[2,1,256], index: 4, kind: input, shape index: {}]
  %s5 = inlined_call_operand.vmem [shape: f32[2,1,256], index: 5, kind: input, shape index: {}]
  %s6 = inlined_call_operand.vmem [shape: f32[4], index: 6, kind: input, shape index: {}]
  %s7 = inlined_call_operand.hbm [shape: f32[4,1,128], index: 7, kind: output, shape index: {}]
  %s8 = sld [smem:[#allocation0]]
  $region54: #{tpu_custom_call.1} parent=0
    _
  %s10 = ssub.s32 1, %s8
  %s11 = scalar_select 0, %s10, %s8
  $region1: #{tpu_custom_call.1} parent=0
    #allocation2 [shape = 'u8[65536]{0}', space=vmem, size = 0x10000, scoped, tag = 'input window, operand 0, single buffered']
    #allocation3 [shape = 's32[1]{0}', space=sflag, size = 0x4, scoped, tag = 'scoped memory for tpu_custom_call.1']
    #allocation4 [shape = 's32[1]{0}', space=sflag, size = 0x4, scoped, tag = 'scoped memory for tpu_custom_call.1']
    #allocation5 [shape = 's32[1]{0}', space=sflag, size = 0x4, scoped, tag = 'scoped memory for tpu_custom_call.1']
    #allocation6 [shape = 'u8[262144]{0}', space=vmem, size = 0x40000, scoped, tag = 'input window, operand 1, single buffered']
    #allocation7 [shape = 's32[1]{0}', space=sflag, size = 0x4, scoped, tag = 'scoped memory for tpu_custom_call.1']
    #allocation8 [shape = 'u8[524288]{0}', space=vmem, size = 0x80000, scoped, tag = 'input window, operand 3, single buffered']
    #allocation9 [shape = 'u8[512]{0}', space=smem, size = 0x200, scoped, tag = 'input window, operand 6, single buffered']
    #allocation10 [shape = 'u8[2048]{0}', space=vmem, size = 0x800, scoped, tag = 'output window, operand 0, single buffered']
    %12 = vsyncpa [#allocation3], 0
    %13 = vsyncpa [#allocation7], 0
    %14 = vsyncpa [#allocation5], 0
    %15 = vsyncpa [#allocation4], 0
    // Predicated region
    $region2: #{tpu_custom_call.1} parent=1 // pred_check
      _
    $region3: #{tpu_custom_call.1} parent=1 // pred_check_branch
      %17 = sbr.rel (0) target = $region5
    $region4: #{tpu_custom_call.1} parent=1 // pred_region
      %s19 = ssub.s32 2048, 2048
      %20 = vsyncadd [#allocation3], %s19
      %s21 = sshll.u32 [#allocation2], 4
      %s22 = int_to_ptr.vmem [resolvable:$true] %s21
      %27 = dma.hbm_to_vmem [thread:$0]  %s0, 2048, %s22, [#allocation3], 128, 128, 8
    $region5: #{tpu_custom_call.1} parent=1 // pred_fallthru
      _
    // Predicated region
    $region6: #{tpu_custom_call.1} parent=1 // pred_check
      _
    $region7: #{tpu_custom_call.1} parent=1 // pred_check_branch
      %29 = sbr.rel (0) target = $region9
    $region8: #{tpu_custom_call.1} parent=1 // pred_region
      %s31 = ssub.s32 8192, 8192
      %32 = vsyncadd [#allocation7], %s31
      %s33 = sshll.u32 [#allocation6], 4
      %s34 = int_to_ptr.vmem [resolvable:$true] %s33
      %39 = dma.hbm_to_vmem [thread:$0]  %s1, 8192, %s34, [#allocation7], 256, 256, 16
    $region9: #{tpu_custom_call.1} parent=1 // pred_fallthru
      _
    // Predicated region
    $region10: #{tpu_custom_call.1} parent=1 // pred_check
      _
    $region11: #{tpu_custom_call.1} parent=1 // pred_check_branch
      %41 = sbr.rel (0) target = $region13
    $region12: #{tpu_custom_call.1} parent=1 // pred_region
      _
    $region13: #{tpu_custom_call.1} parent=1 // pred_fallthru
      _
    // Predicated region
    $region14: #{tpu_custom_call.1} parent=1 // pred_check
      _
    $region15: #{tpu_custom_call.1} parent=1 // pred_check_branch
      %43 = sbr.rel (0) target = $region17
    $region16: #{tpu_custom_call.1} parent=1 // pred_region
      %s45 = ssub.s32 16384, 16384
      %46 = vsyncadd [#allocation7], %s45
      %s47 = sshll.u32 [#allocation8], 4
      %s48 = int_to_ptr.vmem [resolvable:$true] %s47
      %53 = dma.hbm_to_vmem [thread:$0]  %s3, 16384, %s48, [#allocation7], 256, 256, 16
    $region17: #{tpu_custom_call.1} parent=1 // pred_fallthru
      _
    // Predicated region
    $region18: #{tpu_custom_call.1} parent=1 // pred_check
      _
    $region19: #{tpu_custom_call.1} parent=1 // pred_check_branch
      %55 = sbr.rel (0) target = $region21
    $region20: #{tpu_custom_call.1} parent=1 // pred_region
      _
    $region21: #{tpu_custom_call.1} parent=1 // pred_fallthru
      _
    // Predicated region
    $region22: #{tpu_custom_call.1} parent=1 // pred_check
      _
    $region23: #{tpu_custom_call.1} parent=1 // pred_check_branch
      %57 = sbr.rel (0) target = $region25
    $region24: #{tpu_custom_call.1} parent=1 // pred_region
      _
    $region25: #{tpu_custom_call.1} parent=1 // pred_fallthru
      _
    // Predicated region
    $region26: #{tpu_custom_call.1} parent=1 // pred_check
      _
    $region27: #{tpu_custom_call.1} parent=1 // pred_check_branch
      %59 = sbr.rel (0) target = $region29
    $region28: #{tpu_custom_call.1} parent=1 // pred_region
      %s61 = ssub.s32 16, 16
      %62 = vsyncadd [#allocation5], %s61
      %s64 = sshll.u32 %s6, 4
      %s65 = int_to_ptr.vmem [resolvable:$true] %s64
      %67 = dma.vmem_to_smem %s65, 16, [#allocation9], [#allocation5]
    $region29: #{tpu_custom_call.1} parent=1 // pred_fallthru
      _
    // Predicated region
    $region30: #{tpu_custom_call.1} parent=1 // pred_check
      _
    $region31: #{tpu_custom_call.1} parent=1 // pred_check_branch
      %69 = sbr.rel (0) target = $region33
    $region32: #{tpu_custom_call.1} parent=1 // pred_region
      %70 = dma.done [#allocation3], 2048
    $region33: #{tpu_custom_call.1} parent=1 // pred_fallthru
      _
    // Predicated region
    $region34: #{tpu_custom_call.1} parent=1 // pred_check
      _
    $region35: #{tpu_custom_call.1} parent=1 // pred_check_branch
      %72 = sbr.rel (0) target = $region37
    $region36: #{tpu_custom_call.1} parent=1 // pred_region
      %73 = dma.done [#allocation7], 8192
    $region37: #{tpu_custom_call.1} parent=1 // pred_fallthru
      _
    // Predicated region
    $region38: #{tpu_custom_call.1} parent=1 // pred_check
      _
    $region39: #{tpu_custom_call.1} parent=1 // pred_check_branch
      %75 = sbr.rel (0) target = $region41
    $region40: #{tpu_custom_call.1} parent=1 // pred_region
      %76 = dma.done [#allocation7], 16384
    $region41: #{tpu_custom_call.1} parent=1 // pred_fallthru
      _
    // Predicated region
    $region42: #{tpu_custom_call.1} parent=1 // pred_check
      _
    $region43: #{tpu_custom_call.1} parent=1 // pred_check_branch
      %78 = sbr.rel (0) target = $region45
    $region44: #{tpu_custom_call.1} parent=1 // pred_region
      %79 = dma.done [#allocation5], 16
    $region45: #{tpu_custom_call.1} parent=1 // pred_fallthru
      _
    %80 = sfence
    %v81 = vld [vmem:[#allocation2] sm:$0xff]
    %v82 = vld [vmem:[#allocation2 + $0x8] sm:$0xff]
    %v83 = vld [vmem:[#allocation2 + $0x10] sm:$0xff]
    %v84 = vld [vmem:[#allocation2 + $0x18] sm:$0xff]
    %v85 = vld [vmem:[#allocation2 + $0x20] sm:$0xff]
    %v86 = vld [vmem:[#allocation2 + $0x28] sm:$0xff]
    %v87 = vld [vmem:[#allocation2 + $0x30] sm:$0xff]
    %v88 = vld [vmem:[#allocation2 + $0x38] sm:$0xff]
    %v89 = vld [vmem:[#allocation2 + $0x40] sm:$0xff]
    %v90 = vld [vmem:[#allocation2 + $0x48] sm:$0xff]
    %v91 = vld [vmem:[#allocation2 + $0x50] sm:$0xff]
    %v92 = vld [vmem:[#allocation2 + $0x58] sm:$0xff]
    %v93 = vld [vmem:[#allocation2 + $0x60] sm:$0xff]
    %v94 = vld [vmem:[#allocation2 + $0x68] sm:$0xff]
    %v95 = vld [vmem:[#allocation2 + $0x70] sm:$0xff]
    %v96 = vld [vmem:[#allocation2 + $0x78] sm:$0xff]
    %v97 = vld [vmem:[#allocation6] sm:$0xff]
    %v98 = vld [vmem:[#allocation6 + $0x8] sm:$0xff]
    %v99 = vld [vmem:[#allocation6 + $0x10] sm:$0xff]
    %v100 = vld [vmem:[#allocation6 + $0x18] sm:$0xff]
    %v101 = vld [vmem:[#allocation6 + $0x20] sm:$0xff]
    %v102 = vld [vmem:[#allocation6 + $0x28] sm:$0xff]
    %v103 = vld [vmem:[#allocation6 + $0x30] sm:$0xff]
    %v104 = vld [vmem:[#allocation6 + $0x38] sm:$0xff]
    %v105 = vld [vmem:[#allocation6 + $0x40] sm:$0xff]
    %v106 = vld [vmem:[#allocation6 + $0x48] sm:$0xff]
    %v107 = vld [vmem:[#allocation6 + $0x50] sm:$0xff]
    %v108 = vld [vmem:[#allocation6 + $0x58] sm:$0xff]
    %v109 = vld [vmem:[#allocation6 + $0x60] sm:$0xff]
    %v110 = vld [vmem:[#allocation6 + $0x68] sm:$0xff]
    %v111 = vld [vmem:[#allocation6 + $0x70] sm:$0xff]
    %v112 = vld [vmem:[#allocation6 + $0x78] sm:$0xff]
    %v113 = vld [vmem:[#allocation6 + $0x80] sm:$0xff]
    %v114 = vld [vmem:[#allocation6 + $0x88] sm:$0xff]
    %v115 = vld [vmem:[#allocation6 + $0x90] sm:$0xff]
    %v116 = vld [vmem:[#allocation6 + $0x98] sm:$0xff]
    %v117 = vld [vmem:[#allocation6 + $0xa0] sm:$0xff]
    %v118 = vld [vmem:[#allocation6 + $0xa8] sm:$0xff]
    %v119 = vld [vmem:[#allocation6 + $0xb0] sm:$0xff]
    %v120 = vld [vmem:[#allocation6 + $0xb8] sm:$0xff]
    %v121 = vld [vmem:[#allocation6 + $0xc0] sm:$0xff]
    %v122 = vld [vmem:[#allocation6 + $0xc8] sm:$0xff]
    %v123 = vld [vmem:[#allocation6 + $0xd0] sm:$0xff]
    %v124 = vld [vmem:[#allocation6 + $0xd8] sm:$0xff]
    %v125 = vld [vmem:[#allocation6 + $0xe0] sm:$0xff]
    %v126 = vld [vmem:[#allocation6 + $0xe8] sm:$0xff]
    %v127 = vld [vmem:[#allocation6 + $0xf0] sm:$0xff]
    %v128 = vld [vmem:[#allocation6 + $0xf8] sm:$0xff]
    %v129 = vld [vmem:[%s2] sm:$0x3]
    %v131 = vlaneseq
    %v132 = vshrl.u32 %v131, 7
    %v133 = vsub.s32 0, %v132
    %v134 = vrot.slane %v129, %v133
    %v135 = vlaneseq
    %v136 = vshrl.u32 %v135, 7
    %v137 = vsub.s32 1, %v136
    %v138 = vrot.slane %v129, %v137
    %141 = vmatprep.subr.mxu0 %v98
    %142 = vmatpush1.msra.mxu0 %v97
    %143 = vmatprep.subr.mxu0 %v100
    %144 = vmatpush1.msra.mxu0 %v99
    %145 = vmatprep.subr.mxu0 %v102
    %146 = vmatpush1.msra.mxu0 %v101
    %147 = vmatprep.subr.mxu0 %v104
    %148 = vmatpush1.msra.mxu0 %v103
    %149 = vmatprep.subr.mxu0 %v106
    %150 = vmatpush1.msra.mxu0 %v105
    %151 = vmatprep.subr.mxu0 %v108
    %152 = vmatpush1.msra.mxu0 %v107
    %153 = vmatprep.subr.mxu0 %v110
    %154 = vmatpush1.msra.mxu0 %v109
    %155 = vmatprep.subr.mxu0 %v112
    %156 = vmatpush1.msra.mxu0 %v111
    %157 = vmatprep.subr.mxu0 %v114
    %158 = vmatpush1.msra.mxu0 %v113
    %159 = vmatprep.subr.mxu0 %v116
    %160 = vmatpush1.msra.mxu0 %v115
    %161 = vmatprep.subr.mxu0 %v118
    %162 = vmatpush1.msra.mxu0 %v117
    %163 = vmatprep.subr.mxu0 %v120
    %164 = vmatpush1.msra.mxu0 %v119
    %165 = vmatprep.subr.mxu0 %v122
    %166 = vmatpush1.msra.mxu0 %v121
    %167 = vmatprep.subr.mxu0 %v124
    %168 = vmatpush1.msra.mxu0 %v123
    %169 = vmatprep.subr.mxu0 %v126
    %170 = vmatpush1.msra.mxu0 %v125
    %171 = vmatprep.subr.mxu0 %v128
    %172 = vmatpush1.msra.mxu0 %v127
    %173 = vmatprep.subr.mxu0 0.0
    %174 = vmatpush1.msra.mxu0 0.0
    %175 = vmatprep.subr.mxu0 0.0
    %176 = vmatpush1.msra.mxu0 0.0
    %177 = vmatprep.subr.mxu0 0.0
    %178 = vmatpush1.msra.mxu0 0.0
    %179 = vmatprep.subr.mxu0 0.0
    %180 = vmatpush1.msra.mxu0 0.0
    %181 = vmatprep.subr.mxu0 0.0
    %182 = vmatpush1.msra.mxu0 0.0
    %183 = vmatprep.subr.mxu0 0.0
    %184 = vmatpush1.msra.mxu0 0.0
    %185 = vmatprep.subr.mxu0 0.0
    %186 = vmatpush1.msra.mxu0 0.0
    %187 = vmatprep.subr.mxu0 0.0
    %188 = vmatpush1.msra.mxu0 0.0
    %189 = vmatprep.subr.mxu0 0.0
    %190 = vmatpush1.msra.mxu0 0.0
    %191 = vmatprep.subr.mxu0 0.0
    %192 = vmatpush1.msra.mxu0 0.0
    %193 = vmatprep.subr.mxu0 0.0
    %194 = vmatpush1.msra.mxu0 0.0
    %195 = vmatprep.subr.mxu0 0.0
    %196 = vmatpush1.msra.mxu0 0.0
    %197 = vmatprep.subr.mxu0 0.0
    %198 = vmatpush1.msra.mxu0 0.0
    %199 = vmatprep.subr.mxu0 0.0
    %200 = vmatpush1.msra.mxu0 0.0
    %201 = vmatprep.subr.mxu0 0.0
    %202 = vmatpush1.msra.mxu0 0.0
    %203 = vmatprep.subr.mxu0 0.0
    %204 = vmatpush1.msra.mxu0 0.0
    %205 = vmatprep.mubr.f32.mxu0 0.0
    %206 = vmatmul.mubr.f32.gmra.mrb[0].mxu0 %v81
    %v207 = vpop.f32.mrb[0].mxu0
    %v208 = vadd.f32 %v134, %v207
    %v209 = vpop.f32.mrb[0].mxu0
    %v210 = vadd.f32 %v138, %v209
    %211 = vmatprep.mubr.f32.mxu0 0.0
    %212 = vmatmul.mubr.f32.gmra.mrb[0].mxu0 %v82
    %v213 = vpop.f32.mrb[0].mxu0
    %v214 = vadd.f32 %v134, %v213
    %v215 = vpop.f32.mrb[0].mxu0
    %v216 = vadd.f32 %v138, %v215
    %217 = vmatprep.mubr.f32.mxu0 0.0
    %218 = vmatmul.mubr.f32.gmra.mrb[0].mxu0 %v83
    %v219 = vpop.f32.mrb[0].mxu0
    %v220 = vadd.f32 %v134, %v219
    %v221 = vpop.f32.mrb[0].mxu0
    %v222 = vadd.f32 %v138, %v221
    %223 = vmatprep.mubr.f32.mxu0 0.0
    %224 = vmatmul.mubr.f32.gmra.mrb[0].mxu0 %v84
    %v225 = vpop.f32.mrb[0].mxu0
    %v226 = vadd.f32 %v134, %v225
    %v227 = vpop.f32.mrb[0].mxu0
    %v228 = vadd.f32 %v138, %v227
    %229 = vmatprep.mubr.f32.mxu0 0.0
    %230 = vmatmul.mubr.f32.gmra.mrb[0].mxu0 %v85
    %v231 = vpop.f32.mrb[0].mxu0
    %v232 = vadd.f32 %v134, %v231
    %v233 = vpop.f32.mrb[0].mxu0
    %v234 = vadd.f32 %v138, %v233
    %235 = vmatprep.mubr.f32.mxu0 0.0
    %236 = vmatmul.mubr.f32.gmra.mrb[0].mxu0 %v86
    %v237 = vpop.f32.mrb[0].mxu0
    %v238 = vadd.f32 %v134, %v237
    %v239 = vpop.f32.mrb[0].mxu0
    %v240 = vadd.f32 %v138, %v239
    %241 = vmatprep.mubr.f32.mxu0 0.0
    %242 = vmatmul.mubr.f32.gmra.mrb[0].mxu0 %v87
    %v243 = vpop.f32.mrb[0].mxu0
    %v244 = vadd.f32 %v134, %v243
    %v245 = vpop.f32.mrb[0].mxu0
    %v246 = vadd.f32 %v138, %v245
    %247 = vmatprep.mubr.f32.mxu0 0.0
    %248 = vmatmul.mubr.f32.gmra.mrb[0].mxu0 %v88
    %v249 = vpop.f32.mrb[0].mxu0
    %v250 = vadd.f32 %v134, %v249
    %v251 = vpop.f32.mrb[0].mxu0
    %v252 = vadd.f32 %v138, %v251
    %253 = vmatprep.mubr.f32.mxu0 0.0
    %254 = vmatmul.mubr.f32.gmra.mrb[0].mxu0 %v89
    %v255 = vpop.f32.mrb[0].mxu0
    %v256 = vadd.f32 %v134, %v255
    %v257 = vpop.f32.mrb[0].mxu0
    %v258 = vadd.f32 %v138, %v257
    %259 = vmatprep.mubr.f32.mxu0 0.0
    %260 = vmatmul.mubr.f32.gmra.mrb[0].mxu0 %v90
    %v261 = vpop.f32.mrb[0].mxu0
    %v262 = vadd.f32 %v134, %v261
    %v263 = vpop.f32.mrb[0].mxu0
    %v264 = vadd.f32 %v138, %v263
    %265 = vmatprep.mubr.f32.mxu0 0.0
    %266 = vmatmul.mubr.f32.gmra.mrb[0].mxu0 %v91
    %v267 = vpop.f32.mrb[0].mxu0
    %v268 = vadd.f32 %v134, %v267
    %v269 = vpop.f32.mrb[0].mxu0
    %v270 = vadd.f32 %v138, %v269
    %271 = vmatprep.mubr.f32.mxu0 0.0
    %272 = vmatmul.mubr.f32.gmra.mrb[0].mxu0 %v92
    %v273 = vpop.f32.mrb[0].mxu0
    %v274 = vadd.f32 %v134, %v273
    %v275 = vpop.f32.mrb[0].mxu0
    %v276 = vadd.f32 %v138, %v275
    %277 = vmatprep.mubr.f32.mxu0 0.0
    %278 = vmatmul.mubr.f32.gmra.mrb[0].mxu0 %v93
    %v279 = vpop.f32.mrb[0].mxu0
    %v280 = vadd.f32 %v134, %v279
    %v281 = vpop.f32.mrb[0].mxu0
    %v282 = vadd.f32 %v138, %v281
    %283 = vmatprep.mubr.f32.mxu0 0.0
    %284 = vmatmul.mubr.f32.gmra.mrb[0].mxu0 %v94
    %v285 = vpop.f32.mrb[0].mxu0
    %v286 = vadd.f32 %v134, %v285
    %v287 = vpop.f32.mrb[0].mxu0
    %v288 = vadd.f32 %v138, %v287
    %289 = vmatprep.mubr.f32.mxu0 0.0
    %290 = vmatmul.mubr.f32.gmra.mrb[0].mxu0 %v95
    %v291 = vpop.f32.mrb[0].mxu0
    %v292 = vadd.f32 %v134, %v291
    %v293 = vpop.f32.mrb[0].mxu0
    %v294 = vadd.f32 %v138, %v293
    %295 = vmatprep.mubr.f32.mxu0 0.0
    %296 = vmatmul.mubr.f32.gmra.mrb[0].mxu0 %v96
    %v297 = vpop.f32.mrb[0].mxu0
    %v298 = vadd.f32 %v134, %v297
    %v299 = vpop.f32.mrb[0].mxu0
    %v300 = vadd.f32 %v138, %v299
    %301 = vdwg.mxu0
    %v302 = vmax.f32 %v208, 0.0
    %v303 = vmax.f32 %v210, 0.0
    %v304 = vmax.f32 %v214, 0.0
    %v305 = vmax.f32 %v216, 0.0
    %v306 = vmax.f32 %v220, 0.0
    %v307 = vmax.f32 %v222, 0.0
    %v308 = vmax.f32 %v226, 0.0
    %v309 = vmax.f32 %v228, 0.0
    %v310 = vmax.f32 %v232, 0.0
    %v311 = vmax.f32 %v234, 0.0
    %v312 = vmax.f32 %v238, 0.0
    %v313 = vmax.f32 %v240, 0.0
    %v314 = vmax.f32 %v244, 0.0
    %v315 = vmax.f32 %v246, 0.0
    %v316 = vmax.f32 %v250, 0.0
    %v317 = vmax.f32 %v252, 0.0
    %v318 = vmax.f32 %v256, 0.0
    %v319 = vmax.f32 %v258, 0.0
    %v320 = vmax.f32 %v262, 0.0
    %v321 = vmax.f32 %v264, 0.0
    %v322 = vmax.f32 %v268, 0.0
    %v323 = vmax.f32 %v270, 0.0
    %v324 = vmax.f32 %v274, 0.0
    %v325 = vmax.f32 %v276, 0.0
    %v326 = vmax.f32 %v280, 0.0
    %v327 = vmax.f32 %v282, 0.0
    %v328 = vmax.f32 %v286, 0.0
    %v329 = vmax.f32 %v288, 0.0
    %v330 = vmax.f32 %v292, 0.0
    %v331 = vmax.f32 %v294, 0.0
    %v332 = vmax.f32 %v298, 0.0
    %v333 = vmax.f32 %v300, 0.0
    %v334 = vld [vmem:[#allocation8] sm:$0xff]
    %v335 = vld [vmem:[#allocation8 + $0x8] sm:$0xff]
    %v336 = vld [vmem:[#allocation8 + $0x10] sm:$0xff]
    %v337 = vld [vmem:[#allocation8 + $0x18] sm:$0xff]
    %v338 = vld [vmem:[#allocation8 + $0x20] sm:$0xff]
    %v339 = vld [vmem:[#allocation8 + $0x28] sm:$0xff]
    %v340 = vld [vmem:[#allocation8 + $0x30] sm:$0xff]
    %v341 = vld [vmem:[#allocation8 + $0x38] sm:$0xff]
    %v342 = vld [vmem:[#allocation8 + $0x40] sm:$0xff]
    %v343 = vld [vmem:[#allocation8 + $0x48] sm:$0xff]
    %v344 = vld [vmem:[#allocation8 + $0x50] sm:$0xff]
    %v345 = vld [vmem:[#allocation8 + $0x58] sm:$0xff]
    %v346 = vld [vmem:[#allocation8 + $0x60] sm:$0xff]
    %v347 = vld [vmem:[#allocation8 + $0x68] sm:$0xff]
    %v348 = vld [vmem:[#allocation8 + $0x70] sm:$0xff]
    %v349 = vld [vmem:[#allocation8 + $0x78] sm:$0xff]
    %v350 = vld [vmem:[#allocation8 + $0x80] sm:$0xff]
    %v351 = vld [vmem:[#allocation8 + $0x88] sm:$0xff]
    %v352 = vld [vmem:[#allocation8 + $0x90] sm:$0xff]
    %v353 = vld [vmem:[#allocation8 + $0x98] sm:$0xff]
    %v354 = vld [vmem:[#allocation8 + $0xa0] sm:$0xff]
    %v355 = vld [vmem:[#allocation8 + $0xa8] sm:$0xff]
    %v356 = vld [vmem:[#allocation8 + $0xb0] sm:$0xff]
    %v357 = vld [vmem:[#allocation8 + $0xb8] sm:$0xff]
    %v358 = vld [vmem:[#allocation8 + $0xc0] sm:$0xff]
    %v359 = vld [vmem:[#allocation8 + $0xc8] sm:$0xff]
    %v360 = vld [vmem:[#allocation8 + $0xd0] sm:$0xff]
    %v361 = vld [vmem:[#allocation8 + $0xd8] sm:$0xff]
    %v362 = vld [vmem:[#allocation8 + $0xe0] sm:$0xff]
    %v363 = vld [vmem:[#allocation8 + $0xe8] sm:$0xff]
    %v364 = vld [vmem:[#allocation8 + $0xf0] sm:$0xff]
    %v365 = vld [vmem:[#allocation8 + $0xf8] sm:$0xff]
    %v366 = vld [vmem:[#allocation8 + $0x100] sm:$0xff]
    %v367 = vld [vmem:[#allocation8 + $0x108] sm:$0xff]
    %v368 = vld [vmem:[#allocation8 + $0x110] sm:$0xff]
    %v369 = vld [vmem:[#allocation8 + $0x118] sm:$0xff]
    %v370 = vld [vmem:[#allocation8 + $0x120] sm:$0xff]
    %v371 = vld [vmem:[#allocation8 + $0x128] sm:$0xff]
    %v372 = vld [vmem:[#allocation8 + $0x130] sm:$0xff]
    %v373 = vld [vmem:[#allocation8 + $0x138] sm:$0xff]
    %v374 = vld [vmem:[#allocation8 + $0x140] sm:$0xff]
    %v375 = vld [vmem:[#allocation8 + $0x148] sm:$0xff]
    %v376 = vld [vmem:[#allocation8 + $0x150] sm:$0xff]
    %v377 = vld [vmem:[#allocation8 + $0x158] sm:$0xff]
    %v378 = vld [vmem:[#allocation8 + $0x160] sm:$0xff]
    %v379 = vld [vmem:[#allocation8 + $0x168] sm:$0xff]
    %v380 = vld [vmem:[#allocation8 + $0x170] sm:$0xff]
    %v381 = vld [vmem:[#allocation8 + $0x178] sm:$0xff]
    %v382 = vld [vmem:[#allocation8 + $0x180] sm:$0xff]
    %v383 = vld [vmem:[#allocation8 + $0x188] sm:$0xff]
    %v384 = vld [vmem:[#allocation8 + $0x190] sm:$0xff]
    %v385 = vld [vmem:[#allocation8 + $0x198] sm:$0xff]
    %v386 = vld [vmem:[#allocation8 + $0x1a0] sm:$0xff]
    %v387 = vld [vmem:[#allocation8 + $0x1a8] sm:$0xff]
    %v388 = vld [vmem:[#allocation8 + $0x1b0] sm:$0xff]
    %v389 = vld [vmem:[#allocation8 + $0x1b8] sm:$0xff]
    %v390 = vld [vmem:[#allocation8 + $0x1c0] sm:$0xff]
    %v391 = vld [vmem:[#allocation8 + $0x1c8] sm:$0xff]
    %v392 = vld [vmem:[#allocation8 + $0x1d0] sm:$0xff]
    %v393 = vld [vmem:[#allocation8 + $0x1d8] sm:$0xff]
    %v394 = vld [vmem:[#allocation8 + $0x1e0] sm:$0xff]
    %v395 = vld [vmem:[#allocation8 + $0x1e8] sm:$0xff]
    %v396 = vld [vmem:[#allocation8 + $0x1f0] sm:$0xff]
    %v397 = vld [vmem:[#allocation8 + $0x1f8] sm:$0xff]
    %v398 = vld [vmem:[%s4] sm:$0x3]
    %v400 = vlaneseq
    %v401 = vshrl.u32 %v400, 7
    %v402 = vsub.s32 0, %v401
    %v403 = vrot.slane %v398, %v402
    %v404 = vlaneseq
    %v405 = vshrl.u32 %v404, 7
    %v406 = vsub.s32 1, %v405
    %v407 = vrot.slane %v398, %v406
    %410 = vmatprep.subr.mxu0 %v335
    %411 = vmatpush1.msra.mxu0 %v334
    %412 = vmatprep.subr.mxu0 %v337
    %413 = vmatpush1.msra.mxu0 %v336
    %414 = vmatprep.subr.mxu0 %v339
    %415 = vmatpush1.msra.mxu0 %v338
    %416 = vmatprep.subr.mxu0 %v341
    %417 = vmatpush1.msra.mxu0 %v340
    %418 = vmatprep.subr.mxu0 %v343
    %419 = vmatpush1.msra.mxu0 %v342
    %420 = vmatprep.subr.mxu0 %v345
    %421 = vmatpush1.msra.mxu0 %v344
    %422 = vmatprep.subr.mxu0 %v347
    %423 = vmatpush1.msra.mxu0 %v346
    %424 = vmatprep.subr.mxu0 %v349
    %425 = vmatpush1.msra.mxu0 %v348
    %426 = vmatprep.subr.mxu0 %v351
    %427 = vmatpush1.msra.mxu0 %v350
    %428 = vmatprep.subr.mxu0 %v353
    %429 = vmatpush1.msra.mxu0 %v352
    %430 = vmatprep.subr.mxu0 %v355
    %431 = vmatpush1.msra.mxu0 %v354
    %432 = vmatprep.subr.mxu0 %v357
    %433 = vmatpush1.msra.mxu0 %v356
    %434 = vmatprep.subr.mxu0 %v359
    %435 = vmatpush1.msra.mxu0 %v358
    %436 = vmatprep.subr.mxu0 %v361
    %437 = vmatpush1.msra.mxu0 %v360
    %438 = vmatprep.subr.mxu0 %v363
    %439 = vmatpush1.msra.mxu0 %v362
    %440 = vmatprep.subr.mxu0 %v365
    %441 = vmatpush1.msra.mxu0 %v364
    %442 = vmatprep.subr.mxu0 %v367
    %443 = vmatpush1.msra.mxu0 %v366
    %444 = vmatprep.subr.mxu0 %v369
    %445 = vmatpush1.msra.mxu0 %v368
    %446 = vmatprep.subr.mxu0 %v371
    %447 = vmatpush1.msra.mxu0 %v370
    %448 = vmatprep.subr.mxu0 %v373
    %449 = vmatpush1.msra.mxu0 %v372
    %450 = vmatprep.subr.mxu0 %v375
    %451 = vmatpush1.msra.mxu0 %v374
    %452 = vmatprep.subr.mxu0 %v377
    %453 = vmatpush1.msra.mxu0 %v376
    %454 = vmatprep.subr.mxu0 %v379
    %455 = vmatpush1.msra.mxu0 %v378
    %456 = vmatprep.subr.mxu0 %v381
    %457 = vmatpush1.msra.mxu0 %v380
    %458 = vmatprep.subr.mxu0 %v383
    %459 = vmatpush1.msra.mxu0 %v382
    %460 = vmatprep.subr.mxu0 %v385
    %461 = vmatpush1.msra.mxu0 %v384
    %462 = vmatprep.subr.mxu0 %v387
    %463 = vmatpush1.msra.mxu0 %v386
    %464 = vmatprep.subr.mxu0 %v389
    %465 = vmatpush1.msra.mxu0 %v388
    %466 = vmatprep.subr.mxu0 %v391
    %467 = vmatpush1.msra.mxu0 %v390
    %468 = vmatprep.subr.mxu0 %v393
    %469 = vmatpush1.msra.mxu0 %v392
    %470 = vmatprep.subr.mxu0 %v395
    %471 = vmatpush1.msra.mxu0 %v394
    %472 = vmatprep.subr.mxu0 %v397
    %473 = vmatpush1.msra.mxu0 %v396
    %474 = vmatprep.mubr.f32.mxu0 %v303
    %475 = vmatmul.mubr.f32.gmra.mrb[0].mxu0 %v302
    %v476 = vpop.f32.mrb[0].mxu0
    %v477 = vadd.f32 %v403, %v476
    %v478 = vpop.f32.mrb[0].mxu0
    %v479 = vadd.f32 %v407, %v478
    %480 = vmatprep.mubr.f32.mxu0 %v305
    %481 = vmatmul.mubr.f32.gmra.mrb[0].mxu0 %v304
    %v482 = vpop.f32.mrb[0].mxu0
    %v483 = vadd.f32 %v403, %v482
    %v484 = vpop.f32.mrb[0].mxu0
    %v485 = vadd.f32 %v407, %v484
    %486 = vmatprep.mubr.f32.mxu0 %v307
    %487 = vmatmul.mubr.f32.gmra.mrb[0].mxu0 %v306
    %v488 = vpop.f32.mrb[0].mxu0
    %v489 = vadd.f32 %v403, %v488
    %v490 = vpop.f32.mrb[0].mxu0
    %v491 = vadd.f32 %v407, %v490
    %492 = vmatprep.mubr.f32.mxu0 %v309
    %493 = vmatmul.mubr.f32.gmra.mrb[0].mxu0 %v308
    %v494 = vpop.f32.mrb[0].mxu0
    %v495 = vadd.f32 %v403, %v494
    %v496 = vpop.f32.mrb[0].mxu0
    %v497 = vadd.f32 %v407, %v496
    %498 = vmatprep.mubr.f32.mxu0 %v311
    %499 = vmatmul.mubr.f32.gmra.mrb[0].mxu0 %v310
    %v500 = vpop.f32.mrb[0].mxu0
    %v501 = vadd.f32 %v403, %v500
    %v502 = vpop.f32.mrb[0].mxu0
    %v503 = vadd.f32 %v407, %v502
    %504 = vmatprep.mubr.f32.mxu0 %v313
    %505 = vmatmul.mubr.f32.gmra.mrb[0].mxu0 %v312
    %v506 = vpop.f32.mrb[0].mxu0
    %v507 = vadd.f32 %v403, %v506
    %v508 = vpop.f32.mrb[0].mxu0
    %v509 = vadd.f32 %v407, %v508
    %510 = vmatprep.mubr.f32.mxu0 %v315
    %511 = vmatmul.mubr.f32.gmra.mrb[0].mxu0 %v314
    %v512 = vpop.f32.mrb[0].mxu0
    %v513 = vadd.f32 %v403, %v512
    %v514 = vpop.f32.mrb[0].mxu0
    %v515 = vadd.f32 %v407, %v514
    %516 = vmatprep.mubr.f32.mxu0 %v317
    %517 = vmatmul.mubr.f32.gmra.mrb[0].mxu0 %v316
    %v518 = vpop.f32.mrb[0].mxu0
    %v519 = vadd.f32 %v403, %v518
    %v520 = vpop.f32.mrb[0].mxu0
    %v521 = vadd.f32 %v407, %v520
    %522 = vmatprep.mubr.f32.mxu0 %v319
    %523 = vmatmul.mubr.f32.gmra.mrb[0].mxu0 %v318
    %v524 = vpop.f32.mrb[0].mxu0
    %v525 = vadd.f32 %v403, %v524
    %v526 = vpop.f32.mrb[0].mxu0
    %v527 = vadd.f32 %v407, %v526
    %528 = vmatprep.mubr.f32.mxu0 %v321
    %529 = vmatmul.mubr.f32.gmra.mrb[0].mxu0 %v320
    %v530 = vpop.f32.mrb[0].mxu0
    %v531 = vadd.f32 %v403, %v530
    %v532 = vpop.f32.mrb[0].mxu0
    %v533 = vadd.f32 %v407, %v532
    %534 = vmatprep.mubr.f32.mxu0 %v323
    %535 = vmatmul.mubr.f32.gmra.mrb[0].mxu0 %v322
    %v536 = vpop.f32.mrb[0].mxu0
    %v537 = vadd.f32 %v403, %v536
    %v538 = vpop.f32.mrb[0].mxu0
    %v539 = vadd.f32 %v407, %v538
    %540 = vmatprep.mubr.f32.mxu0 %v325
    %541 = vmatmul.mubr.f32.gmra.mrb[0].mxu0 %v324
    %v542 = vpop.f32.mrb[0].mxu0
    %v543 = vadd.f32 %v403, %v542
    %v544 = vpop.f32.mrb[0].mxu0
    %v545 = vadd.f32 %v407, %v544
    %546 = vmatprep.mubr.f32.mxu0 %v327
    %547 = vmatmul.mubr.f32.gmra.mrb[0].mxu0 %v326
    %v548 = vpop.f32.mrb[0].mxu0
    %v549 = vadd.f32 %v403, %v548
    %v550 = vpop.f32.mrb[0].mxu0
    %v551 = vadd.f32 %v407, %v550
    %552 = vmatprep.mubr.f32.mxu0 %v329
    %553 = vmatmul.mubr.f32.gmra.mrb[0].mxu0 %v328
    %v554 = vpop.f32.mrb[0].mxu0
    %v555 = vadd.f32 %v403, %v554
    %v556 = vpop.f32.mrb[0].mxu0
    %v557 = vadd.f32 %v407, %v556
    %558 = vmatprep.mubr.f32.mxu0 %v331
    %559 = vmatmul.mubr.f32.gmra.mrb[0].mxu0 %v330
    %v560 = vpop.f32.mrb[0].mxu0
    %v561 = vadd.f32 %v403, %v560
    %v562 = vpop.f32.mrb[0].mxu0
    %v563 = vadd.f32 %v407, %v562
    %564 = vmatprep.mubr.f32.mxu0 %v333
    %565 = vmatmul.mubr.f32.gmra.mrb[0].mxu0 %v332
    %v566 = vpop.f32.mrb[0].mxu0
    %v567 = vadd.f32 %v403, %v566
    %v568 = vpop.f32.mrb[0].mxu0
    %v569 = vadd.f32 %v407, %v568
    %570 = vdwg.mxu0
    %v571 = vmax.f32 %v477, 0.0
    %v572 = vmax.f32 %v479, 0.0
    %v573 = vmax.f32 %v483, 0.0
    %v574 = vmax.f32 %v485, 0.0
    %v575 = vmax.f32 %v489, 0.0
    %v576 = vmax.f32 %v491, 0.0
    %v577 = vmax.f32 %v495, 0.0
    %v578 = vmax.f32 %v497, 0.0
    %v579 = vmax.f32 %v501, 0.0
    %v580 = vmax.f32 %v503, 0.0
    %v581 = vmax.f32 %v507, 0.0
    %v582 = vmax.f32 %v509, 0.0
    %v583 = vmax.f32 %v513, 0.0
    %v584 = vmax.f32 %v515, 0.0
    %v585 = vmax.f32 %v519, 0.0
    %v586 = vmax.f32 %v521, 0.0
    %v587 = vmax.f32 %v525, 0.0
    %v588 = vmax.f32 %v527, 0.0
    %v589 = vmax.f32 %v531, 0.0
    %v590 = vmax.f32 %v533, 0.0
    %v591 = vmax.f32 %v537, 0.0
    %v592 = vmax.f32 %v539, 0.0
    %v593 = vmax.f32 %v543, 0.0
    %v594 = vmax.f32 %v545, 0.0
    %v595 = vmax.f32 %v549, 0.0
    %v596 = vmax.f32 %v551, 0.0
    %v597 = vmax.f32 %v555, 0.0
    %v598 = vmax.f32 %v557, 0.0
    %v599 = vmax.f32 %v561, 0.0
    %v600 = vmax.f32 %v563, 0.0
    %v601 = vmax.f32 %v567, 0.0
    %v602 = vmax.f32 %v569, 0.0
    %v603 = vld [vmem:[%s5] sm:$0x3]
    %v605 = vlaneseq
    %v606 = vshrl.u32 %v605, 7
    %v607 = vsub.s32 0, %v606
    %v608 = vrot.slane %v603, %v607
    %v609 = vlaneseq
    %v610 = vshrl.u32 %v609, 7
    %v611 = vsub.s32 1, %v610
    %v612 = vrot.slane %v603, %v611
    %v615 = vmul.f32 %v571, %v608
    %v616 = vmul.f32 %v572, %v612
    %v617 = vmul.f32 %v573, %v608
    %v618 = vmul.f32 %v574, %v612
    %v619 = vmul.f32 %v575, %v608
    %v620 = vmul.f32 %v576, %v612
    %v621 = vmul.f32 %v577, %v608
    %v622 = vmul.f32 %v578, %v612
    %v623 = vmul.f32 %v579, %v608
    %v624 = vmul.f32 %v580, %v612
    %v625 = vmul.f32 %v581, %v608
    %v626 = vmul.f32 %v582, %v612
    %v627 = vmul.f32 %v583, %v608
    %v628 = vmul.f32 %v584, %v612
    %v629 = vmul.f32 %v585, %v608
    %v630 = vmul.f32 %v586, %v612
    %v631 = vmul.f32 %v587, %v608
    %v632 = vmul.f32 %v588, %v612
    %v633 = vmul.f32 %v589, %v608
    %v634 = vmul.f32 %v590, %v612
    %v635 = vmul.f32 %v591, %v608
    %v636 = vmul.f32 %v592, %v612
    %v637 = vmul.f32 %v593, %v608
    %v638 = vmul.f32 %v594, %v612
    %v639 = vmul.f32 %v595, %v608
    %v640 = vmul.f32 %v596, %v612
    %v641 = vmul.f32 %v597, %v608
    %v642 = vmul.f32 %v598, %v612
    %v643 = vmul.f32 %v599, %v608
    %v644 = vmul.f32 %v600, %v612
    %v645 = vmul.f32 %v601, %v608
    %v646 = vmul.f32 %v602, %v612
    %647 = vadd.xlane.f32.xlu0 %v615
    %v648 = vpop.xlane.xlu0 %647
    %649 = vadd.xlane.f32.xlu0 %v617
    %v650 = vpop.xlane.xlu0 %649
    %651 = vadd.xlane.f32.xlu0 %v619
    %v652 = vpop.xlane.xlu0 %651
    %653 = vadd.xlane.f32.xlu0 %v621
    %v654 = vpop.xlane.xlu0 %653
    %655 = vadd.xlane.f32.xlu0 %v623
    %v656 = vpop.xlane.xlu0 %655
    %657 = vadd.xlane.f32.xlu0 %v625
    %v658 = vpop.xlane.xlu0 %657
    %659 = vadd.xlane.f32.xlu0 %v627
    %v660 = vpop.xlane.xlu0 %659
    %661 = vadd.xlane.f32.xlu0 %v629
    %v662 = vpop.xlane.xlu0 %661
    %663 = vadd.xlane.f32.xlu0 %v631
    %v664 = vpop.xlane.xlu0 %663
    %665 = vadd.xlane.f32.xlu0 %v633
    %v666 = vpop.xlane.xlu0 %665
    %667 = vadd.xlane.f32.xlu0 %v635
    %v668 = vpop.xlane.xlu0 %667
    %669 = vadd.xlane.f32.xlu0 %v637
    %v670 = vpop.xlane.xlu0 %669
    %671 = vadd.xlane.f32.xlu0 %v639
    %v672 = vpop.xlane.xlu0 %671
    %673 = vadd.xlane.f32.xlu0 %v641
    %v674 = vpop.xlane.xlu0 %673
    %675 = vadd.xlane.f32.xlu0 %v643
    %v676 = vpop.xlane.xlu0 %675
    %677 = vadd.xlane.f32.xlu0 %v645
    %v678 = vpop.xlane.xlu0 %677
    %s679 = sld [smem:[#allocation9]]
    %v680 = vstv %s679
    %v681 = vadd.f32 %v648, %v680
    %v682 = vadd.f32 %v650, %v680
    %v683 = vadd.f32 %v652, %v680
    %v684 = vadd.f32 %v654, %v680
    %v685 = vadd.f32 %v656, %v680
    %v686 = vadd.f32 %v658, %v680
    %v687 = vadd.f32 %v660, %v680
    %v688 = vadd.f32 %v662, %v680
    %v689 = vadd.f32 %v664, %v680
    %v690 = vadd.f32 %v666, %v680
    %v691 = vadd.f32 %v668, %v680
    %v692 = vadd.f32 %v670, %v680
    %v693 = vadd.f32 %v672, %v680
    %v694 = vadd.f32 %v674, %v680
    %v695 = vadd.f32 %v676, %v680
    %v696 = vadd.f32 %v678, %v680
    %v713 = vlaneseq
    %v714 = vand.u32 %v713, 127
    %v715 = vlaneseq
    %v716 = vshrl.u32 %v715, 7
    %v717 = vsub.s32 %v714, %v716
    %v718 = vrot.slane %v681, %v717
    %v719 = vadd.s32 %v714, 4294967288
    %v720 = vlaneseq
    %v721 = vshrl.u32 %v720, 7
    %v722 = vsub.s32 %v719, %v721
    %v723 = vrot.slane %v682, %v722
    %vm724 = vcmask 130112
    %v725 = vsel %vm724, %v723, %v718
    %v726 = vadd.s32 %v714, 4294967280
    %v727 = vlaneseq
    %v728 = vshrl.u32 %v727, 7
    %v729 = vsub.s32 %v726, %v728
    %v730 = vrot.slane %v683, %v729
    %vm731 = vcmask 195712
    %v732 = vsel %vm731, %v730, %v725
    %v733 = vadd.s32 %v714, 4294967272
    %v734 = vlaneseq
    %v735 = vshrl.u32 %v734, 7
    %v736 = vsub.s32 %v733, %v735
    %v737 = vrot.slane %v684, %v736
    %vm738 = vcmask 261312
    %v739 = vsel %vm738, %v737, %v732
    %v740 = vadd.s32 %v714, 4294967264
    %v741 = vlaneseq
    %v742 = vshrl.u32 %v741, 7
    %v743 = vsub.s32 %v740, %v742
    %v744 = vrot.slane %v685, %v743
    %vm745 = vcmask 326912
    %v746 = vsel %vm745, %v744, %v739
    %v747 = vadd.s32 %v714, 4294967256
    %v748 = vlaneseq
    %v749 = vshrl.u32 %v748, 7
    %v750 = vsub.s32 %v747, %v749
    %v751 = vrot.slane %v686, %v750
    %vm752 = vcmask 392512
    %v753 = vsel %vm752, %v751, %v746
    %v754 = vadd.s32 %v714, 4294967248
    %v755 = vlaneseq
    %v756 = vshrl.u32 %v755, 7
    %v757 = vsub.s32 %v754, %v756
    %v758 = vrot.slane %v687, %v757
    %vm759 = vcmask 458112
    %v760 = vsel %vm759, %v758, %v753
    %v761 = vadd.s32 %v714, 4294967240
    %v762 = vlaneseq
    %v763 = vshrl.u32 %v762, 7
    %v764 = vsub.s32 %v761, %v763
    %v765 = vrot.slane %v688, %v764
    %vm766 = vcmask 523712
    %v767 = vsel %vm766, %v765, %v760
    %v768 = vadd.s32 %v714, 4294967232
    %v769 = vlaneseq
    %v770 = vshrl.u32 %v769, 7
    %v771 = vsub.s32 %v768, %v770
    %v772 = vrot.slane %v689, %v771
    %vm773 = vcmask 589312
    %v774 = vsel %vm773, %v772, %v767
    %v775 = vadd.s32 %v714, 4294967224
    %v776 = vlaneseq
    %v777 = vshrl.u32 %v776, 7
    %v778 = vsub.s32 %v775, %v777
    %v779 = vrot.slane %v690, %v778
    %vm780 = vcmask 654912
    %v781 = vsel %vm780, %v779, %v774
    %v782 = vadd.s32 %v714, 4294967216
    %v783 = vlaneseq
    %v784 = vshrl.u32 %v783, 7
    %v785 = vsub.s32 %v782, %v784
    %v786 = vrot.slane %v691, %v785
    %vm787 = vcmask 720512
    %v788 = vsel %vm787, %v786, %v781
    %v789 = vadd.s32 %v714, 4294967208
    %v790 = vlaneseq
    %v791 = vshrl.u32 %v790, 7
    %v792 = vsub.s32 %v789, %v791
    %v793 = vrot.slane %v692, %v792
    %vm794 = vcmask 786112
    %v795 = vsel %vm794, %v793, %v788
    %v796 = vadd.s32 %v714, 4294967200
    %v797 = vlaneseq
    %v798 = vshrl.u32 %v797, 7
    %v799 = vsub.s32 %v796, %v798
    %v800 = vrot.slane %v693, %v799
    %vm801 = vcmask 851712
    %v802 = vsel %vm801, %v800, %v795
    %v803 = vadd.s32 %v714, 4294967192
    %v804 = vlaneseq
    %v805 = vshrl.u32 %v804, 7
    %v806 = vsub.s32 %v803, %v805
    %v807 = vrot.slane %v694, %v806
    %vm808 = vcmask 917312
    %v809 = vsel %vm808, %v807, %v802
    %v810 = vadd.s32 %v714, 4294967184
    %v811 = vlaneseq
    %v812 = vshrl.u32 %v811, 7
    %v813 = vsub.s32 %v810, %v812
    %v814 = vrot.slane %v695, %v813
    %vm815 = vcmask 982912
    %v816 = vsel %vm815, %v814, %v809
    %v817 = vadd.s32 %v714, 4294967176
    %v818 = vlaneseq
    %v819 = vshrl.u32 %v818, 7
    %v820 = vsub.s32 %v817, %v819
    %v821 = vrot.slane %v696, %v820
    %vm822 = vcmask 1048512
    %v823 = vsel %vm822, %v821, %v816
    %825 = vst [vmem:[#allocation10] sm:$0x1] %v823
    %826 = vadd.xlane.f32.xlu0 %v616
    %v827 = vpop.xlane.xlu0 %826
    %828 = vadd.xlane.f32.xlu0 %v618
    %v829 = vpop.xlane.xlu0 %828
    %830 = vadd.xlane.f32.xlu0 %v620
    %v831 = vpop.xlane.xlu0 %830
    %832 = vadd.xlane.f32.xlu0 %v622
    %v833 = vpop.xlane.xlu0 %832
    %834 = vadd.xlane.f32.xlu0 %v624
    %v835 = vpop.xlane.xlu0 %834
    %836 = vadd.xlane.f32.xlu0 %v626
    %v837 = vpop.xlane.xlu0 %836
    %838 = vadd.xlane.f32.xlu0 %v628
    %v839 = vpop.xlane.xlu0 %838
    %840 = vadd.xlane.f32.xlu0 %v630
    %v841 = vpop.xlane.xlu0 %840
    %842 = vadd.xlane.f32.xlu0 %v632
    %v843 = vpop.xlane.xlu0 %842
    %844 = vadd.xlane.f32.xlu0 %v634
    %v845 = vpop.xlane.xlu0 %844
    %846 = vadd.xlane.f32.xlu0 %v636
    %v847 = vpop.xlane.xlu0 %846
    %848 = vadd.xlane.f32.xlu0 %v638
    %v849 = vpop.xlane.xlu0 %848
    %850 = vadd.xlane.f32.xlu0 %v640
    %v851 = vpop.xlane.xlu0 %850
    %852 = vadd.xlane.f32.xlu0 %v642
    %v853 = vpop.xlane.xlu0 %852
    %854 = vadd.xlane.f32.xlu0 %v644
    %v855 = vpop.xlane.xlu0 %854
    %856 = vadd.xlane.f32.xlu0 %v646
    %v857 = vpop.xlane.xlu0 %856
    %s858 = sld [smem:[#allocation9 + $0x1]]
    %v859 = vstv %s858
    %v860 = vadd.f32 %v827, %v859
    %v861 = vadd.f32 %v829, %v859
    %v862 = vadd.f32 %v831, %v859
    %v863 = vadd.f32 %v833, %v859
    %v864 = vadd.f32 %v835, %v859
    %v865 = vadd.f32 %v837, %v859
    %v866 = vadd.f32 %v839, %v859
    %v867 = vadd.f32 %v841, %v859
    %v868 = vadd.f32 %v843, %v859
    %v869 = vadd.f32 %v845, %v859
    %v870 = vadd.f32 %v847, %v859
    %v871 = vadd.f32 %v849, %v859
    %v872 = vadd.f32 %v851, %v859
    %v873 = vadd.f32 %v853, %v859
    %v874 = vadd.f32 %v855, %v859
    %v875 = vadd.f32 %v857, %v859
    %v892 = vlaneseq
    %v893 = vshrl.u32 %v892, 7
    %v894 = vsub.s32 %v714, %v893
    %v895 = vrot.slane %v860, %v894
    %v896 = vlaneseq
    %v897 = vshrl.u32 %v896, 7
    %v898 = vsub.s32 %v719, %v897
    %v899 = vrot.slane %v861, %v898
    %v900 = vsel %vm724, %v899, %v895
    %v901 = vlaneseq
    %v902 = vshrl.u32 %v901, 7
    %v903 = vsub.s32 %v726, %v902
    %v904 = vrot.slane %v862, %v903
    %v905 = vsel %vm731, %v904, %v900
    %v906 = vlaneseq
    %v907 = vshrl.u32 %v906, 7
    %v908 = vsub.s32 %v733, %v907
    %v909 = vrot.slane %v863, %v908
    %v910 = vsel %vm738, %v909, %v905
    %v911 = vlaneseq
    %v912 = vshrl.u32 %v911, 7
    %v913 = vsub.s32 %v740, %v912
    %v914 = vrot.slane %v864, %v913
    %v915 = vsel %vm745, %v914, %v910
    %v916 = vlaneseq
    %v917 = vshrl.u32 %v916, 7
    %v918 = vsub.s32 %v747, %v917
    %v919 = vrot.slane %v865, %v918
    %v920 = vsel %vm752, %v919, %v915
    %v921 = vlaneseq
    %v922 = vshrl.u32 %v921, 7
    %v923 = vsub.s32 %v754, %v922
    %v924 = vrot.slane %v866, %v923
    %v925 = vsel %vm759, %v924, %v920
    %v926 = vlaneseq
    %v927 = vshrl.u32 %v926, 7
    %v928 = vsub.s32 %v761, %v927
    %v929 = vrot.slane %v867, %v928
    %v930 = vsel %vm766, %v929, %v925
    %v931 = vlaneseq
    %v932 = vshrl.u32 %v931, 7
    %v933 = vsub.s32 %v768, %v932
    %v934 = vrot.slane %v868, %v933
    %v935 = vsel %vm773, %v934, %v930
    %v936 = vlaneseq
    %v937 = vshrl.u32 %v936, 7
    %v938 = vsub.s32 %v775, %v937
    %v939 = vrot.slane %v869, %v938
    %v940 = vsel %vm780, %v939, %v935
    %v941 = vlaneseq
    %v942 = vshrl.u32 %v941, 7
    %v943 = vsub.s32 %v782, %v942
    %v944 = vrot.slane %v870, %v943
    %v945 = vsel %vm787, %v944, %v940
    %v946 = vlaneseq
    %v947 = vshrl.u32 %v946, 7
    %v948 = vsub.s32 %v789, %v947
    %v949 = vrot.slane %v871, %v948
    %v950 = vsel %vm794, %v949, %v945
    %v951 = vlaneseq
    %v952 = vshrl.u32 %v951, 7
    %v953 = vsub.s32 %v796, %v952
    %v954 = vrot.slane %v872, %v953
    %v955 = vsel %vm801, %v954, %v950
    %v956 = vlaneseq
    %v957 = vshrl.u32 %v956, 7
    %v958 = vsub.s32 %v803, %v957
    %v959 = vrot.slane %v873, %v958
    %v960 = vsel %vm808, %v959, %v955
    %v961 = vlaneseq
    %v962 = vshrl.u32 %v961, 7
    %v963 = vsub.s32 %v810, %v962
    %v964 = vrot.slane %v874, %v963
    %v965 = vsel %vm815, %v964, %v960
    %v966 = vlaneseq
    %v967 = vshrl.u32 %v966, 7
    %v968 = vsub.s32 %v817, %v967
    %v969 = vrot.slane %v875, %v968
    %v970 = vsel %vm822, %v969, %v965
    %s972 = scalar_lea.vmem [#allocation10], 1
    %973 = vst [vmem:[%s972] sm:$0x1] %v970
    %s974 = scalar_lea.vmem [#allocation6], 256
    %v975 = vld [vmem:[%s974] sm:$0xff]
    %v976 = vld [vmem:[%s974 + $0x8] sm:$0xff]
    %v977 = vld [vmem:[%s974 + $0x10] sm:$0xff]
    %v978 = vld [vmem:[%s974 + $0x18] sm:$0xff]
    %v979 = vld [vmem:[%s974 + $0x20] sm:$0xff]
    %v980 = vld [vmem:[%s974 + $0x28] sm:$0xff]
    %v981 = vld [vmem:[%s974 + $0x30] sm:$0xff]
    %v982 = vld [vmem:[%s974 + $0x38] sm:$0xff]
    %v983 = vld [vmem:[%s974 + $0x40] sm:$0xff]
    %v984 = vld [vmem:[%s974 + $0x48] sm:$0xff]
    %v985 = vld [vmem:[%s974 + $0x50] sm:$0xff]
    %v986 = vld [vmem:[%s974 + $0x58] sm:$0xff]
    %v987 = vld [vmem:[%s974 + $0x60] sm:$0xff]
    %v988 = vld [vmem:[%s974 + $0x68] sm:$0xff]
    %v989 = vld [vmem:[%s974 + $0x70] sm:$0xff]
    %v990 = vld [vmem:[%s974 + $0x78] sm:$0xff]
    %v991 = vld [vmem:[%s974 + $0x80] sm:$0xff]
    %v992 = vld [vmem:[%s974 + $0x88] sm:$0xff]
    %v993 = vld [vmem:[%s974 + $0x90] sm:$0xff]
    %v994 = vld [vmem:[%s974 + $0x98] sm:$0xff]
    %v995 = vld [vmem:[%s974 + $0xa0] sm:$0xff]
    %v996 = vld [vmem:[%s974 + $0xa8] sm:$0xff]
    %v997 = vld [vmem:[%s974 + $0xb0] sm:$0xff]
    %v998 = vld [vmem:[%s974 + $0xb8] sm:$0xff]
    %v999 = vld [vmem:[%s974 + $0xc0] sm:$0xff]
    %v1000 = vld [vmem:[%s974 + $0xc8] sm:$0xff]
    %v1001 = vld [vmem:[%s974 + $0xd0] sm:$0xff]
    %v1002 = vld [vmem:[%s974 + $0xd8] sm:$0xff]
    %v1003 = vld [vmem:[%s974 + $0xe0] sm:$0xff]
    %v1004 = vld [vmem:[%s974 + $0xe8] sm:$0xff]
    %v1005 = vld [vmem:[%s974 + $0xf0] sm:$0xff]
    %v1006 = vld [vmem:[%s974 + $0xf8] sm:$0xff]
    %s1007 = scalar_lea.vmem %s2, 2
    %v1008 = vld [vmem:[%s1007] sm:$0x3]
    %v1010 = vlaneseq
    %v1011 = vshrl.u32 %v1010, 7
    %v1012 = vsub.s32 0, %v1011
    %v1013 = vrot.slane %v1008, %v1012
    %v1014 = vlaneseq
    %v1015 = vshrl.u32 %v1014, 7
    %v1016 = vsub.s32 1, %v1015
    %v1017 = vrot.slane %v1008, %v1016
    %1020 = vmatprep.subr.mxu0 %v976
    %1021 = vmatpush1.msra.mxu0 %v975
    %1022 = vmatprep.subr.mxu0 %v978
    %1023 = vmatpush1.msra.mxu0 %v977
    %1024 = vmatprep.subr.mxu0 %v980
    %1025 = vmatpush1.msra.mxu0 %v979
    %1026 = vmatprep.subr.mxu0 %v982
    %1027 = vmatpush1.msra.mxu0 %v981
    %1028 = vmatprep.subr.mxu0 %v984
    %1029 = vmatpush1.msra.mxu0 %v983
    %1030 = vmatprep.subr.mxu0 %v986
    %1031 = vmatpush1.msra.mxu0 %v985
    %1032 = vmatprep.subr.mxu0 %v988
    %1033 = vmatpush1.msra.mxu0 %v987
    %1034 = vmatprep.subr.mxu0 %v990
    %1035 = vmatpush1.msra.mxu0 %v989
    %1036 = vmatprep.subr.mxu0 %v992
    %1037 = vmatpush1.msra.mxu0 %v991
    %1038 = vmatprep.subr.mxu0 %v994
    %1039 = vmatpush1.msra.mxu0 %v993
    %1040 = vmatprep.subr.mxu0 %v996
    %1041 = vmatpush1.msra.mxu0 %v995
    %1042 = vmatprep.subr.mxu0 %v998
    %1043 = vmatpush1.msra.mxu0 %v997
    %1044 = vmatprep.subr.mxu0 %v1000
    %1045 = vmatpush1.msra.mxu0 %v999
    %1046 = vmatprep.subr.mxu0 %v1002
    %1047 = vmatpush1.msra.mxu0 %v1001
    %1048 = vmatprep.subr.mxu0 %v1004
    %1049 = vmatpush1.msra.mxu0 %v1003
    %1050 = vmatprep.subr.mxu0 %v1006
    %1051 = vmatpush1.msra.mxu0 %v1005
    %1052 = vmatprep.subr.mxu0 0.0
    %1053 = vmatpush1.msra.mxu0 0.0
    %1054 = vmatprep.subr.mxu0 0.0
    %1055 = vmatpush1.msra.mxu0 0.0
    %1056 = vmatprep.subr.mxu0 0.0
    %1057 = vmatpush1.msra.mxu0 0.0
    %1058 = vmatprep.subr.mxu0 0.0
    %1059 = vmatpush1.msra.mxu0 0.0
    %1060 = vmatprep.subr.mxu0 0.0
    %1061 = vmatpush1.msra.mxu0 0.0
    %1062 = vmatprep.subr.mxu0 0.0
    %1063 = vmatpush1.msra.mxu0 0.0
    %1064 = vmatprep.subr.mxu0 0.0
    %1065 = vmatpush1.msra.mxu0 0.0
    %1066 = vmatprep.subr.mxu0 0.0
    %1067 = vmatpush1.msra.mxu0 0.0
    %1068 = vmatprep.subr.mxu0 0.0
    %1069 = vmatpush1.msra.mxu0 0.0
    %1070 = vmatprep.subr.mxu0 0.0
    %1071 = vmatpush1.msra.mxu0 0.0
    %1072 = vmatprep.subr.mxu0 0.0
    %1073 = vmatpush1.msra.mxu0 0.0
    %1074 = vmatprep.subr.mxu0 0.0
    %1075 = vmatpush1.msra.mxu0 0.0
    %1076 = vmatprep.subr.mxu0 0.0
    %1077 = vmatpush1.msra.mxu0 0.0
    %1078 = vmatprep.subr.mxu0 0.0
    %1079 = vmatpush1.msra.mxu0 0.0
    %1080 = vmatprep.subr.mxu0 0.0
    %1081 = vmatpush1.msra.mxu0 0.0
    %1082 = vmatprep.subr.mxu0 0.0
    %1083 = vmatpush1.msra.mxu0 0.0
    %1084 = vmatprep.mubr.f32.mxu0 0.0
    %1085 = vmatmul.mubr.f32.gmra.mrb[0].mxu0 %v81
    %v1086 = vpop.f32.mrb[0].mxu0
    %v1087 = vadd.f32 %v1013, %v1086
    %v1088 = vpop.f32.mrb[0].mxu0
    %v1089 = vadd.f32 %v1017, %v1088
    %1090 = vmatprep.mubr.f32.mxu0 0.0
    %1091 = vmatmul.mubr.f32.gmra.mrb[0].mxu0 %v82
    %v1092 = vpop.f32.mrb[0].mxu0
    %v1093 = vadd.f32 %v1013, %v1092
    %v1094 = vpop.f32.mrb[0].mxu0
    %v1095 = vadd.f32 %v1017, %v1094
    %1096 = vmatprep.mubr.f32.mxu0 0.0
    %1097 = vmatmul.mubr.f32.gmra.mrb[0].mxu0 %v83
    %v1098 = vpop.f32.mrb[0].mxu0
    %v1099 = vadd.f32 %v1013, %v1098
    %v1100 = vpop.f32.mrb[0].mxu0
    %v1101 = vadd.f32 %v1017, %v1100
    %1102 = vmatprep.mubr.f32.mxu0 0.0
    %1103 = vmatmul.mubr.f32.gmra.mrb[0].mxu0 %v84
    %v1104 = vpop.f32.mrb[0].mxu0
    %v1105 = vadd.f32 %v1013, %v1104
    %v1106 = vpop.f32.mrb[0].mxu0
    %v1107 = vadd.f32 %v1017, %v1106
    %1108 = vmatprep.mubr.f32.mxu0 0.0
    %1109 = vmatmul.mubr.f32.gmra.mrb[0].mxu0 %v85
    %v1110 = vpop.f32.mrb[0].mxu0
    %v1111 = vadd.f32 %v1013, %v1110
    %v1112 = vpop.f32.mrb[0].mxu0
    %v1113 = vadd.f32 %v1017, %v1112
    %1114 = vmatprep.mubr.f32.mxu0 0.0
    %1115 = vmatmul.mubr.f32.gmra.mrb[0].mxu0 %v86
    %v1116 = vpop.f32.mrb[0].mxu0
    %v1117 = vadd.f32 %v1013, %v1116
    %v1118 = vpop.f32.mrb[0].mxu0
    %v1119 = vadd.f32 %v1017, %v1118
    %1120 = vmatprep.mubr.f32.mxu0 0.0
    %1121 = vmatmul.mubr.f32.gmra.mrb[0].mxu0 %v87
    %v1122 = vpop.f32.mrb[0].mxu0
    %v1123 = vadd.f32 %v1013, %v1122
    %v1124 = vpop.f32.mrb[0].mxu0
    %v1125 = vadd.f32 %v1017, %v1124
    %1126 = vmatprep.mubr.f32.mxu0 0.0
    %1127 = vmatmul.mubr.f32.gmra.mrb[0].mxu0 %v88
    %v1128 = vpop.f32.mrb[0].mxu0
    %v1129 = vadd.f32 %v1013, %v1128
    %v1130 = vpop.f32.mrb[0].mxu0
    %v1131 = vadd.f32 %v1017, %v1130
    %1132 = vmatprep.mubr.f32.mxu0 0.0
    %1133 = vmatmul.mubr.f32.gmra.mrb[0].mxu0 %v89
    %v1134 = vpop.f32.mrb[0].mxu0
    %v1135 = vadd.f32 %v1013, %v1134
    %v1136 = vpop.f32.mrb[0].mxu0
    %v1137 = vadd.f32 %v1017, %v1136
    %1138 = vmatprep.mubr.f32.mxu0 0.0
    %1139 = vmatmul.mubr.f32.gmra.mrb[0].mxu0 %v90
    %v1140 = vpop.f32.mrb[0].mxu0
    %v1141 = vadd.f32 %v1013, %v1140
    %v1142 = vpop.f32.mrb[0].mxu0
    %v1143 = vadd.f32 %v1017, %v1142
    %1144 = vmatprep.mubr.f32.mxu0 0.0
    %1145 = vmatmul.mubr.f32.gmra.mrb[0].mxu0 %v91
    %v1146 = vpop.f32.mrb[0].mxu0
    %v1147 = vadd.f32 %v1013, %v1146
    %v1148 = vpop.f32.mrb[0].mxu0
    %v1149 = vadd.f32 %v1017, %v1148
    %1150 = vmatprep.mubr.f32.mxu0 0.0
    %1151 = vmatmul.mubr.f32.gmra.mrb[0].mxu0 %v92
    %v1152 = vpop.f32.mrb[0].mxu0
    %v1153 = vadd.f32 %v1013, %v1152
    %v1154 = vpop.f32.mrb[0].mxu0
    %v1155 = vadd.f32 %v1017, %v1154
    %1156 = vmatprep.mubr.f32.mxu0 0.0
    %1157 = vmatmul.mubr.f32.gmra.mrb[0].mxu0 %v93
    %v1158 = vpop.f32.mrb[0].mxu0
    %v1159 = vadd.f32 %v1013, %v1158
    %v1160 = vpop.f32.mrb[0].mxu0
    %v1161 = vadd.f32 %v1017, %v1160
    %1162 = vmatprep.mubr.f32.mxu0 0.0
    %1163 = vmatmul.mubr.f32.gmra.mrb[0].mxu0 %v94
    %v1164 = vpop.f32.mrb[0].mxu0
    %v1165 = vadd.f32 %v1013, %v1164
    %v1166 = vpop.f32.mrb[0].mxu0
    %v1167 = vadd.f32 %v1017, %v1166
    %1168 = vmatprep.mubr.f32.mxu0 0.0
    %1169 = vmatmul.mubr.f32.gmra.mrb[0].mxu0 %v95
    %v1170 = vpop.f32.mrb[0].mxu0
    %v1171 = vadd.f32 %v1013, %v1170
    %v1172 = vpop.f32.mrb[0].mxu0
    %v1173 = vadd.f32 %v1017, %v1172
    %1174 = vmatprep.mubr.f32.mxu0 0.0
    %1175 = vmatmul.mubr.f32.gmra.mrb[0].mxu0 %v96
    %v1176 = vpop.f32.mrb[0].mxu0
    %v1177 = vadd.f32 %v1013, %v1176
    %v1178 = vpop.f32.mrb[0].mxu0
    %v1179 = vadd.f32 %v1017, %v1178
    %1180 = vdwg.mxu0
    %v1181 = vmax.f32 %v1087, 0.0
    %v1182 = vmax.f32 %v1089, 0.0
    %v1183 = vmax.f32 %v1093, 0.0
    %v1184 = vmax.f32 %v1095, 0.0
    %v1185 = vmax.f32 %v1099, 0.0
    %v1186 = vmax.f32 %v1101, 0.0
    %v1187 = vmax.f32 %v1105, 0.0
    %v1188 = vmax.f32 %v1107, 0.0
    %v1189 = vmax.f32 %v1111, 0.0
    %v1190 = vmax.f32 %v1113, 0.0
    %v1191 = vmax.f32 %v1117, 0.0
    %v1192 = vmax.f32 %v1119, 0.0
    %v1193 = vmax.f32 %v1123, 0.0
    %v1194 = vmax.f32 %v1125, 0.0
    %v1195 = vmax.f32 %v1129, 0.0
    %v1196 = vmax.f32 %v1131, 0.0
    %v1197 = vmax.f32 %v1135, 0.0
    %v1198 = vmax.f32 %v1137, 0.0
    %v1199 = vmax.f32 %v1141, 0.0
    %v1200 = vmax.f32 %v1143, 0.0
    %v1201 = vmax.f32 %v1147, 0.0
    %v1202 = vmax.f32 %v1149, 0.0
    %v1203 = vmax.f32 %v1153, 0.0
    %v1204 = vmax.f32 %v1155, 0.0
    %v1205 = vmax.f32 %v1159, 0.0
    %v1206 = vmax.f32 %v1161, 0.0
    %v1207 = vmax.f32 %v1165, 0.0
    %v1208 = vmax.f32 %v1167, 0.0
    %v1209 = vmax.f32 %v1171, 0.0
    %v1210 = vmax.f32 %v1173, 0.0
    %v1211 = vmax.f32 %v1177, 0.0
    %v1212 = vmax.f32 %v1179, 0.0
    %s1213 = scalar_lea.vmem [#allocation8], 512
    %v1214 = vld [vmem:[%s1213] sm:$0xff]
    %v1215 = vld [vmem:[%s1213 + $0x8] sm:$0xff]
    %v1216 = vld [vmem:[%s1213 + $0x10] sm:$0xff]
    %v1217 = vld [vmem:[%s1213 + $0x18] sm:$0xff]
    %v1218 = vld [vmem:[%s1213 + $0x20] sm:$0xff]
    %v1219 = vld [vmem:[%s1213 + $0x28] sm:$0xff]
    %v1220 = vld [vmem:[%s1213 + $0x30] sm:$0xff]
    %v1221 = vld [vmem:[%s1213 + $0x38] sm:$0xff]
    %v1222 = vld [vmem:[%s1213 + $0x40] sm:$0xff]
    %v1223 = vld [vmem:[%s1213 + $0x48] sm:$0xff]
    %v1224 = vld [vmem:[%s1213 + $0x50] sm:$0xff]
    %v1225 = vld [vmem:[%s1213 + $0x58] sm:$0xff]
    %v1226 = vld [vmem:[%s1213 + $0x60] sm:$0xff]
    %v1227 = vld [vmem:[%s1213 + $0x68] sm:$0xff]
    %v1228 = vld [vmem:[%s1213 + $0x70] sm:$0xff]
    %v1229 = vld [vmem:[%s1213 + $0x78] sm:$0xff]
    %v1230 = vld [vmem:[%s1213 + $0x80] sm:$0xff]
    %v1231 = vld [vmem:[%s1213 + $0x88] sm:$0xff]
    %v1232 = vld [vmem:[%s1213 + $0x90] sm:$0xff]
    %v1233 = vld [vmem:[%s1213 + $0x98] sm:$0xff]
    %v1234 = vld [vmem:[%s1213 + $0xa0] sm:$0xff]
    %v1235 = vld [vmem:[%s1213 + $0xa8] sm:$0xff]
    %v1236 = vld [vmem:[%s1213 + $0xb0] sm:$0xff]
    %v1237 = vld [vmem:[%s1213 + $0xb8] sm:$0xff]
    %v1238 = vld [vmem:[%s1213 + $0xc0] sm:$0xff]
    %v1239 = vld [vmem:[%s1213 + $0xc8] sm:$0xff]
    %v1240 = vld [vmem:[%s1213 + $0xd0] sm:$0xff]
    %v1241 = vld [vmem:[%s1213 + $0xd8] sm:$0xff]
    %v1242 = vld [vmem:[%s1213 + $0xe0] sm:$0xff]
    %v1243 = vld [vmem:[%s1213 + $0xe8] sm:$0xff]
    %v1244 = vld [vmem:[%s1213 + $0xf0] sm:$0xff]
    %v1245 = vld [vmem:[%s1213 + $0xf8] sm:$0xff]
    %v1246 = vld [vmem:[%s1213 + $0x100] sm:$0xff]
    %v1247 = vld [vmem:[%s1213 + $0x108] sm:$0xff]
    %v1248 = vld [vmem:[%s1213 + $0x110] sm:$0xff]
    %v1249 = vld [vmem:[%s1213 + $0x118] sm:$0xff]
    %v1250 = vld [vmem:[%s1213 + $0x120] sm:$0xff]
    %v1251 = vld [vmem:[%s1213 + $0x128] sm:$0xff]
    %v1252 = vld [vmem:[%s1213 + $0x130] sm:$0xff]
    %v1253 = vld [vmem:[%s1213 + $0x138] sm:$0xff]
    %v1254 = vld [vmem:[%s1213 + $0x140] sm:$0xff]
    %v1255 = vld [vmem:[%s1213 + $0x148] sm:$0xff]
    %v1256 = vld [vmem:[%s1213 + $0x150] sm:$0xff]
    %v1257 = vld [vmem:[%s1213 + $0x158] sm:$0xff]
    %v1258 = vld [vmem:[%s1213 + $0x160] sm:$0xff]
    %v1259 = vld [vmem:[%s1213 + $0x168] sm:$0xff]
    %v1260 = vld [vmem:[%s1213 + $0x170] sm:$0xff]
    %v1261 = vld [vmem:[%s1213 + $0x178] sm:$0xff]
    %v1262 = vld [vmem:[%s1213 + $0x180] sm:$0xff]
    %v1263 = vld [vmem:[%s1213 + $0x188] sm:$0xff]
    %v1264 = vld [vmem:[%s1213 + $0x190] sm:$0xff]
    %v1265 = vld [vmem:[%s1213 + $0x198] sm:$0xff]
    %v1266 = vld [vmem:[%s1213 + $0x1a0] sm:$0xff]
    %v1267 = vld [vmem:[%s1213 + $0x1a8] sm:$0xff]
    %v1268 = vld [vmem:[%s1213 + $0x1b0] sm:$0xff]
    %v1269 = vld [vmem:[%s1213 + $0x1b8] sm:$0xff]
    %v1270 = vld [vmem:[%s1213 + $0x1c0] sm:$0xff]
    %v1271 = vld [vmem:[%s1213 + $0x1c8] sm:$0xff]
    %v1272 = vld [vmem:[%s1213 + $0x1d0] sm:$0xff]
    %v1273 = vld [vmem:[%s1213 + $0x1d8] sm:$0xff]
    %v1274 = vld [vmem:[%s1213 + $0x1e0] sm:$0xff]
    %v1275 = vld [vmem:[%s1213 + $0x1e8] sm:$0xff]
    %v1276 = vld [vmem:[%s1213 + $0x1f0] sm:$0xff]
    %v1277 = vld [vmem:[%s1213 + $0x1f8] sm:$0xff]
    %s1278 = scalar_lea.vmem %s4, 2
    %v1279 = vld [vmem:[%s1278] sm:$0x3]
    %v1281 = vlaneseq
    %v1282 = vshrl.u32 %v1281, 7
    %v1283 = vsub.s32 0, %v1282
    %v1284 = vrot.slane %v1279, %v1283
    %v1285 = vlaneseq
    %v1286 = vshrl.u32 %v1285, 7
    %v1287 = vsub.s32 1, %v1286
    %v1288 = vrot.slane %v1279, %v1287
    %1291 = vmatprep.subr.mxu0 %v1215
    %1292 = vmatpush1.msra.mxu0 %v1214
    %1293 = vmatprep.subr.mxu0 %v1217
    %1294 = vmatpush1.msra.mxu0 %v1216
    %1295 = vmatprep.subr.mxu0 %v1219
    %1296 = vmatpush1.msra.mxu0 %v1218
    %1297 = vmatprep.subr.mxu0 %v1221
    %1298 = vmatpush1.msra.mxu0 %v1220
    %1299 = vmatprep.subr.mxu0 %v1223
    %1300 = vmatpush1.msra.mxu0 %v1222
    %1301 = vmatprep.subr.mxu0 %v1225
    %1302 = vmatpush1.msra.mxu0 %v1224
    %1303 = vmatprep.subr.mxu0 %v1227
    %1304 = vmatpush1.msra.mxu0 %v1226
    %1305 = vmatprep.subr.mxu0 %v1229
    %1306 = vmatpush1.msra.mxu0 %v1228
    %1307 = vmatprep.subr.mxu0 %v1231
    %1308 = vmatpush1.msra.mxu0 %v1230
    %1309 = vmatprep.subr.mxu0 %v1233
    %1310 = vmatpush1.msra.mxu0 %v1232
    %1311 = vmatprep.subr.mxu0 %v1235
    %1312 = vmatpush1.msra.mxu0 %v1234
    %1313 = vmatprep.subr.mxu0 %v1237
    %1314 = vmatpush1.msra.mxu0 %v1236
    %1315 = vmatprep.subr.mxu0 %v1239
    %1316 = vmatpush1.msra.mxu0 %v1238
    %1317 = vmatprep.subr.mxu0 %v1241
    %1318 = vmatpush1.msra.mxu0 %v1240
    %1319 = vmatprep.subr.mxu0 %v1243
    %1320 = vmatpush1.msra.mxu0 %v1242
    %1321 = vmatprep.subr.mxu0 %v1245
    %1322 = vmatpush1.msra.mxu0 %v1244
    %1323 = vmatprep.subr.mxu0 %v1247
    %1324 = vmatpush1.msra.mxu0 %v1246
    %1325 = vmatprep.subr.mxu0 %v1249
    %1326 = vmatpush1.msra.mxu0 %v1248
    %1327 = vmatprep.subr.mxu0 %v1251
    %1328 = vmatpush1.msra.mxu0 %v1250
    %1329 = vmatprep.subr.mxu0 %v1253
    %1330 = vmatpush1.msra.mxu0 %v1252
    %1331 = vmatprep.subr.mxu0 %v1255
    %1332 = vmatpush1.msra.mxu0 %v1254
    %1333 = vmatprep.subr.mxu0 %v1257
    %1334 = vmatpush1.msra.mxu0 %v1256
    %1335 = vmatprep.subr.mxu0 %v1259
    %1336 = vmatpush1.msra.mxu0 %v1258
    %1337 = vmatprep.subr.mxu0 %v1261
    %1338 = vmatpush1.msra.mxu0 %v1260
    %1339 = vmatprep.subr.mxu0 %v1263
    %1340 = vmatpush1.msra.mxu0 %v1262
    %1341 = vmatprep.subr.mxu0 %v1265
    %1342 = vmatpush1.msra.mxu0 %v1264
    %1343 = vmatprep.subr.mxu0 %v1267
    %1344 = vmatpush1.msra.mxu0 %v1266
    %1345 = vmatprep.subr.mxu0 %v1269
    %1346 = vmatpush1.msra.mxu0 %v1268
    %1347 = vmatprep.subr.mxu0 %v1271
    %1348 = vmatpush1.msra.mxu0 %v1270
    %1349 = vmatprep.subr.mxu0 %v1273
    %1350 = vmatpush1.msra.mxu0 %v1272
    %1351 = vmatprep.subr.mxu0 %v1275
    %1352 = vmatpush1.msra.mxu0 %v1274
    %1353 = vmatprep.subr.mxu0 %v1277
    %1354 = vmatpush1.msra.mxu0 %v1276
    %1355 = vmatprep.mubr.f32.mxu0 %v1182
    %1356 = vmatmul.mubr.f32.gmra.mrb[0].mxu0 %v1181
    %v1357 = vpop.f32.mrb[0].mxu0
    %v1358 = vadd.f32 %v1284, %v1357
    %v1359 = vpop.f32.mrb[0].mxu0
    %v1360 = vadd.f32 %v1288, %v1359
    %1361 = vmatprep.mubr.f32.mxu0 %v1184
    %1362 = vmatmul.mubr.f32.gmra.mrb[0].mxu0 %v1183
    %v1363 = vpop.f32.mrb[0].mxu0
    %v1364 = vadd.f32 %v1284, %v1363
    %v1365 = vpop.f32.mrb[0].mxu0
    %v1366 = vadd.f32 %v1288, %v1365
    %1367 = vmatprep.mubr.f32.mxu0 %v1186
    %1368 = vmatmul.mubr.f32.gmra.mrb[0].mxu0 %v1185
    %v1369 = vpop.f32.mrb[0].mxu0
    %v1370 = vadd.f32 %v1284, %v1369
    %v1371 = vpop.f32.mrb[0].mxu0
    %v1372 = vadd.f32 %v1288, %v1371
    %1373 = vmatprep.mubr.f32.mxu0 %v1188
    %1374 = vmatmul.mubr.f32.gmra.mrb[0].mxu0 %v1187
    %v1375 = vpop.f32.mrb[0].mxu0
    %v1376 = vadd.f32 %v1284, %v1375
    %v1377 = vpop.f32.mrb[0].mxu0
    %v1378 = vadd.f32 %v1288, %v1377
    %1379 = vmatprep.mubr.f32.mxu0 %v1190
    %1380 = vmatmul.mubr.f32.gmra.mrb[0].mxu0 %v1189
    %v1381 = vpop.f32.mrb[0].mxu0
    %v1382 = vadd.f32 %v1284, %v1381
    %v1383 = vpop.f32.mrb[0].mxu0
    %v1384 = vadd.f32 %v1288, %v1383
    %1385 = vmatprep.mubr.f32.mxu0 %v1192
    %1386 = vmatmul.mubr.f32.gmra.mrb[0].mxu0 %v1191
    %v1387 = vpop.f32.mrb[0].mxu0
    %v1388 = vadd.f32 %v1284, %v1387
    %v1389 = vpop.f32.mrb[0].mxu0
    %v1390 = vadd.f32 %v1288, %v1389
    %1391 = vmatprep.mubr.f32.mxu0 %v1194
    %1392 = vmatmul.mubr.f32.gmra.mrb[0].mxu0 %v1193
    %v1393 = vpop.f32.mrb[0].mxu0
    %v1394 = vadd.f32 %v1284, %v1393
    %v1395 = vpop.f32.mrb[0].mxu0
    %v1396 = vadd.f32 %v1288, %v1395
    %1397 = vmatprep.mubr.f32.mxu0 %v1196
    %1398 = vmatmul.mubr.f32.gmra.mrb[0].mxu0 %v1195
    %v1399 = vpop.f32.mrb[0].mxu0
    %v1400 = vadd.f32 %v1284, %v1399
    %v1401 = vpop.f32.mrb[0].mxu0
    %v1402 = vadd.f32 %v1288, %v1401
    %1403 = vmatprep.mubr.f32.mxu0 %v1198
    %1404 = vmatmul.mubr.f32.gmra.mrb[0].mxu0 %v1197
    %v1405 = vpop.f32.mrb[0].mxu0
    %v1406 = vadd.f32 %v1284, %v1405
    %v1407 = vpop.f32.mrb[0].mxu0
    %v1408 = vadd.f32 %v1288, %v1407
    %1409 = vmatprep.mubr.f32.mxu0 %v1200
    %1410 = vmatmul.mubr.f32.gmra.mrb[0].mxu0 %v1199
    %v1411 = vpop.f32.mrb[0].mxu0
    %v1412 = vadd.f32 %v1284, %v1411
    %v1413 = vpop.f32.mrb[0].mxu0
    %v1414 = vadd.f32 %v1288, %v1413
    %1415 = vmatprep.mubr.f32.mxu0 %v1202
    %1416 = vmatmul.mubr.f32.gmra.mrb[0].mxu0 %v1201
    %v1417 = vpop.f32.mrb[0].mxu0
    %v1418 = vadd.f32 %v1284, %v1417
    %v1419 = vpop.f32.mrb[0].mxu0
    %v1420 = vadd.f32 %v1288, %v1419
    %1421 = vmatprep.mubr.f32.mxu0 %v1204
    %1422 = vmatmul.mubr.f32.gmra.mrb[0].mxu0 %v1203
    %v1423 = vpop.f32.mrb[0].mxu0
    %v1424 = vadd.f32 %v1284, %v1423
    %v1425 = vpop.f32.mrb[0].mxu0
    %v1426 = vadd.f32 %v1288, %v1425
    %1427 = vmatprep.mubr.f32.mxu0 %v1206
    %1428 = vmatmul.mubr.f32.gmra.mrb[0].mxu0 %v1205
    %v1429 = vpop.f32.mrb[0].mxu0
    %v1430 = vadd.f32 %v1284, %v1429
    %v1431 = vpop.f32.mrb[0].mxu0
    %v1432 = vadd.f32 %v1288, %v1431
    %1433 = vmatprep.mubr.f32.mxu0 %v1208
    %1434 = vmatmul.mubr.f32.gmra.mrb[0].mxu0 %v1207
    %v1435 = vpop.f32.mrb[0].mxu0
    %v1436 = vadd.f32 %v1284, %v1435
    %v1437 = vpop.f32.mrb[0].mxu0
    %v1438 = vadd.f32 %v1288, %v1437
    %1439 = vmatprep.mubr.f32.mxu0 %v1210
    %1440 = vmatmul.mubr.f32.gmra.mrb[0].mxu0 %v1209
    %v1441 = vpop.f32.mrb[0].mxu0
    %v1442 = vadd.f32 %v1284, %v1441
    %v1443 = vpop.f32.mrb[0].mxu0
    %v1444 = vadd.f32 %v1288, %v1443
    %1445 = vmatprep.mubr.f32.mxu0 %v1212
    %1446 = vmatmul.mubr.f32.gmra.mrb[0].mxu0 %v1211
    %v1447 = vpop.f32.mrb[0].mxu0
    %v1448 = vadd.f32 %v1284, %v1447
    %v1449 = vpop.f32.mrb[0].mxu0
    %v1450 = vadd.f32 %v1288, %v1449
    %1451 = vdwg.mxu0
    %v1452 = vmax.f32 %v1358, 0.0
    %v1453 = vmax.f32 %v1360, 0.0
    %v1454 = vmax.f32 %v1364, 0.0
    %v1455 = vmax.f32 %v1366, 0.0
    %v1456 = vmax.f32 %v1370, 0.0
    %v1457 = vmax.f32 %v1372, 0.0
    %v1458 = vmax.f32 %v1376, 0.0
    %v1459 = vmax.f32 %v1378, 0.0
    %v1460 = vmax.f32 %v1382, 0.0
    %v1461 = vmax.f32 %v1384, 0.0
    %v1462 = vmax.f32 %v1388, 0.0
    %v1463 = vmax.f32 %v1390, 0.0
    %v1464 = vmax.f32 %v1394, 0.0
    %v1465 = vmax.f32 %v1396, 0.0
    %v1466 = vmax.f32 %v1400, 0.0
    %v1467 = vmax.f32 %v1402, 0.0
    %v1468 = vmax.f32 %v1406, 0.0
    %v1469 = vmax.f32 %v1408, 0.0
    %v1470 = vmax.f32 %v1412, 0.0
    %v1471 = vmax.f32 %v1414, 0.0
    %v1472 = vmax.f32 %v1418, 0.0
    %v1473 = vmax.f32 %v1420, 0.0
    %v1474 = vmax.f32 %v1424, 0.0
    %v1475 = vmax.f32 %v1426, 0.0
    %v1476 = vmax.f32 %v1430, 0.0
    %v1477 = vmax.f32 %v1432, 0.0
    %v1478 = vmax.f32 %v1436, 0.0
    %v1479 = vmax.f32 %v1438, 0.0
    %v1480 = vmax.f32 %v1442, 0.0
    %v1481 = vmax.f32 %v1444, 0.0
    %v1482 = vmax.f32 %v1448, 0.0
    %v1483 = vmax.f32 %v1450, 0.0
    %s1484 = scalar_lea.vmem %s5, 2
    %v1485 = vld [vmem:[%s1484] sm:$0x3]
    %v1487 = vlaneseq
    %v1488 = vshrl.u32 %v1487, 7
    %v1489 = vsub.s32 0, %v1488
    %v1490 = vrot.slane %v1485, %v1489
    %v1491 = vlaneseq
    %v1492 = vshrl.u32 %v1491, 7
    %v1493 = vsub.s32 1, %v1492
    %v1494 = vrot.slane %v1485, %v1493
    %v1497 = vmul.f32 %v1452, %v1490
    %v1498 = vmul.f32 %v1453, %v1494
    %v1499 = vmul.f32 %v1454, %v1490
    %v1500 = vmul.f32 %v1455, %v1494
    %v1501 = vmul.f32 %v1456, %v1490
    %v1502 = vmul.f32 %v1457, %v1494
    %v1503 = vmul.f32 %v1458, %v1490
    %v1504 = vmul.f32 %v1459, %v1494
    %v1505 = vmul.f32 %v1460, %v1490
    %v1506 = vmul.f32 %v1461, %v1494
    %v1507 = vmul.f32 %v1462, %v1490
    %v1508 = vmul.f32 %v1463, %v1494
    %v1509 = vmul.f32 %v1464, %v1490
    %v1510 = vmul.f32 %v1465, %v1494
    %v1511 = vmul.f32 %v1466, %v1490
    %v1512 = vmul.f32 %v1467, %v1494
    %v1513 = vmul.f32 %v1468, %v1490
    %v1514 = vmul.f32 %v1469, %v1494
    %v1515 = vmul.f32 %v1470, %v1490
    %v1516 = vmul.f32 %v1471, %v1494
    %v1517 = vmul.f32 %v1472, %v1490
    %v1518 = vmul.f32 %v1473, %v1494
    %v1519 = vmul.f32 %v1474, %v1490
    %v1520 = vmul.f32 %v1475, %v1494
    %v1521 = vmul.f32 %v1476, %v1490
    %v1522 = vmul.f32 %v1477, %v1494
    %v1523 = vmul.f32 %v1478, %v1490
    %v1524 = vmul.f32 %v1479, %v1494
    %v1525 = vmul.f32 %v1480, %v1490
    %v1526 = vmul.f32 %v1481, %v1494
    %v1527 = vmul.f32 %v1482, %v1490
    %v1528 = vmul.f32 %v1483, %v1494
    %1529 = vadd.xlane.f32.xlu0 %v1497
    %v1530 = vpop.xlane.xlu0 %1529
    %1531 = vadd.xlane.f32.xlu0 %v1499
    %v1532 = vpop.xlane.xlu0 %1531
    %1533 = vadd.xlane.f32.xlu0 %v1501
    %v1534 = vpop.xlane.xlu0 %1533
    %1535 = vadd.xlane.f32.xlu0 %v1503
    %v1536 = vpop.xlane.xlu0 %1535
    %1537 = vadd.xlane.f32.xlu0 %v1505
    %v1538 = vpop.xlane.xlu0 %1537
    %1539 = vadd.xlane.f32.xlu0 %v1507
    %v1540 = vpop.xlane.xlu0 %1539
    %1541 = vadd.xlane.f32.xlu0 %v1509
    %v1542 = vpop.xlane.xlu0 %1541
    %1543 = vadd.xlane.f32.xlu0 %v1511
    %v1544 = vpop.xlane.xlu0 %1543
    %1545 = vadd.xlane.f32.xlu0 %v1513
    %v1546 = vpop.xlane.xlu0 %1545
    %1547 = vadd.xlane.f32.xlu0 %v1515
    %v1548 = vpop.xlane.xlu0 %1547
    %1549 = vadd.xlane.f32.xlu0 %v1517
    %v1550 = vpop.xlane.xlu0 %1549
    %1551 = vadd.xlane.f32.xlu0 %v1519
    %v1552 = vpop.xlane.xlu0 %1551
    %1553 = vadd.xlane.f32.xlu0 %v1521
    %v1554 = vpop.xlane.xlu0 %1553
    %1555 = vadd.xlane.f32.xlu0 %v1523
    %v1556 = vpop.xlane.xlu0 %1555
    %1557 = vadd.xlane.f32.xlu0 %v1525
    %v1558 = vpop.xlane.xlu0 %1557
    %1559 = vadd.xlane.f32.xlu0 %v1527
    %v1560 = vpop.xlane.xlu0 %1559
    %s1561 = sld [smem:[#allocation9 + $0x2]]
    %v1562 = vstv %s1561
    %v1563 = vadd.f32 %v1530, %v1562
    %v1564 = vadd.f32 %v1532, %v1562
    %v1565 = vadd.f32 %v1534, %v1562
    %v1566 = vadd.f32 %v1536, %v1562
    %v1567 = vadd.f32 %v1538, %v1562
    %v1568 = vadd.f32 %v1540, %v1562
    %v1569 = vadd.f32 %v1542, %v1562
    %v1570 = vadd.f32 %v1544, %v1562
    %v1571 = vadd.f32 %v1546, %v1562
    %v1572 = vadd.f32 %v1548, %v1562
    %v1573 = vadd.f32 %v1550, %v1562
    %v1574 = vadd.f32 %v1552, %v1562
    %v1575 = vadd.f32 %v1554, %v1562
    %v1576 = vadd.f32 %v1556, %v1562
    %v1577 = vadd.f32 %v1558, %v1562
    %v1578 = vadd.f32 %v1560, %v1562
    %v1595 = vlaneseq
    %v1596 = vshrl.u32 %v1595, 7
    %v1597 = vsub.s32 %v714, %v1596
    %v1598 = vrot.slane %v1563, %v1597
    %v1599 = vlaneseq
    %v1600 = vshrl.u32 %v1599, 7
    %v1601 = vsub.s32 %v719, %v1600
    %v1602 = vrot.slane %v1564, %v1601
    %v1603 = vsel %vm724, %v1602, %v1598
    %v1604 = vlaneseq
    %v1605 = vshrl.u32 %v1604, 7
    %v1606 = vsub.s32 %v726, %v1605
    %v1607 = vrot.slane %v1565, %v1606
    %v1608 = vsel %vm731, %v1607, %v1603
    %v1609 = vlaneseq
    %v1610 = vshrl.u32 %v1609, 7
    %v1611 = vsub.s32 %v733, %v1610
    %v1612 = vrot.slane %v1566, %v1611
    %v1613 = vsel %vm738, %v1612, %v1608
    %v1614 = vlaneseq
    %v1615 = vshrl.u32 %v1614, 7
    %v1616 = vsub.s32 %v740, %v1615
    %v1617 = vrot.slane %v1567, %v1616
    %v1618 = vsel %vm745, %v1617, %v1613
    %v1619 = vlaneseq
    %v1620 = vshrl.u32 %v1619, 7
    %v1621 = vsub.s32 %v747, %v1620
    %v1622 = vrot.slane %v1568, %v1621
    %v1623 = vsel %vm752, %v1622, %v1618
    %v1624 = vlaneseq
    %v1625 = vshrl.u32 %v1624, 7
    %v1626 = vsub.s32 %v754, %v1625
    %v1627 = vrot.slane %v1569, %v1626
    %v1628 = vsel %vm759, %v1627, %v1623
    %v1629 = vlaneseq
    %v1630 = vshrl.u32 %v1629, 7
    %v1631 = vsub.s32 %v761, %v1630
    %v1632 = vrot.slane %v1570, %v1631
    %v1633 = vsel %vm766, %v1632, %v1628
    %v1634 = vlaneseq
    %v1635 = vshrl.u32 %v1634, 7
    %v1636 = vsub.s32 %v768, %v1635
    %v1637 = vrot.slane %v1571, %v1636
    %v1638 = vsel %vm773, %v1637, %v1633
    %v1639 = vlaneseq
    %v1640 = vshrl.u32 %v1639, 7
    %v1641 = vsub.s32 %v775, %v1640
    %v1642 = vrot.slane %v1572, %v1641
    %v1643 = vsel %vm780, %v1642, %v1638
    %v1644 = vlaneseq
    %v1645 = vshrl.u32 %v1644, 7
    %v1646 = vsub.s32 %v782, %v1645
    %v1647 = vrot.slane %v1573, %v1646
    %v1648 = vsel %vm787, %v1647, %v1643
    %v1649 = vlaneseq
    %v1650 = vshrl.u32 %v1649, 7
    %v1651 = vsub.s32 %v789, %v1650
    %v1652 = vrot.slane %v1574, %v1651
    %v1653 = vsel %vm794, %v1652, %v1648
    %v1654 = vlaneseq
    %v1655 = vshrl.u32 %v1654, 7
    %v1656 = vsub.s32 %v796, %v1655
    %v1657 = vrot.slane %v1575, %v1656
    %v1658 = vsel %vm801, %v1657, %v1653
    %v1659 = vlaneseq
    %v1660 = vshrl.u32 %v1659, 7
    %v1661 = vsub.s32 %v803, %v1660
    %v1662 = vrot.slane %v1576, %v1661
    %v1663 = vsel %vm808, %v1662, %v1658
    %v1664 = vlaneseq
    %v1665 = vshrl.u32 %v1664, 7
    %v1666 = vsub.s32 %v810, %v1665
    %v1667 = vrot.slane %v1577, %v1666
    %v1668 = vsel %vm815, %v1667, %v1663
    %v1669 = vlaneseq
    %v1670 = vshrl.u32 %v1669, 7
    %v1671 = vsub.s32 %v817, %v1670
    %v1672 = vrot.slane %v1578, %v1671
    %v1673 = vsel %vm822, %v1672, %v1668
    %s1675 = scalar_lea.vmem [#allocation10], 2
    %1676 = vst [vmem:[%s1675] sm:$0x1] %v1673
    %1677 = vadd.xlane.f32.xlu0 %v1498
    %v1678 = vpop.xlane.xlu0 %1677
    %1679 = vadd.xlane.f32.xlu0 %v1500
    %v1680 = vpop.xlane.xlu0 %1679
    %1681 = vadd.xlane.f32.xlu0 %v1502
    %v1682 = vpop.xlane.xlu0 %1681
    %1683 = vadd.xlane.f32.xlu0 %v1504
    %v1684 = vpop.xlane.xlu0 %1683
    %1685 = vadd.xlane.f32.xlu0 %v1506
    %v1686 = vpop.xlane.xlu0 %1685
    %1687 = vadd.xlane.f32.xlu0 %v1508
    %v1688 = vpop.xlane.xlu0 %1687
    %1689 = vadd.xlane.f32.xlu0 %v1510
    %v1690 = vpop.xlane.xlu0 %1689
    %1691 = vadd.xlane.f32.xlu0 %v1512
    %v1692 = vpop.xlane.xlu0 %1691
    %1693 = vadd.xlane.f32.xlu0 %v1514
    %v1694 = vpop.xlane.xlu0 %1693
    %1695 = vadd.xlane.f32.xlu0 %v1516
    %v1696 = vpop.xlane.xlu0 %1695
    %1697 = vadd.xlane.f32.xlu0 %v1518
    %v1698 = vpop.xlane.xlu0 %1697
    %1699 = vadd.xlane.f32.xlu0 %v1520
    %v1700 = vpop.xlane.xlu0 %1699
    %1701 = vadd.xlane.f32.xlu0 %v1522
    %v1702 = vpop.xlane.xlu0 %1701
    %1703 = vadd.xlane.f32.xlu0 %v1524
    %v1704 = vpop.xlane.xlu0 %1703
    %1705 = vadd.xlane.f32.xlu0 %v1526
    %v1706 = vpop.xlane.xlu0 %1705
    %1707 = vadd.xlane.f32.xlu0 %v1528
    %v1708 = vpop.xlane.xlu0 %1707
    %s1709 = sld [smem:[#allocation9 + $0x3]]
    %v1710 = vstv %s1709
    %v1711 = vadd.f32 %v1678, %v1710
    %v1712 = vadd.f32 %v1680, %v1710
    %v1713 = vadd.f32 %v1682, %v1710
    %v1714 = vadd.f32 %v1684, %v1710
    %v1715 = vadd.f32 %v1686, %v1710
    %v1716 = vadd.f32 %v1688, %v1710
    %v1717 = vadd.f32 %v1690, %v1710
    %v1718 = vadd.f32 %v1692, %v1710
    %v1719 = vadd.f32 %v1694, %v1710
    %v1720 = vadd.f32 %v1696, %v1710
    %v1721 = vadd.f32 %v1698, %v1710
    %v1722 = vadd.f32 %v1700, %v1710
    %v1723 = vadd.f32 %v1702, %v1710
    %v1724 = vadd.f32 %v1704, %v1710
    %v1725 = vadd.f32 %v1706, %v1710
    %v1726 = vadd.f32 %v1708, %v1710
    %v1743 = vlaneseq
    %v1744 = vshrl.u32 %v1743, 7
    %v1745 = vsub.s32 %v714, %v1744
    %v1746 = vrot.slane %v1711, %v1745
    %v1747 = vlaneseq
    %v1748 = vshrl.u32 %v1747, 7
    %v1749 = vsub.s32 %v719, %v1748
    %v1750 = vrot.slane %v1712, %v1749
    %v1751 = vsel %vm724, %v1750, %v1746
    %v1752 = vlaneseq
    %v1753 = vshrl.u32 %v1752, 7
    %v1754 = vsub.s32 %v726, %v1753
    %v1755 = vrot.slane %v1713, %v1754
    %v1756 = vsel %vm731, %v1755, %v1751
    %v1757 = vlaneseq
    %v1758 = vshrl.u32 %v1757, 7
    %v1759 = vsub.s32 %v733, %v1758
    %v1760 = vrot.slane %v1714, %v1759
    %v1761 = vsel %vm738, %v1760, %v1756
    %v1762 = vlaneseq
    %v1763 = vshrl.u32 %v1762, 7
    %v1764 = vsub.s32 %v740, %v1763
    %v1765 = vrot.slane %v1715, %v1764
    %v1766 = vsel %vm745, %v1765, %v1761
    %v1767 = vlaneseq
    %v1768 = vshrl.u32 %v1767, 7
    %v1769 = vsub.s32 %v747, %v1768
    %v1770 = vrot.slane %v1716, %v1769
    %v1771 = vsel %vm752, %v1770, %v1766
    %v1772 = vlaneseq
    %v1773 = vshrl.u32 %v1772, 7
    %v1774 = vsub.s32 %v754, %v1773
    %v1775 = vrot.slane %v1717, %v1774
    %v1776 = vsel %vm759, %v1775, %v1771
    %v1777 = vlaneseq
    %v1778 = vshrl.u32 %v1777, 7
    %v1779 = vsub.s32 %v761, %v1778
    %v1780 = vrot.slane %v1718, %v1779
    %v1781 = vsel %vm766, %v1780, %v1776
    %v1782 = vlaneseq
    %v1783 = vshrl.u32 %v1782, 7
    %v1784 = vsub.s32 %v768, %v1783
    %v1785 = vrot.slane %v1719, %v1784
    %v1786 = vsel %vm773, %v1785, %v1781
    %v1787 = vlaneseq
    %v1788 = vshrl.u32 %v1787, 7
    %v1789 = vsub.s32 %v775, %v1788
    %v1790 = vrot.slane %v1720, %v1789
    %v1791 = vsel %vm780, %v1790, %v1786
    %v1792 = vlaneseq
    %v1793 = vshrl.u32 %v1792, 7
    %v1794 = vsub.s32 %v782, %v1793
    %v1795 = vrot.slane %v1721, %v1794
    %v1796 = vsel %vm787, %v1795, %v1791
    %v1797 = vlaneseq
    %v1798 = vshrl.u32 %v1797, 7
    %v1799 = vsub.s32 %v789, %v1798
    %v1800 = vrot.slane %v1722, %v1799
    %v1801 = vsel %vm794, %v1800, %v1796
    %v1802 = vlaneseq
    %v1803 = vshrl.u32 %v1802, 7
    %v1804 = vsub.s32 %v796, %v1803
    %v1805 = vrot.slane %v1723, %v1804
    %v1806 = vsel %vm801, %v1805, %v1801
    %v1807 = vlaneseq
    %v1808 = vshrl.u32 %v1807, 7
    %v1809 = vsub.s32 %v803, %v1808
    %v1810 = vrot.slane %v1724, %v1809
    %v1811 = vsel %vm808, %v1810, %v1806
    %v1812 = vlaneseq
    %v1813 = vshrl.u32 %v1812, 7
    %v1814 = vsub.s32 %v810, %v1813
    %v1815 = vrot.slane %v1725, %v1814
    %v1816 = vsel %vm815, %v1815, %v1811
    %v1817 = vlaneseq
    %v1818 = vshrl.u32 %v1817, 7
    %v1819 = vsub.s32 %v817, %v1818
    %v1820 = vrot.slane %v1726, %v1819
    %v1821 = vsel %vm822, %v1820, %v1816
    %s1823 = scalar_lea.vmem [#allocation10], 3
    %1824 = vst [vmem:[%s1823] sm:$0x1] %v1821
    // Predicated region
    $region46: #{tpu_custom_call.1} parent=1 // pred_check
      _
    $region47: #{tpu_custom_call.1} parent=1 // pred_check_branch
      %1826 = sbr.rel (0) target = $region49
    $region48: #{tpu_custom_call.1} parent=1 // pred_region
      %s1828 = ssub.s32 64, 64
      %1829 = vsyncadd [#allocation4], %s1828
      %s1830 = sshll.u32 [#allocation10], 4
      %s1831 = int_to_ptr.vmem [resolvable:$true] %s1830
      %1836 = dma.vmem_to_hbm [thread:$0]  %s1831, 64, %s7, [#allocation4], 16, 16, 1
    $region49: #{tpu_custom_call.1} parent=1 // pred_fallthru
      _
    // Predicated region
    $region50: #{tpu_custom_call.1} parent=1 // pred_check
      _
    $region51: #{tpu_custom_call.1} parent=1 // pred_check_branch
      %1838 = sbr.rel (0) target = $region53
    $region52: #{tpu_custom_call.1} parent=1 // pred_region
      %1839 = dma.done [#allocation4], 64
    $region53: #{tpu_custom_call.1} parent=1 // pred_fallthru
      _
    %1840 = vsyncpa [#allocation3], 1
    %1841 = vsyncpa [#allocation7], 1
    %1842 = vsyncpa [#allocation4], 1
    %1843 = vsyncpa [#allocation5], 1

</llo_original>
